<compile_context>
chip_gen: v5e
topology: v5e:2x2
jax: 0.10.0
libtpu: 0.0.40
codegen_flags: <defaults>
</compile_context>

<pallas_src>
import functools

import jax
import jax.numpy as jnp
from jax.experimental import pallas as pl
from jax.experimental.pallas import tpu as pltpu


# ----------------------------- fused Pallas kernel ---------------------------

def _tcn_fused_kernel(*refs, num_levels, T, P, dils, ks, channels, cin0):
    """Fused TCN forward for one M-block.

    refs layout (positional):
        xp_ref                      (tm, P+T, cin0)  causally pre-padded input
        [w_l, b_l] * num_levels     w_l: (ks, Cin_l, Cout_l), b_l: (1, Cout_l)
        wd_ref, bd_ref              (cin0, Clast), (1, Clast)
        o_ref                       (tm*T, Clast)
        scratch_l * (num_levels-1)  (tm, P+T, Cout_l) padded VMEM intermediates
    """
    xp_ref = refs[0]
    wb = refs[1:1 + 2 * num_levels]
    wd_ref = refs[1 + 2 * num_levels]
    bd_ref = refs[2 + 2 * num_levels]
    o_ref = refs[3 + 2 * num_levels]
    scratch = refs[4 + 2 * num_levels:]

    tm = xp_ref.shape[0]

    # Keep the causal pad rows of every intermediate buffer at zero; the data
    # region [:, P:, :] is (over)written below, so taps that reach into the
    # pad read exact zeros (== Conv2d left zero-padding + Chomp).
    if P > 0:
        for s_ref in scratch:
            s_ref[:, :P, :] = jnp.zeros((tm, P, s_ref.shape[-1]), jnp.float32)

    src_ref = xp_ref
    cin = cin0
    for lvl in range(num_levels):
        w_ref = wb[2 * lvl]
        b_ref = wb[2 * lvl + 1]
        cout = channels[lvl]
        dil = dils[lvl]

        acc = None
        for k in range(ks):
            off = (ks - 1 - k) * dil                  # causal tap offset (static)
            tap = src_ref[:, P - off: P - off + T, :].reshape(tm * T, cin)
            d = jnp.dot(tap, w_ref[k], preferred_element_type=jnp.float32)
            acc = d if acc is None else acc + d
        y = jnp.maximum(acc + b_ref[...], 0.0)        # (tm*T, cout), bias bcast

        if lvl + 1 < num_levels:
            scratch[lvl][:, P:, :] = y.reshape(tm, T, cout)
            src_ref = scratch[lvl]
        else:
            # residual: relu(net_out + x @ Wd + bd), fused into the same kernel
            x0 = xp_ref[:, P:, :].reshape(tm * T, cin0)
            ds = jnp.dot(x0, wd_ref[...], preferred_element_type=jnp.float32)
            o_ref[...] = jnp.maximum(y + ds + bd_ref[...], 0.0)
        cin = cout


# --------------------------------- wrapper -----------------------------------

def temporal_conv_net(x, levels, downsample, ks, grid_m=2):
    """Forward pass matching TemporalConvNet.forward.

    x: (B, N, T, F) -> (B, N, T, num_channels[-1])  (or relu(x) if the
    PyTorch `downsample` conditional yields None).
    levels: list of (w, b, dilation) with w: (ks, Cin, Cout), b: (Cout,)
    downsample: (wd, bd) with wd: (F, Cout_last), bd: (Cout_last,)  or None
    """
    B, N, T, F_in = x.shape
    M = B * N
    y = x.reshape(M, T, F_in).astype(jnp.float32)

    if downsample is None:
        # PyTorch: F.relu(net(y) + ds(y) if ds else y) == relu(y) when ds is None
        return jnp.maximum(y, 0.0).reshape(B, N, T, F_in)

    dils = [d for (_, _, d) in levels]
    channels = [w.shape[-1] for (w, _, _) in levels]
    num_levels = len(levels)
    c_last = channels[-1]
    P = (ks - 1) * max(dils)                      # max causal pad across levels

    # Causal left-pad the input once, in the wrapper (XLA side).
    xp = jnp.pad(y, ((0, 0), (P, 0), (0, 0)))

    if M % grid_m != 0:
        grid_m = 1
    tm = M // grid_m

    kernel = functools.partial(
        _tcn_fused_kernel, num_levels=num_levels, T=T, P=P,
        dils=tuple(dils), ks=ks, channels=tuple(channels), cin0=F_in)

    in_specs = [pl.BlockSpec((tm, P + T, F_in), lambda i: (i, 0, 0))]
    args = [xp]
    cin = F_in
    for (w, b, _), cout in zip(levels, channels):
        in_specs.append(pl.BlockSpec((ks, cin, cout), lambda i: (0, 0, 0)))
        in_specs.append(pl.BlockSpec((1, cout), lambda i: (0, 0)))
        args.append(w)
        args.append(b.reshape(1, cout))
        cin = cout
    wd, bd = downsample
    in_specs.append(pl.BlockSpec((F_in, c_last), lambda i: (0, 0)))
    in_specs.append(pl.BlockSpec((1, c_last), lambda i: (0, 0)))
    args.append(wd)
    args.append(bd.reshape(1, c_last))

    scratch_shapes = [pltpu.VMEM((tm, P + T, c), jnp.float32)
                      for c in channels[:-1]]

    out = pl.pallas_call(
        kernel,
        out_shape=jax.ShapeDtypeStruct((M * T, c_last), jnp.float32),
        grid_spec=pltpu.PrefetchScalarGridSpec(
            num_scalar_prefetch=0,
            grid=(grid_m,),
            in_specs=in_specs,
            out_specs=pl.BlockSpec((tm * T, c_last), lambda i: (i, 0)),
            scratch_shapes=scratch_shapes,
        ),
        compiler_params=pltpu.CompilerParams(dimension_semantics=("parallel",)),
    )(*args)

    return out.reshape(B, N, T, c_last)


# --------------------------- pure-JAX reference -------------------------------

def ref_forward(x, levels, downsample, ks):
    B, N, T, F_in = x.shape
    y = x.reshape(B * N, T, F_in).astype(jnp.float32)
    if downsample is None:
        return jnp.maximum(y, 0.0).reshape(B, N, T, F_in)
    out = y
    for (w, b, dil) in levels:
        cout = w.shape[-1]
        acc = jnp.zeros((out.shape[0], T, cout), jnp.float32)
        for k in range(ks):
            off = (ks - 1 - k) * dil
            xs = jnp.pad(out, ((0, 0), (off, 0), (0, 0)))[:, :T, :]
            acc = acc + jnp.einsum("mtc,co->mto", xs, w[k])
        out = jnp.maximum(acc + b.reshape(1, 1, -1), 0.0)
    wd, bd = downsample
    res = jnp.maximum(out + jnp.einsum("mtc,co->mto", y, wd) + bd.reshape(1, 1, -1), 0.0)
    return res.reshape(B, N, T, -1)


# ----------------------------------- main -------------------------------------

if __name__ == "__main__":
    # Module config (small, consistent with STGODE usage):
    num_inputs = 4
    num_channels = [8, 16, 32]
    kernel_size = 2

    B, N, T = 2, 16, 12  # input x: (B, N, T, F)

    key = jax.random.PRNGKey(0)

    # Deterministic parameter init (weights ~ N(0, 0.01), like .normal_(0, 0.01)).
    levels = []
    cin = num_inputs
    for i, cout in enumerate(num_channels):
        key, kw, kb = jax.random.split(key, 3)
        w = jax.random.normal(kw, (kernel_size, cin, cout), jnp.float32) * 0.01
        b = jax.random.normal(kb, (cout,), jnp.float32) * 0.01
        levels.append((w, b, 2 ** i))
        cin = cout

    if num_inputs != num_channels[-1]:
        key, kw, kb = jax.random.split(key, 3)
        wd = jax.random.normal(kw, (num_inputs, num_channels[-1]), jnp.float32) * 0.01
        bd = jax.random.normal(kb, (num_channels[-1],), jnp.float32) * 0.01
        downsample = (wd, bd)
    else:
        downsample = None

    key, kx = jax.random.split(key)
    x = jax.random.normal(kx, (B, N, T, num_inputs), jnp.float32)

    out = temporal_conv_net(x, levels, downsample, kernel_size)
    out = jax.block_until_ready(out)

    ref = ref_forward(x, levels, downsample, kernel_size)
    assert out.shape == (B, N, T, num_channels[-1]), out.shape
    assert jnp.allclose(out, ref, atol=1e-5, rtol=1e-5), "mismatch vs reference"

    print("KERNEL_OK")
</pallas_src>

<mosaic_0001>
module attributes {stable_mosaic.version = 11 : i64} {
  func.func @_tcn_fused_kernel(%arg0: i32, %arg1: memref<16x16x4xf32, #tpu.memory_space<vmem>>, %arg2: memref<2x4x8xf32, #tpu.memory_space<vmem>>, %arg3: memref<1x8xf32, #tpu.memory_space<vmem>>, %arg4: memref<2x8x16xf32, #tpu.memory_space<vmem>>, %arg5: memref<1x16xf32, #tpu.memory_space<vmem>>, %arg6: memref<2x16x32xf32, #tpu.memory_space<vmem>>, %arg7: memref<1x32xf32, #tpu.memory_space<vmem>>, %arg8: memref<4x32xf32, #tpu.memory_space<vmem>>, %arg9: memref<1x32xf32, #tpu.memory_space<vmem>>, %arg10: memref<192x32xf32, #tpu.memory_space<vmem>>, %arg11: memref<16x16x8xf32, #tpu.memory_space<vmem>>, %arg12: memref<16x16x16xf32, #tpu.memory_space<vmem>>) attributes {dimension_semantics = [#tpu.dimension_semantics<parallel>], iteration_bounds = array<i64: 2>, scalar_prefetch = 0 : i64, scratch_operands = 2 : i64, tpu.core_type = #tpu.core_type<tc>, window_params = [{transform_indices = @transform_0, window_bounds = array<i64: 16, 16, 4>}, {pipeline_mode = #tpu.pipeline_mode<synchronous>, transform_indices = @transform_1, window_bounds = array<i64: 2, 4, 8>}, {pipeline_mode = #tpu.pipeline_mode<synchronous>, transform_indices = @transform_2, window_bounds = array<i64: 1, 8>}, {pipeline_mode = #tpu.pipeline_mode<synchronous>, transform_indices = @transform_3, window_bounds = array<i64: 2, 8, 16>}, {pipeline_mode = #tpu.pipeline_mode<synchronous>, transform_indices = @transform_4, window_bounds = array<i64: 1, 16>}, {pipeline_mode = #tpu.pipeline_mode<synchronous>, transform_indices = @transform_5, window_bounds = array<i64: 2, 16, 32>}, {pipeline_mode = #tpu.pipeline_mode<synchronous>, transform_indices = @transform_6, window_bounds = array<i64: 1, 32>}, {pipeline_mode = #tpu.pipeline_mode<synchronous>, transform_indices = @transform_7, window_bounds = array<i64: 4, 32>}, {pipeline_mode = #tpu.pipeline_mode<synchronous>, transform_indices = @transform_8, window_bounds = array<i64: 1, 32>}, {transform_indices = @transform_9, window_bounds = array<i64: 192, 32>}]} {
    %cst = arith.constant 0.000000e+00 : f32
    %0 = vector.broadcast %cst : f32 to vector<16x4x8xf32>
    %c0 = arith.constant 0 : index
    %c0_0 = arith.constant 0 : index
    %c0_1 = arith.constant 0 : index
    %1 = vector.load %arg11[%c0, %c0_0, %c0_1] : memref<16x16x8xf32, #tpu.memory_space<vmem>>, vector<16x4x8xf32>
    tpu.vector_store %arg11[%c0, %c0_0, %c0_1], %0 {strides = array<i32>} : memref<16x16x8xf32, #tpu.memory_space<vmem>>, vector<16x4x8xf32>,
    %cst_2 = arith.constant 0.000000e+00 : f32
    %2 = vector.broadcast %cst_2 : f32 to vector<16x4x16xf32>
    %c0_3 = arith.constant 0 : index
    %c0_4 = arith.constant 0 : index
    %c0_5 = arith.constant 0 : index
    %3 = vector.load %arg12[%c0_3, %c0_4, %c0_5] : memref<16x16x16xf32, #tpu.memory_space<vmem>>, vector<16x4x16xf32>
    tpu.vector_store %arg12[%c0_3, %c0_4, %c0_5], %2 {strides = array<i32>} : memref<16x16x16xf32, #tpu.memory_space<vmem>>, vector<16x4x16xf32>,
    %c0_6 = arith.constant 0 : index
    %c3 = arith.constant 3 : index
    %c0_7 = arith.constant 0 : index
    %4 = vector.load %arg1[%c0_6, %c3, %c0_7] : memref<16x16x4xf32, #tpu.memory_space<vmem>>, vector<16x12x4xf32>
    %5 = vector.shape_cast %4 : vector<16x12x4xf32> to vector<192x4xf32>
    %c0_8 = arith.constant 0 : index
    %c0_9 = arith.constant 0 : index
    %c0_10 = arith.constant 0 : index
    %6 = vector.load %arg2[%c0_8, %c0_9, %c0_10] : memref<2x4x8xf32, #tpu.memory_space<vmem>>, vector<1x4x8xf32>
    %7 = vector.shape_cast %6 : vector<1x4x8xf32> to vector<4x8xf32>
    %cst_11 = arith.constant dense<0.000000e+00> : vector<192x8xf32>
    %8 = tpu.matmul %5, %7, %cst_11 {dimension_numbers = #tpu.dot_dimension_numbers<[1], [0], [0], [1], [0, 0, 1, 1], [], []>} : vector<192x4xf32>, vector<4x8xf32>, vector<192x8xf32> -> vector<192x8xf32>
    %c0_12 = arith.constant 0 : index
    %c4 = arith.constant 4 : index
    %c0_13 = arith.constant 0 : index
    %9 = vector.load %arg1[%c0_12, %c4, %c0_13] : memref<16x16x4xf32, #tpu.memory_space<vmem>>, vector<16x12x4xf32>
    %10 = vector.shape_cast %9 : vector<16x12x4xf32> to vector<192x4xf32>
    %c1 = arith.constant 1 : index
    %c0_14 = arith.constant 0 : index
    %c0_15 = arith.constant 0 : index
    %11 = vector.load %arg2[%c1, %c0_14, %c0_15] : memref<2x4x8xf32, #tpu.memory_space<vmem>>, vector<1x4x8xf32>
    %12 = vector.shape_cast %11 : vector<1x4x8xf32> to vector<4x8xf32>
    %cst_16 = arith.constant dense<0.000000e+00> : vector<192x8xf32>
    %13 = tpu.matmul %10, %12, %cst_16 {dimension_numbers = #tpu.dot_dimension_numbers<[1], [0], [0], [1], [0, 0, 1, 1], [], []>} : vector<192x4xf32>, vector<4x8xf32>, vector<192x8xf32> -> vector<192x8xf32>
    %14 = arith.addf %8, %13 : vector<192x8xf32>
    %c0_17 = arith.constant 0 : index
    %c0_18 = arith.constant 0 : index
    %15 = vector.load %arg3[%c0_17, %c0_18] : memref<1x8xf32, #tpu.memory_space<vmem>>, vector<1x8xf32>
    %16 = vector.broadcast %15 : vector<1x8xf32> to vector<192x8xf32>
    %17 = arith.addf %14, %16 : vector<192x8xf32>
    %cst_19 = arith.constant 0.000000e+00 : f32
    %18 = vector.broadcast %cst_19 : f32 to vector<192x8xf32>
    %19 = arith.maximumf %17, %18 : vector<192x8xf32>
    %20 = vector.shape_cast %19 : vector<192x8xf32> to vector<16x12x8xf32>
    %c0_20 = arith.constant 0 : index
    %c4_21 = arith.constant 4 : index
    %c0_22 = arith.constant 0 : index
    %21 = vector.load %arg11[%c0_20, %c4_21, %c0_22] : memref<16x16x8xf32, #tpu.memory_space<vmem>>, vector<16x12x8xf32>
    tpu.vector_store %arg11[%c0_20, %c4_21, %c0_22], %20 {strides = array<i32>} : memref<16x16x8xf32, #tpu.memory_space<vmem>>, vector<16x12x8xf32>,
    %c0_23 = arith.constant 0 : index
    %c2 = arith.constant 2 : index
    %c0_24 = arith.constant 0 : index
    %22 = vector.load %arg11[%c0_23, %c2, %c0_24] : memref<16x16x8xf32, #tpu.memory_space<vmem>>, vector<16x12x8xf32>
    %23 = vector.shape_cast %22 : vector<16x12x8xf32> to vector<192x8xf32>
    %c0_25 = arith.constant 0 : index
    %c0_26 = arith.constant 0 : index
    %c0_27 = arith.constant 0 : index
    %24 = vector.load %arg4[%c0_25, %c0_26, %c0_27] : memref<2x8x16xf32, #tpu.memory_space<vmem>>, vector<1x8x16xf32>
    %25 = vector.shape_cast %24 : vector<1x8x16xf32> to vector<8x16xf32>
    %cst_28 = arith.constant dense<0.000000e+00> : vector<192x16xf32>
    %26 = tpu.matmul %23, %25, %cst_28 {dimension_numbers = #tpu.dot_dimension_numbers<[1], [0], [0], [1], [0, 0, 1, 1], [], []>} : vector<192x8xf32>, vector<8x16xf32>, vector<192x16xf32> -> vector<192x16xf32>
    %c0_29 = arith.constant 0 : index
    %c4_30 = arith.constant 4 : index
    %c0_31 = arith.constant 0 : index
    %27 = vector.load %arg11[%c0_29, %c4_30, %c0_31] : memref<16x16x8xf32, #tpu.memory_space<vmem>>, vector<16x12x8xf32>
    %28 = vector.shape_cast %27 : vector<16x12x8xf32> to vector<192x8xf32>
    %c1_32 = arith.constant 1 : index
    %c0_33 = arith.constant 0 : index
    %c0_34 = arith.constant 0 : index
    %29 = vector.load %arg4[%c1_32, %c0_33, %c0_34] : memref<2x8x16xf32, #tpu.memory_space<vmem>>, vector<1x8x16xf32>
    %30 = vector.shape_cast %29 : vector<1x8x16xf32> to vector<8x16xf32>
    %cst_35 = arith.constant dense<0.000000e+00> : vector<192x16xf32>
    %31 = tpu.matmul %28, %30, %cst_35 {dimension_numbers = #tpu.dot_dimension_numbers<[1], [0], [0], [1], [0, 0, 1, 1], [], []>} : vector<192x8xf32>, vector<8x16xf32>, vector<192x16xf32> -> vector<192x16xf32>
    %32 = arith.addf %26, %31 : vector<192x16xf32>
    %c0_36 = arith.constant 0 : index
    %c0_37 = arith.constant 0 : index
    %33 = vector.load %arg5[%c0_36, %c0_37] : memref<1x16xf32, #tpu.memory_space<vmem>>, vector<1x16xf32>
    %34 = vector.broadcast %33 : vector<1x16xf32> to vector<192x16xf32>
    %35 = arith.addf %32, %34 : vector<192x16xf32>
    %cst_38 = arith.constant 0.000000e+00 : f32
    %36 = vector.broadcast %cst_38 : f32 to vector<192x16xf32>
    %37 = arith.maximumf %35, %36 : vector<192x16xf32>
    %38 = vector.shape_cast %37 : vector<192x16xf32> to vector<16x12x16xf32>
    %c0_39 = arith.constant 0 : index
    %c4_40 = arith.constant 4 : index
    %c0_41 = arith.constant 0 : index
    %39 = vector.load %arg12[%c0_39, %c4_40, %c0_41] : memref<16x16x16xf32, #tpu.memory_space<vmem>>, vector<16x12x16xf32>
    tpu.vector_store %arg12[%c0_39, %c4_40, %c0_41], %38 {strides = array<i32>} : memref<16x16x16xf32, #tpu.memory_space<vmem>>, vector<16x12x16xf32>,
    %c0_42 = arith.constant 0 : index
    %c0_43 = arith.constant 0 : index
    %c0_44 = arith.constant 0 : index
    %40 = vector.load %arg12[%c0_42, %c0_43, %c0_44] : memref<16x16x16xf32, #tpu.memory_space<vmem>>, vector<16x12x16xf32>
    %41 = vector.shape_cast %40 : vector<16x12x16xf32> to vector<192x16xf32>
    %c0_45 = arith.constant 0 : index
    %c0_46 = arith.constant 0 : index
    %c0_47 = arith.constant 0 : index
    %42 = vector.load %arg6[%c0_45, %c0_46, %c0_47] : memref<2x16x32xf32, #tpu.memory_space<vmem>>, vector<1x16x32xf32>
    %43 = vector.shape_cast %42 : vector<1x16x32xf32> to vector<16x32xf32>
    %cst_48 = arith.constant dense<0.000000e+00> : vector<192x32xf32>
    %44 = tpu.matmul %41, %43, %cst_48 {dimension_numbers = #tpu.dot_dimension_numbers<[1], [0], [0], [1], [0, 0, 1, 1], [], []>} : vector<192x16xf32>, vector<16x32xf32>, vector<192x32xf32> -> vector<192x32xf32>
    %c0_49 = arith.constant 0 : index
    %c4_50 = arith.constant 4 : index
    %c0_51 = arith.constant 0 : index
    %45 = vector.load %arg12[%c0_49, %c4_50, %c0_51] : memref<16x16x16xf32, #tpu.memory_space<vmem>>, vector<16x12x16xf32>
    %46 = vector.shape_cast %45 : vector<16x12x16xf32> to vector<192x16xf32>
    %c1_52 = arith.constant 1 : index
    %c0_53 = arith.constant 0 : index
    %c0_54 = arith.constant 0 : index
    %47 = vector.load %arg6[%c1_52, %c0_53, %c0_54] : memref<2x16x32xf32, #tpu.memory_space<vmem>>, vector<1x16x32xf32>
    %48 = vector.shape_cast %47 : vector<1x16x32xf32> to vector<16x32xf32>
    %cst_55 = arith.constant dense<0.000000e+00> : vector<192x32xf32>
    %49 = tpu.matmul %46, %48, %cst_55 {dimension_numbers = #tpu.dot_dimension_numbers<[1], [0], [0], [1], [0, 0, 1, 1], [], []>} : vector<192x16xf32>, vector<16x32xf32>, vector<192x32xf32> -> vector<192x32xf32>
    %50 = arith.addf %44, %49 : vector<192x32xf32>
    %c0_56 = arith.constant 0 : index
    %c0_57 = arith.constant 0 : index
    %51 = vector.load %arg7[%c0_56, %c0_57] : memref<1x32xf32, #tpu.memory_space<vmem>>, vector<1x32xf32>
    %52 = vector.broadcast %51 : vector<1x32xf32> to vector<192x32xf32>
    %53 = arith.addf %50, %52 : vector<192x32xf32>
    %cst_58 = arith.constant 0.000000e+00 : f32
    %54 = vector.broadcast %cst_58 : f32 to vector<192x32xf32>
    %55 = arith.maximumf %53, %54 : vector<192x32xf32>
    %c0_59 = arith.constant 0 : index
    %c4_60 = arith.constant 4 : index
    %c0_61 = arith.constant 0 : index
    %56 = vector.load %arg1[%c0_59, %c4_60, %c0_61] : memref<16x16x4xf32, #tpu.memory_space<vmem>>, vector<16x12x4xf32>
    %57 = vector.shape_cast %56 : vector<16x12x4xf32> to vector<192x4xf32>
    %c0_62 = arith.constant 0 : index
    %c0_63 = arith.constant 0 : index
    %58 = vector.load %arg8[%c0_62, %c0_63] : memref<4x32xf32, #tpu.memory_space<vmem>>, vector<4x32xf32>
    %cst_64 = arith.constant dense<0.000000e+00> : vector<192x32xf32>
    %59 = tpu.matmul %57, %58, %cst_64 {dimension_numbers = #tpu.dot_dimension_numbers<[1], [0], [0], [1], [0, 0, 1, 1], [], []>} : vector<192x4xf32>, vector<4x32xf32>, vector<192x32xf32> -> vector<192x32xf32>
    %60 = arith.addf %55, %59 : vector<192x32xf32>
    %c0_65 = arith.constant 0 : index
    %c0_66 = arith.constant 0 : index
    %61 = vector.load %arg9[%c0_65, %c0_66] : memref<1x32xf32, #tpu.memory_space<vmem>>, vector<1x32xf32>
    %62 = vector.broadcast %61 : vector<1x32xf32> to vector<192x32xf32>
    %63 = arith.addf %60, %62 : vector<192x32xf32>
    %cst_67 = arith.constant 0.000000e+00 : f32
    %64 = vector.broadcast %cst_67 : f32 to vector<192x32xf32>
    %65 = arith.maximumf %63, %64 : vector<192x32xf32>
    %c0_68 = arith.constant 0 : index
    %c0_69 = arith.constant 0 : index
    %66 = vector.load %arg10[%c0_68, %c0_69] : memref<192x32xf32, #tpu.memory_space<vmem>>, vector<192x32xf32>
    tpu.vector_store %arg10[%c0_68, %c0_69], %65 {strides = array<i32>} : memref<192x32xf32, #tpu.memory_space<vmem>>, vector<192x32xf32>,
    return
  }
  func.func @transform_0(%arg0: i32) -> (i32, i32, i32) {
    %c0_i32 = arith.constant 0 : i32
    %c0_i32_0 = arith.constant 0 : i32
    %c0_i32_1 = arith.constant 0 : i32
    return %arg0, %c0_i32, %c0_i32_0 : i32, i32, i32
  }
  func.func @transform_1(%arg0: i32) -> (i32, i32, i32) {
    %c0_i32 = arith.constant 0 : i32
    %c0_i32_0 = arith.constant 0 : i32
    %c0_i32_1 = arith.constant 0 : i32
    %c0_i32_2 = arith.constant 0 : i32
    return %c0_i32, %c0_i32_0, %c0_i32_1 : i32, i32, i32
  }
  func.func @transform_2(%arg0: i32) -> (i32, i32) {
    %c0_i32 = arith.constant 0 : i32
    %c0_i32_0 = arith.constant 0 : i32
    %c0_i32_1 = arith.constant 0 : i32
    return %c0_i32, %c0_i32_0 : i32, i32
  }
  func.func @transform_3(%arg0: i32) -> (i32, i32, i32) {
    %c0_i32 = arith.constant 0 : i32
    %c0_i32_0 = arith.constant 0 : i32
    %c0_i32_1 = arith.constant 0 : i32
    %c0_i32_2 = arith.constant 0 : i32
    return %c0_i32, %c0_i32_0, %c0_i32_1 : i32, i32, i32
  }
  func.func @transform_4(%arg0: i32) -> (i32, i32) {
    %c0_i32 = arith.constant 0 : i32
    %c0_i32_0 = arith.constant 0 : i32
    %c0_i32_1 = arith.constant 0 : i32
    return %c0_i32, %c0_i32_0 : i32, i32
  }
  func.func @transform_5(%arg0: i32) -> (i32, i32, i32) {
    %c0_i32 = arith.constant 0 : i32
    %c0_i32_0 = arith.constant 0 : i32
    %c0_i32_1 = arith.constant 0 : i32
    %c0_i32_2 = arith.constant 0 : i32
    return %c0_i32, %c0_i32_0, %c0_i32_1 : i32, i32, i32
  }
  func.func @transform_6(%arg0: i32) -> (i32, i32) {
    %c0_i32 = arith.constant 0 : i32
    %c0_i32_0 = arith.constant 0 : i32
    %c0_i32_1 = arith.constant 0 : i32
    return %c0_i32, %c0_i32_0 : i32, i32
  }
  func.func @transform_7(%arg0: i32) -> (i32, i32) {
    %c0_i32 = arith.constant 0 : i32
    %c0_i32_0 = arith.constant 0 : i32
    %c0_i32_1 = arith.constant 0 : i32
    return %c0_i32, %c0_i32_0 : i32, i32
  }
  func.func @transform_8(%arg0: i32) -> (i32, i32) {
    %c0_i32 = arith.constant 0 : i32
    %c0_i32_0 = arith.constant 0 : i32
    %c0_i32_1 = arith.constant 0 : i32
    return %c0_i32, %c0_i32_0 : i32, i32
  }
  func.func @transform_9(%arg0: i32) -> (i32, i32) {
    %c0_i32 = arith.constant 0 : i32
    %c0_i32_0 = arith.constant 0 : i32
    return %arg0, %c0_i32 : i32, i32
  }
}

</mosaic_0001>

<llo_original>
// kernel: tpu_custom_call.1
$region0: #{tpu_custom_call.1}
  #allocation0 [shape = 'u32[]', space=smem, size = 0x4, offset = 0x4, fixed_abs, tag = 'smem constant byte address 0x4 - core index']
  #allocation1 [shape = 'u32[72,128]{1,0:T(1,128)}', space=vmem, size = 0x9000, scoped, tag = 'internal scratch']
  #allocation2 [shape = 'f32[16,16,8]{2,1,0:T(8,128)}', space=vmem, size = 0x20000, scoped, tag = 'scratch operand']
  #allocation3 [shape = 'f32[16,16,16]{2,1,0:T(8,128)}', space=vmem, size = 0x20000, scoped, tag = 'scratch operand']
  %s0 = inlined_call_operand.vmem [shape: f32[32,16,4], index: 0, kind: input, shape index: {}]
  %s1 = inlined_call_operand.vmem [shape: f32[2,4,8], index: 1, kind: input, shape index: {}]
  %s2 = inlined_call_operand.vmem [shape: f32[1,8], index: 2, kind: input, shape index: {}]
  %s3 = inlined_call_operand.vmem [shape: f32[2,8,16], index: 3, kind: input, shape index: {}]
  %s4 = inlined_call_operand.vmem [shape: f32[1,16], index: 4, kind: input, shape index: {}]
  %s5 = inlined_call_operand.vmem [shape: f32[2,16,32], index: 5, kind: input, shape index: {}]
  %s6 = inlined_call_operand.vmem [shape: f32[1,32], index: 6, kind: input, shape index: {}]
  %s7 = inlined_call_operand.vmem [shape: f32[4,32], index: 7, kind: input, shape index: {}]
  %s8 = inlined_call_operand.vmem [shape: f32[1,32], index: 8, kind: input, shape index: {}]
  %s9 = inlined_call_operand.vmem [shape: f32[384,32], index: 9, kind: output, shape index: {}]
  %s10 = sld [smem:[#allocation0]]
  $region69: #{tpu_custom_call.1} parent=0
    _
  %s12 = ssub.s32 1, %s10
  %s13 = scalar_select 0, %s12, %s10
  loop: start=0, step=1, limit=4
  $region2: #{tpu_custom_call.1} parent=0 // loop_pre_header
    _
  $region3: #{tpu_custom_call.1} parent=0 // loop_header
    %s15 = sphi 0, %s19
    %p16 = scmp.ge.s32.totalorder %s15, 4
    %s25 = sphi 0, %s27
    %s28 = sphi 0, %s25
    %s29 = sphi 0, %s28
    %s45 = sphi 0, %s29
    %s49 = sphi 0, %s49
    %s51 = sphi 0, %s49
    %s52 = sphi 0, %s51
    %s66 = sphi 0, %s52
    %s70 = sphi 0, %s70
    %s72 = sphi 0, %s70
    %s73 = sphi 0, %s72
    %s87 = sphi 0, %s73
    %s91 = sphi 0, %s91
    %s93 = sphi 0, %s91
    %s94 = sphi 0, %s93
    %s108 = sphi 0, %s94
    %s112 = sphi 0, %s112
    %s114 = sphi 0, %s112
    %s115 = sphi 0, %s114
    %s129 = sphi 0, %s115
    %s133 = sphi 0, %s133
    %s135 = sphi 0, %s133
    %s136 = sphi 0, %s135
    %s150 = sphi 0, %s136
    %s154 = sphi 0, %s154
    %s156 = sphi 0, %s154
    %s157 = sphi 0, %s156
    %s171 = sphi 0, %s157
    %s175 = sphi 0, %s175
    %s177 = sphi 0, %s175
    %s178 = sphi 0, %s177
    %s192 = sphi 0, %s178
    %s196 = sphi 0, %s196
    %s198 = sphi 0, %s196
    %s199 = sphi 0, %s198
    %s213 = sphi 0, %s199
    %s219 = sphi 0, %s221
    %s222 = sphi 0, %s219
    %s223 = sphi 0, %s222
    %s239 = sphi 0, %s223
  $region4: #{tpu_custom_call.1} parent=0 // loop_header_branch
    %18 = sbr.rel (%p16) target = $region8
  $region5: #{tpu_custom_call.1} parent=0 // loop_body
    %s20 = ssub.s32 %s15, 1
    %s21 = ssub.s32 %s15, 2
    %s22 = sadd.s32 %s15, 1
    %s23 = ssub.s32 %s15, %s22
    %p24 = scmp.eq.s32.totalorder %s23, 0
    %s26 = sadd.s32 %s25, 1
    %s27 = scalar_select %p24, %s25, %s26
    %p30 = pneg %p24
    %p31 = scmp.eq.s32.totalorder %s15, 1
    %p32 = por %p30, %p31
    %p33 = scmp.ne.s32.totalorder %s25, %s28
    %p34 = scmp.eq.s32.totalorder %s15, 0
    %p35 = por %p33, %p34
    %p36 = scmp.ne.s32.totalorder %s25, %s28
    %p37 = scmp.eq.s32.totalorder %s20, 1
    %p38 = por %p36, %p37
    %p39 = scmp.ne.s32.totalorder %s28, %s29
    %p40 = scmp.eq.s32.totalorder %s20, 0
    %p41 = por %p39, %p40
    %p42 = scmp.ne.s32.totalorder %s28, %s29
    %p43 = scmp.eq.s32.totalorder %s21, 1
    %p44 = por %p42, %p43
    %p46 = scmp.ne.s32.totalorder %s29, %s45
    %p47 = scmp.eq.s32.totalorder %s21, 0
    %p48 = por %p46, %p47
    %s50 = sadd.s32 %s49, 1
    %p53 = scmp.eq.s32.totalorder %s15, 1
    %p54 = scmp.ne.s32.totalorder %s49, %s51
    %p55 = scmp.eq.s32.totalorder %s15, 0
    %p56 = por %p54, %p55
    %p57 = scmp.ne.s32.totalorder %s49, %s51
    %p58 = scmp.eq.s32.totalorder %s20, 1
    %p59 = por %p57, %p58
    %p60 = scmp.ne.s32.totalorder %s51, %s52
    %p61 = scmp.eq.s32.totalorder %s20, 0
    %p62 = por %p60, %p61
    %p63 = scmp.ne.s32.totalorder %s51, %s52
    %p64 = scmp.eq.s32.totalorder %s21, 1
    %p65 = por %p63, %p64
    %p67 = scmp.ne.s32.totalorder %s52, %s66
    %p68 = scmp.eq.s32.totalorder %s21, 0
    %p69 = por %p67, %p68
    %s71 = sadd.s32 %s70, 1
    %p74 = scmp.eq.s32.totalorder %s15, 1
    %p75 = scmp.ne.s32.totalorder %s70, %s72
    %p76 = scmp.eq.s32.totalorder %s15, 0
    %p77 = por %p75, %p76
    %p78 = scmp.ne.s32.totalorder %s70, %s72
    %p79 = scmp.eq.s32.totalorder %s20, 1
    %p80 = por %p78, %p79
    %p81 = scmp.ne.s32.totalorder %s72, %s73
    %p82 = scmp.eq.s32.totalorder %s20, 0
    %p83 = por %p81, %p82
    %p84 = scmp.ne.s32.totalorder %s72, %s73
    %p85 = scmp.eq.s32.totalorder %s21, 1
    %p86 = por %p84, %p85
    %p88 = scmp.ne.s32.totalorder %s73, %s87
    %p89 = scmp.eq.s32.totalorder %s21, 0
    %p90 = por %p88, %p89
    %s92 = sadd.s32 %s91, 1
    %p95 = scmp.eq.s32.totalorder %s15, 1
    %p96 = scmp.ne.s32.totalorder %s91, %s93
    %p97 = scmp.eq.s32.totalorder %s15, 0
    %p98 = por %p96, %p97
    %p99 = scmp.ne.s32.totalorder %s91, %s93
    %p100 = scmp.eq.s32.totalorder %s20, 1
    %p101 = por %p99, %p100
    %p102 = scmp.ne.s32.totalorder %s93, %s94
    %p103 = scmp.eq.s32.totalorder %s20, 0
    %p104 = por %p102, %p103
    %p105 = scmp.ne.s32.totalorder %s93, %s94
    %p106 = scmp.eq.s32.totalorder %s21, 1
    %p107 = por %p105, %p106
    %p109 = scmp.ne.s32.totalorder %s94, %s108
    %p110 = scmp.eq.s32.totalorder %s21, 0
    %p111 = por %p109, %p110
    %s113 = sadd.s32 %s112, 1
    %p116 = scmp.eq.s32.totalorder %s15, 1
    %p117 = scmp.ne.s32.totalorder %s112, %s114
    %p118 = scmp.eq.s32.totalorder %s15, 0
    %p119 = por %p117, %p118
    %p120 = scmp.ne.s32.totalorder %s112, %s114
    %p121 = scmp.eq.s32.totalorder %s20, 1
    %p122 = por %p120, %p121
    %p123 = scmp.ne.s32.totalorder %s114, %s115
    %p124 = scmp.eq.s32.totalorder %s20, 0
    %p125 = por %p123, %p124
    %p126 = scmp.ne.s32.totalorder %s114, %s115
    %p127 = scmp.eq.s32.totalorder %s21, 1
    %p128 = por %p126, %p127
    %p130 = scmp.ne.s32.totalorder %s115, %s129
    %p131 = scmp.eq.s32.totalorder %s21, 0
    %p132 = por %p130, %p131
    %s134 = sadd.s32 %s133, 1
    %p137 = scmp.eq.s32.totalorder %s15, 1
    %p138 = scmp.ne.s32.totalorder %s133, %s135
    %p139 = scmp.eq.s32.totalorder %s15, 0
    %p140 = por %p138, %p139
    %p141 = scmp.ne.s32.totalorder %s133, %s135
    %p142 = scmp.eq.s32.totalorder %s20, 1
    %p143 = por %p141, %p142
    %p144 = scmp.ne.s32.totalorder %s135, %s136
    %p145 = scmp.eq.s32.totalorder %s20, 0
    %p146 = por %p144, %p145
    %p147 = scmp.ne.s32.totalorder %s135, %s136
    %p148 = scmp.eq.s32.totalorder %s21, 1
    %p149 = por %p147, %p148
    %p151 = scmp.ne.s32.totalorder %s136, %s150
    %p152 = scmp.eq.s32.totalorder %s21, 0
    %p153 = por %p151, %p152
    %s155 = sadd.s32 %s154, 1
    %p158 = scmp.eq.s32.totalorder %s15, 1
    %p159 = scmp.ne.s32.totalorder %s154, %s156
    %p160 = scmp.eq.s32.totalorder %s15, 0
    %p161 = por %p159, %p160
    %p162 = scmp.ne.s32.totalorder %s154, %s156
    %p163 = scmp.eq.s32.totalorder %s20, 1
    %p164 = por %p162, %p163
    %p165 = scmp.ne.s32.totalorder %s156, %s157
    %p166 = scmp.eq.s32.totalorder %s20, 0
    %p167 = por %p165, %p166
    %p168 = scmp.ne.s32.totalorder %s156, %s157
    %p169 = scmp.eq.s32.totalorder %s21, 1
    %p170 = por %p168, %p169
    %p172 = scmp.ne.s32.totalorder %s157, %s171
    %p173 = scmp.eq.s32.totalorder %s21, 0
    %p174 = por %p172, %p173
    %s176 = sadd.s32 %s175, 1
    %p179 = scmp.eq.s32.totalorder %s15, 1
    %p180 = scmp.ne.s32.totalorder %s175, %s177
    %p181 = scmp.eq.s32.totalorder %s15, 0
    %p182 = por %p180, %p181
    %p183 = scmp.ne.s32.totalorder %s175, %s177
    %p184 = scmp.eq.s32.totalorder %s20, 1
    %p185 = por %p183, %p184
    %p186 = scmp.ne.s32.totalorder %s177, %s178
    %p187 = scmp.eq.s32.totalorder %s20, 0
    %p188 = por %p186, %p187
    %p189 = scmp.ne.s32.totalorder %s177, %s178
    %p190 = scmp.eq.s32.totalorder %s21, 1
    %p191 = por %p189, %p190
    %p193 = scmp.ne.s32.totalorder %s178, %s192
    %p194 = scmp.eq.s32.totalorder %s21, 0
    %p195 = por %p193, %p194
    %s197 = sadd.s32 %s196, 1
    %p200 = scmp.eq.s32.totalorder %s15, 1
    %p201 = scmp.ne.s32.totalorder %s196, %s198
    %p202 = scmp.eq.s32.totalorder %s15, 0
    %p203 = por %p201, %p202
    %p204 = scmp.ne.s32.totalorder %s196, %s198
    %p205 = scmp.eq.s32.totalorder %s20, 1
    %p206 = por %p204, %p205
    %p207 = scmp.ne.s32.totalorder %s198, %s199
    %p208 = scmp.eq.s32.totalorder %s20, 0
    %p209 = por %p207, %p208
    %p210 = scmp.ne.s32.totalorder %s198, %s199
    %p211 = scmp.eq.s32.totalorder %s21, 1
    %p212 = por %p210, %p211
    %p214 = scmp.ne.s32.totalorder %s199, %s213
    %p215 = scmp.eq.s32.totalorder %s21, 0
    %p216 = por %p214, %p215
    %s217 = ssub.s32 %s15, %s22
    %p218 = scmp.eq.s32.totalorder %s217, 0
    %s220 = sadd.s32 %s219, 1
    %s221 = scalar_select %p218, %s219, %s220
    %p224 = pneg %p218
    %p225 = scmp.eq.s32.totalorder %s15, 1
    %p226 = por %p224, %p225
    %p227 = scmp.ne.s32.totalorder %s219, %s222
    %p228 = scmp.eq.s32.totalorder %s15, 0
    %p229 = por %p227, %p228
    %p230 = scmp.ne.s32.totalorder %s219, %s222
    %p231 = scmp.eq.s32.totalorder %s20, 1
    %p232 = por %p230, %p231
    %p233 = scmp.ne.s32.totalorder %s222, %s223
    %p234 = scmp.eq.s32.totalorder %s20, 0
    %p235 = por %p233, %p234
    %p236 = scmp.ne.s32.totalorder %s222, %s223
    %p237 = scmp.eq.s32.totalorder %s21, 1
    %p238 = por %p236, %p237
    %p240 = scmp.ne.s32.totalorder %s223, %s239
    %p241 = scmp.eq.s32.totalorder %s21, 0
    %p242 = por %p240, %p241
    %p243 = scmp.le.s32.totalorder 1, %s15
    %p244 = scmp.lt.s32.totalorder %s15, 3
    %p245 = pnand %p243, %p244
    %p246 = pneg %p245
    // Predicated region
    $region9: #{tpu_custom_call.1} parent=5 // pred_check
      _
    $region10: #{tpu_custom_call.1} parent=5 // pred_check_branch
      %248 = sbr.rel (%p245) target = $region12
    $region11: #{tpu_custom_call.1} parent=5 // pred_region
      %s249 = ssub.s32 %s15, 1
      // Predicated region
      $region13: #{tpu_custom_call.1} parent=11 // pred_check
        %p250 = pneg %p62
      $region14: #{tpu_custom_call.1} parent=11 // pred_check_branch
        %252 = sbr.rel (%p250) target = $region16
      $region15: #{tpu_custom_call.1} parent=11 // pred_region
        _
      $region16: #{tpu_custom_call.1} parent=11 // pred_fallthru
        _
      // Predicated region
      $region17: #{tpu_custom_call.1} parent=11 // pred_check
        %p253 = pneg %p83
      $region18: #{tpu_custom_call.1} parent=11 // pred_check_branch
        %255 = sbr.rel (%p253) target = $region20
      $region19: #{tpu_custom_call.1} parent=11 // pred_region
        _
      $region20: #{tpu_custom_call.1} parent=11 // pred_fallthru
        _
      // Predicated region
      $region21: #{tpu_custom_call.1} parent=11 // pred_check
        %p256 = pneg %p104
      $region22: #{tpu_custom_call.1} parent=11 // pred_check_branch
        %258 = sbr.rel (%p256) target = $region24
      $region23: #{tpu_custom_call.1} parent=11 // pred_region
        _
      $region24: #{tpu_custom_call.1} parent=11 // pred_fallthru
        _
      // Predicated region
      $region25: #{tpu_custom_call.1} parent=11 // pred_check
        %p259 = pneg %p125
      $region26: #{tpu_custom_call.1} parent=11 // pred_check_branch
        %261 = sbr.rel (%p259) target = $region28
      $region27: #{tpu_custom_call.1} parent=11 // pred_region
        _
      $region28: #{tpu_custom_call.1} parent=11 // pred_fallthru
        _
      // Predicated region
      $region29: #{tpu_custom_call.1} parent=11 // pred_check
        %p262 = pneg %p146
      $region30: #{tpu_custom_call.1} parent=11 // pred_check_branch
        %264 = sbr.rel (%p262) target = $region32
      $region31: #{tpu_custom_call.1} parent=11 // pred_region
        _
      $region32: #{tpu_custom_call.1} parent=11 // pred_fallthru
        _
      // Predicated region
      $region33: #{tpu_custom_call.1} parent=11 // pred_check
        %p265 = pneg %p167
      $region34: #{tpu_custom_call.1} parent=11 // pred_check_branch
        %267 = sbr.rel (%p265) target = $region36
      $region35: #{tpu_custom_call.1} parent=11 // pred_region
        _
      $region36: #{tpu_custom_call.1} parent=11 // pred_fallthru
        _
      // Predicated region
      $region37: #{tpu_custom_call.1} parent=11 // pred_check
        %p268 = pneg %p188
      $region38: #{tpu_custom_call.1} parent=11 // pred_check_branch
        %270 = sbr.rel (%p268) target = $region40
      $region39: #{tpu_custom_call.1} parent=11 // pred_region
        _
      $region40: #{tpu_custom_call.1} parent=11 // pred_fallthru
        _
      // Predicated region
      $region41: #{tpu_custom_call.1} parent=11 // pred_check
        %p271 = pneg %p209
      $region42: #{tpu_custom_call.1} parent=11 // pred_check_branch
        %273 = sbr.rel (%p271) target = $region44
      $region43: #{tpu_custom_call.1} parent=11 // pred_region
        _
      $region44: #{tpu_custom_call.1} parent=11 // pred_fallthru
        _
    $region12: #{tpu_custom_call.1} parent=5 // pred_fallthru
      _
    %p274 = scmp.lt.s32.totalorder %s15, 2
    // Predicated region
    $region45: #{tpu_custom_call.1} parent=5 // pred_check
      %p275 = pneg %p274
    $region46: #{tpu_custom_call.1} parent=5 // pred_check_branch
      %277 = sbr.rel (%p275) target = $region48
    $region47: #{tpu_custom_call.1} parent=5 // pred_region
      // Predicated region
      $region49: #{tpu_custom_call.1} parent=47 // pred_check
        %p278 = pneg %p35
      $region50: #{tpu_custom_call.1} parent=47 // pred_check_branch
        %280 = sbr.rel (%p278) target = $region52
      $region51: #{tpu_custom_call.1} parent=47 // pred_region
        %s281 = smul.u32 16, %s15
        %p282 = scmp.lt.s32.totalorder %s281, 31
        %s283 = scalar_select %p282, %s281, 31
        %s284 = smul.addr %s283, 2
        %s285 = smul.addr %s284, 8
        %s286 = scalar_lea.vmem %s0, %s285
        %s287 = smul.u32 16, %s15
      $region52: #{tpu_custom_call.1} parent=47 // pred_fallthru
        _
    $region48: #{tpu_custom_call.1} parent=5 // pred_fallthru
      _
    %p288 = scmp.le.s32.totalorder 1, %s15
    %p289 = scmp.lt.s32.totalorder %s15, 3
    %p290 = pnand %p288, %p289
    %p291 = pneg %p290
    // Predicated region
    $region53: #{tpu_custom_call.1} parent=5 // pred_check
      _
    $region54: #{tpu_custom_call.1} parent=5 // pred_check_branch
      %293 = sbr.rel (%p290) target = $region56
    $region55: #{tpu_custom_call.1} parent=5 // pred_region
      %s294 = ssub.s32 %s15, 1
      %s295 = smul.u32 16, %s20
      %p296 = scmp.lt.s32.totalorder %s295, 31
      %s297 = scalar_select %p296, %s295, 31
      %s298 = smul.addr %s297, 2
      %s299 = smul.addr %s298, 8
      %s300 = scalar_lea.vmem %s0, %s299
      %p301 = pneg %p41
      %p302 = pneg %p38
      %p303 = pneg %p62
      %p304 = pneg %p59
      %p305 = pneg %p83
      %p306 = pneg %p80
      %p307 = pneg %p104
      %p308 = pneg %p101
      %p309 = pneg %p125
      %p310 = pneg %p122
      %p311 = pneg %p146
      %p312 = pneg %p143
      %p313 = pneg %p167
      %p314 = pneg %p164
      %p315 = pneg %p188
      %p316 = pneg %p185
      %p317 = pneg %p209
      %p318 = pneg %p206
      %p319 = pneg %p235
      %p320 = pneg %p232
      %s321 = smul.u32 24, %s20
      %p322 = scmp.lt.s32.totalorder %s321, 47
      %s323 = scalar_select %p322, %s321, 47
      %s324 = smul.addr %s323, 8
      %s325 = scalar_lea.vmem %s9, %s324
      %s326 = smul.u32 16, %s20
      %p327 = scmp.lt.s32.totalorder %s326, 31
      %s328 = scalar_select %p327, %s326, 31
      %s329 = smul.addr %s328, 2
      %s330 = smul.addr %s329, 8
      %s331 = scalar_lea.vmem %s0, %s330
      %s332 = smul.u32 16, %s20
      %s333 = smul.u32 24, %s20
      %p334 = scmp.lt.s32.totalorder %s333, 47
      %s335 = scalar_select %p334, %s333, 47
      %s336 = smul.addr %s335, 8
      %s337 = scalar_lea.vmem %s9, %s336
      %s338 = smul.u32 24, %s20
      %vm339 = vcmask 60416
      %340 = vst.msk [vmem:[#allocation2] sm:$0xf] %vm339, 0.0
      %341 = vst.msk [vmem:[#allocation2 + $0x10] sm:$0xf] %vm339, 0.0
      %342 = vst.msk [vmem:[#allocation2 + $0x20] sm:$0xf] %vm339, 0.0
      %343 = vst.msk [vmem:[#allocation2 + $0x30] sm:$0xf] %vm339, 0.0
      %344 = vst.msk [vmem:[#allocation2 + $0x40] sm:$0xf] %vm339, 0.0
      %345 = vst.msk [vmem:[#allocation2 + $0x50] sm:$0xf] %vm339, 0.0
      %346 = vst.msk [vmem:[#allocation2 + $0x60] sm:$0xf] %vm339, 0.0
      %347 = vst.msk [vmem:[#allocation2 + $0x70] sm:$0xf] %vm339, 0.0
      %348 = vst.msk [vmem:[#allocation2 + $0x80] sm:$0xf] %vm339, 0.0
      %349 = vst.msk [vmem:[#allocation2 + $0x90] sm:$0xf] %vm339, 0.0
      %350 = vst.msk [vmem:[#allocation2 + $0xa0] sm:$0xf] %vm339, 0.0
      %351 = vst.msk [vmem:[#allocation2 + $0xb0] sm:$0xf] %vm339, 0.0
      %352 = vst.msk [vmem:[#allocation2 + $0xc0] sm:$0xf] %vm339, 0.0
      %353 = vst.msk [vmem:[#allocation2 + $0xd0] sm:$0xf] %vm339, 0.0
      %354 = vst.msk [vmem:[#allocation2 + $0xe0] sm:$0xf] %vm339, 0.0
      %355 = vst.msk [vmem:[#allocation2 + $0xf0] sm:$0xf] %vm339, 0.0
      %vm356 = vcmask 125952
      %357 = vst.msk [vmem:[#allocation3] sm:$0xf] %vm356, 0.0
      %358 = vst.msk [vmem:[#allocation3 + $0x10] sm:$0xf] %vm356, 0.0
      %359 = vst.msk [vmem:[#allocation3 + $0x20] sm:$0xf] %vm356, 0.0
      %360 = vst.msk [vmem:[#allocation3 + $0x30] sm:$0xf] %vm356, 0.0
      %361 = vst.msk [vmem:[#allocation3 + $0x40] sm:$0xf] %vm356, 0.0
      %362 = vst.msk [vmem:[#allocation3 + $0x50] sm:$0xf] %vm356, 0.0
      %363 = vst.msk [vmem:[#allocation3 + $0x60] sm:$0xf] %vm356, 0.0
      %364 = vst.msk [vmem:[#allocation3 + $0x70] sm:$0xf] %vm356, 0.0
      %365 = vst.msk [vmem:[#allocation3 + $0x80] sm:$0xf] %vm356, 0.0
      %366 = vst.msk [vmem:[#allocation3 + $0x90] sm:$0xf] %vm356, 0.0
      %367 = vst.msk [vmem:[#allocation3 + $0xa0] sm:$0xf] %vm356, 0.0
      %368 = vst.msk [vmem:[#allocation3 + $0xb0] sm:$0xf] %vm356, 0.0
      %369 = vst.msk [vmem:[#allocation3 + $0xc0] sm:$0xf] %vm356, 0.0
      %370 = vst.msk [vmem:[#allocation3 + $0xd0] sm:$0xf] %vm356, 0.0
      %371 = vst.msk [vmem:[#allocation3 + $0xe0] sm:$0xf] %vm356, 0.0
      %372 = vst.msk [vmem:[#allocation3 + $0xf0] sm:$0xf] %vm356, 0.0
      %v373 = vld [vmem:[%s331 + $0x3] sm:$0xff]
      %v374 = vld [vmem:[%s331 + $0xb] sm:$0xf]
      %v375 = vld [vmem:[%s331 + $0x13] sm:$0xff]
      %v376 = vld [vmem:[%s331 + $0x1b] sm:$0xf]
      %v377 = vld [vmem:[%s331 + $0x23] sm:$0xff]
      %v378 = vld [vmem:[%s331 + $0x2b] sm:$0xf]
      %v379 = vld [vmem:[%s331 + $0x33] sm:$0xff]
      %v380 = vld [vmem:[%s331 + $0x3b] sm:$0xf]
      %v381 = vld [vmem:[%s331 + $0x43] sm:$0xff]
      %v382 = vld [vmem:[%s331 + $0x4b] sm:$0xf]
      %v383 = vld [vmem:[%s331 + $0x53] sm:$0xff]
      %v384 = vld [vmem:[%s331 + $0x5b] sm:$0xf]
      %v385 = vld [vmem:[%s331 + $0x63] sm:$0xff]
      %v386 = vld [vmem:[%s331 + $0x6b] sm:$0xf]
      %v387 = vld [vmem:[%s331 + $0x73] sm:$0xff]
      %v388 = vld [vmem:[%s331 + $0x7b] sm:$0xf]
      %v389 = vld [vmem:[%s331 + $0x83] sm:$0xff]
      %v390 = vld [vmem:[%s331 + $0x8b] sm:$0xf]
      %v391 = vld [vmem:[%s331 + $0x93] sm:$0xff]
      %v392 = vld [vmem:[%s331 + $0x9b] sm:$0xf]
      %v393 = vld [vmem:[%s331 + $0xa3] sm:$0xff]
      %v394 = vld [vmem:[%s331 + $0xab] sm:$0xf]
      %v395 = vld [vmem:[%s331 + $0xb3] sm:$0xff]
      %v396 = vld [vmem:[%s331 + $0xbb] sm:$0xf]
      %v397 = vld [vmem:[%s331 + $0xc3] sm:$0xff]
      %v398 = vld [vmem:[%s331 + $0xcb] sm:$0xf]
      %v399 = vld [vmem:[%s331 + $0xd3] sm:$0xff]
      %v400 = vld [vmem:[%s331 + $0xdb] sm:$0xf]
      %v401 = vld [vmem:[%s331 + $0xe3] sm:$0xff]
      %v402 = vld [vmem:[%s331 + $0xeb] sm:$0xf]
      %v403 = vld [vmem:[%s331 + $0xf3] sm:$0xff]
      %v404 = vld [vmem:[%s331 + $0xfb] sm:$0xf]
      %v437 = vrot.slane %v373, 4
      %v438 = vrot.slane %v375, 4
      %v439 = vrot.slane %v377, 4
      %v440 = vrot.slane %v379, 4
      %v441 = vrot.slane %v381, 4
      %v442 = vrot.slane %v383, 4
      %v443 = vrot.slane %v385, 4
      %v444 = vrot.slane %v387, 4
      %v445 = vrot.slane %v389, 4
      %v446 = vrot.slane %v391, 4
      %v447 = vrot.slane %v393, 4
      %v448 = vrot.slane %v395, 4
      %v449 = vrot.slane %v397, 4
      %v450 = vrot.slane %v399, 4
      %v451 = vrot.slane %v401, 4
      %v452 = vrot.slane %v403, 4
      %v453 = vld [vmem:[%s1] sm:$0xf]
      %v454 = vld [vmem:[%s331 + $0x4] sm:$0xff]
      %v455 = vld [vmem:[%s331 + $0xc] sm:$0xf]
      %v456 = vld [vmem:[%s331 + $0x14] sm:$0xff]
      %v457 = vld [vmem:[%s331 + $0x1c] sm:$0xf]
      %v458 = vld [vmem:[%s331 + $0x24] sm:$0xff]
      %v459 = vld [vmem:[%s331 + $0x2c] sm:$0xf]
      %v460 = vld [vmem:[%s331 + $0x34] sm:$0xff]
      %v461 = vld [vmem:[%s331 + $0x3c] sm:$0xf]
      %v462 = vld [vmem:[%s331 + $0x44] sm:$0xff]
      %v463 = vld [vmem:[%s331 + $0x4c] sm:$0xf]
      %v464 = vld [vmem:[%s331 + $0x54] sm:$0xff]
      %v465 = vld [vmem:[%s331 + $0x5c] sm:$0xf]
      %v466 = vld [vmem:[%s331 + $0x64] sm:$0xff]
      %v467 = vld [vmem:[%s331 + $0x6c] sm:$0xf]
      %v468 = vld [vmem:[%s331 + $0x74] sm:$0xff]
      %v469 = vld [vmem:[%s331 + $0x7c] sm:$0xf]
      %v470 = vld [vmem:[%s331 + $0x84] sm:$0xff]
      %v471 = vld [vmem:[%s331 + $0x8c] sm:$0xf]
      %v472 = vld [vmem:[%s331 + $0x94] sm:$0xff]
      %v473 = vld [vmem:[%s331 + $0x9c] sm:$0xf]
      %v474 = vld [vmem:[%s331 + $0xa4] sm:$0xff]
      %v475 = vld [vmem:[%s331 + $0xac] sm:$0xf]
      %v476 = vld [vmem:[%s331 + $0xb4] sm:$0xff]
      %v477 = vld [vmem:[%s331 + $0xbc] sm:$0xf]
      %v478 = vld [vmem:[%s331 + $0xc4] sm:$0xff]
      %v479 = vld [vmem:[%s331 + $0xcc] sm:$0xf]
      %v480 = vld [vmem:[%s331 + $0xd4] sm:$0xff]
      %v481 = vld [vmem:[%s331 + $0xdc] sm:$0xf]
      %v482 = vld [vmem:[%s331 + $0xe4] sm:$0xff]
      %v483 = vld [vmem:[%s331 + $0xec] sm:$0xf]
      %v484 = vld [vmem:[%s331 + $0xf4] sm:$0xff]
      %v485 = vld [vmem:[%s331 + $0xfc] sm:$0xf]
      %v518 = vrot.slane %v454, 4
      %v519 = vrot.slane %v456, 4
      %v520 = vrot.slane %v458, 4
      %v521 = vrot.slane %v460, 4
      %v522 = vrot.slane %v462, 4
      %v523 = vrot.slane %v464, 4
      %v524 = vrot.slane %v466, 4
      %v525 = vrot.slane %v468, 4
      %v526 = vrot.slane %v470, 4
      %v527 = vrot.slane %v472, 4
      %v528 = vrot.slane %v474, 4
      %v529 = vrot.slane %v476, 4
      %v530 = vrot.slane %v478, 4
      %v531 = vrot.slane %v480, 4
      %v532 = vrot.slane %v482, 4
      %v533 = vrot.slane %v484, 4
      %s534 = scalar_lea.vmem %s1, 4
      %v535 = vld [vmem:[%s534] sm:$0xf]
      %536 = vst [vmem:[#allocation1] ss:$2 sm:$0xff] %v454
      %s537 = scalar_lea.vmem [#allocation1], 1
      %538 = vst [vmem:[%s537] ss:$2 sm:$0xff] %v518
      %s539 = scalar_lea.vmem [#allocation1], 16
      %540 = vst [vmem:[%s539] ss:$2 sm:$0xff] %v455
      %s541 = scalar_lea.vmem [#allocation1], 17
      %542 = vst [vmem:[%s541] ss:$2 sm:$0xff] %v456
      %s543 = scalar_lea.vmem [#allocation1], 32
      %544 = vst [vmem:[%s543] ss:$2 sm:$0xff] %v519
      %s545 = scalar_lea.vmem [#allocation1], 33
      %546 = vst [vmem:[%s545] ss:$2 sm:$0xff] %v457
      %s547 = scalar_lea.vmem [#allocation1], 48
      %548 = vst [vmem:[%s547] ss:$2 sm:$0xff] %v458
      %s549 = scalar_lea.vmem [#allocation1], 49
      %550 = vst [vmem:[%s549] ss:$2 sm:$0xff] %v520
      %v551 = vld.sshfl [vmem:[#allocation1] sm:$0xff pattern:$0x75316420]
      %v552 = vld.sshfl [vmem:[#allocation1 + $0x10] sm:$0xff pattern:$0x75316420]
      %v553 = vld.sshfl [vmem:[#allocation1 + $0x20] sm:$0xff pattern:$0x75316420]
      %v554 = vld.sshfl [vmem:[#allocation1 + $0x30] sm:$0xff pattern:$0x75316420]
      %555 = vst [vmem:[#allocation1] ss:$2 sm:$0xff] %v459
      %556 = vst [vmem:[%s537] ss:$2 sm:$0xff] %v460
      %557 = vst [vmem:[%s539] ss:$2 sm:$0xff] %v521
      %558 = vst [vmem:[%s541] ss:$2 sm:$0xff] %v461
      %559 = vst [vmem:[%s543] ss:$2 sm:$0xff] %v462
      %560 = vst [vmem:[%s545] ss:$2 sm:$0xff] %v522
      %561 = vst [vmem:[%s547] ss:$2 sm:$0xff] %v463
      %562 = vst [vmem:[%s549] ss:$2 sm:$0xff] %v464
      %v563 = vld.sshfl [vmem:[#allocation1] sm:$0xff pattern:$0x75316420]
      %v564 = vld.sshfl [vmem:[#allocation1 + $0x10] sm:$0xff pattern:$0x75316420]
      %v565 = vld.sshfl [vmem:[#allocation1 + $0x20] sm:$0xff pattern:$0x75316420]
      %v566 = vld.sshfl [vmem:[#allocation1 + $0x30] sm:$0xff pattern:$0x75316420]
      %567 = vst [vmem:[#allocation1] ss:$2 sm:$0xff] %v523
      %568 = vst [vmem:[%s537] ss:$2 sm:$0xff] %v465
      %569 = vst [vmem:[%s539] ss:$2 sm:$0xff] %v466
      %570 = vst [vmem:[%s541] ss:$2 sm:$0xff] %v524
      %571 = vst [vmem:[%s543] ss:$2 sm:$0xff] %v467
      %572 = vst [vmem:[%s545] ss:$2 sm:$0xff] %v468
      %573 = vst [vmem:[%s547] ss:$2 sm:$0xff] %v525
      %574 = vst [vmem:[%s549] ss:$2 sm:$0xff] %v469
      %v575 = vld.sshfl [vmem:[#allocation1] sm:$0xff pattern:$0x75316420]
      %v576 = vld.sshfl [vmem:[#allocation1 + $0x10] sm:$0xff pattern:$0x75316420]
      %v577 = vld.sshfl [vmem:[#allocation1 + $0x20] sm:$0xff pattern:$0x75316420]
      %v578 = vld.sshfl [vmem:[#allocation1 + $0x30] sm:$0xff pattern:$0x75316420]
      %579 = vst [vmem:[#allocation1] ss:$2 sm:$0xff] %v470
      %580 = vst [vmem:[%s537] ss:$2 sm:$0xff] %v526
      %581 = vst [vmem:[%s539] ss:$2 sm:$0xff] %v471
      %582 = vst [vmem:[%s541] ss:$2 sm:$0xff] %v472
      %583 = vst [vmem:[%s543] ss:$2 sm:$0xff] %v527
      %584 = vst [vmem:[%s545] ss:$2 sm:$0xff] %v473
      %585 = vst [vmem:[%s547] ss:$2 sm:$0xff] %v474
      %586 = vst [vmem:[%s549] ss:$2 sm:$0xff] %v528
      %v587 = vld.sshfl [vmem:[#allocation1] sm:$0xff pattern:$0x75316420]
      %v588 = vld.sshfl [vmem:[#allocation1 + $0x10] sm:$0xff pattern:$0x75316420]
      %v589 = vld.sshfl [vmem:[#allocation1 + $0x20] sm:$0xff pattern:$0x75316420]
      %v590 = vld.sshfl [vmem:[#allocation1 + $0x30] sm:$0xff pattern:$0x75316420]
      %591 = vst [vmem:[#allocation1] ss:$2 sm:$0xff] %v475
      %592 = vst [vmem:[%s537] ss:$2 sm:$0xff] %v476
      %593 = vst [vmem:[%s539] ss:$2 sm:$0xff] %v529
      %594 = vst [vmem:[%s541] ss:$2 sm:$0xff] %v477
      %595 = vst [vmem:[%s543] ss:$2 sm:$0xff] %v478
      %596 = vst [vmem:[%s545] ss:$2 sm:$0xff] %v530
      %597 = vst [vmem:[%s547] ss:$2 sm:$0xff] %v479
      %598 = vst [vmem:[%s549] ss:$2 sm:$0xff] %v480
      %v599 = vld.sshfl [vmem:[#allocation1] sm:$0xff pattern:$0x75316420]
      %v600 = vld.sshfl [vmem:[#allocation1 + $0x10] sm:$0xff pattern:$0x75316420]
      %v601 = vld.sshfl [vmem:[#allocation1 + $0x20] sm:$0xff pattern:$0x75316420]
      %v602 = vld.sshfl [vmem:[#allocation1 + $0x30] sm:$0xff pattern:$0x75316420]
      %603 = vst [vmem:[#allocation1] ss:$2 sm:$0xff] %v531
      %604 = vst [vmem:[%s537] ss:$2 sm:$0xff] %v481
      %605 = vst [vmem:[%s539] ss:$2 sm:$0xff] %v482
      %606 = vst [vmem:[%s541] ss:$2 sm:$0xff] %v532
      %607 = vst [vmem:[%s543] ss:$2 sm:$0xff] %v483
      %608 = vst [vmem:[%s545] ss:$2 sm:$0xff] %v484
      %609 = vst [vmem:[%s547] ss:$2 sm:$0xff] %v533
      %610 = vst [vmem:[%s549] ss:$2 sm:$0xff] %v485
      %v611 = vld.sshfl [vmem:[#allocation1] sm:$0xff pattern:$0x75316420]
      %v612 = vld.sshfl [vmem:[#allocation1 + $0x10] sm:$0xff pattern:$0x75316420]
      %v613 = vld.sshfl [vmem:[#allocation1 + $0x20] sm:$0xff pattern:$0x75316420]
      %v614 = vld.sshfl [vmem:[#allocation1 + $0x30] sm:$0xff pattern:$0x75316420]
      %vm615 = vcmask 31744
      %v616 = vsel %vm615, %v551, 0
      %v618 = vsel %vm615, %v552, 0
      %v620 = vsel %vm615, %v553, 0
      %v622 = vsel %vm615, %v554, 0
      %v624 = vsel %vm615, %v563, 0
      %v626 = vsel %vm615, %v564, 0
      %v628 = vsel %vm615, %v565, 0
      %v630 = vsel %vm615, %v566, 0
      %v632 = vsel %vm615, %v575, 0
      %v634 = vsel %vm615, %v576, 0
      %v636 = vsel %vm615, %v577, 0
      %v638 = vsel %vm615, %v578, 0
      %v640 = vsel %vm615, %v587, 0
      %v642 = vsel %vm615, %v588, 0
      %v644 = vsel %vm615, %v589, 0
      %v646 = vsel %vm615, %v590, 0
      %v648 = vsel %vm615, %v599, 0
      %v650 = vsel %vm615, %v600, 0
      %v652 = vsel %vm615, %v601, 0
      %v654 = vsel %vm615, %v602, 0
      %v656 = vsel %vm615, %v611, 0
      %v658 = vsel %vm615, %v612, 0
      %v660 = vsel %vm615, %v613, 0
      %v662 = vsel %vm615, %v614, 0
      %vm664 = vcmask 1043456
      %v666 = vsel %vm664, %v535, 0
      %668 = vmatpush.msra.mxu0 0.0
      %669 = vmatpush.msra.mxu0 0.0
      %670 = vmatpush.msra.mxu0 0.0
      %671 = vmatpush.msra.mxu0 0.0
      %672 = vmatpush.msra.mxu0 0.0
      %673 = vmatpush.msra.mxu0 0.0
      %674 = vmatpush.msra.mxu0 0.0
      %675 = vmatpush.msra.mxu0 0.0
      %676 = vmatpush.msra.mxu0 0.0
      %677 = vmatpush.msra.mxu0 0.0
      %678 = vmatpush.msra.mxu0 0.0
      %679 = vmatpush.msra.mxu0 0.0
      %680 = vmatpush.msra.mxu0 0.0
      %681 = vmatpush.msra.mxu0 0.0
      %682 = vmatpush.msra.mxu0 0.0
      %683 = vmatpush.msra.mxu0 %v666
      %684 = vmatmul.f32.gmra.mxu0 %v616
      %v685 = vpop.f32.mrf.mxu0
      %v686 = vadd.f32 0.0, %v685
      %687 = vmatmul.f32.gmra.mxu0 %v618
      %v688 = vpop.f32.mrf.mxu0
      %v689 = vadd.f32 0.0, %v688
      %690 = vmatmul.f32.gmra.mxu0 %v620
      %v691 = vpop.f32.mrf.mxu0
      %v692 = vadd.f32 0.0, %v691
      %693 = vmatmul.f32.gmra.mxu0 %v622
      %v694 = vpop.f32.mrf.mxu0
      %v695 = vadd.f32 0.0, %v694
      %696 = vmatmul.f32.gmra.mxu0 %v624
      %v697 = vpop.f32.mrf.mxu0
      %v698 = vadd.f32 0.0, %v697
      %699 = vmatmul.f32.gmra.mxu0 %v626
      %v700 = vpop.f32.mrf.mxu0
      %v701 = vadd.f32 0.0, %v700
      %702 = vmatmul.f32.gmra.mxu0 %v628
      %v703 = vpop.f32.mrf.mxu0
      %v704 = vadd.f32 0.0, %v703
      %705 = vmatmul.f32.gmra.mxu0 %v630
      %v706 = vpop.f32.mrf.mxu0
      %v707 = vadd.f32 0.0, %v706
      %708 = vmatmul.f32.gmra.mxu0 %v632
      %v709 = vpop.f32.mrf.mxu0
      %v710 = vadd.f32 0.0, %v709
      %711 = vmatmul.f32.gmra.mxu0 %v634
      %v712 = vpop.f32.mrf.mxu0
      %v713 = vadd.f32 0.0, %v712
      %714 = vmatmul.f32.gmra.mxu0 %v636
      %v715 = vpop.f32.mrf.mxu0
      %v716 = vadd.f32 0.0, %v715
      %717 = vmatmul.f32.gmra.mxu0 %v638
      %v718 = vpop.f32.mrf.mxu0
      %v719 = vadd.f32 0.0, %v718
      %720 = vmatmul.f32.gmra.mxu0 %v640
      %v721 = vpop.f32.mrf.mxu0
      %v722 = vadd.f32 0.0, %v721
      %723 = vmatmul.f32.gmra.mxu0 %v642
      %v724 = vpop.f32.mrf.mxu0
      %v725 = vadd.f32 0.0, %v724
      %726 = vmatmul.f32.gmra.mxu0 %v644
      %v727 = vpop.f32.mrf.mxu0
      %v728 = vadd.f32 0.0, %v727
      %729 = vmatmul.f32.gmra.mxu0 %v646
      %v730 = vpop.f32.mrf.mxu0
      %v731 = vadd.f32 0.0, %v730
      %732 = vmatmul.f32.gmra.mxu0 %v648
      %v733 = vpop.f32.mrf.mxu0
      %v734 = vadd.f32 0.0, %v733
      %735 = vmatmul.f32.gmra.mxu0 %v650
      %v736 = vpop.f32.mrf.mxu0
      %v737 = vadd.f32 0.0, %v736
      %738 = vmatmul.f32.gmra.mxu0 %v652
      %v739 = vpop.f32.mrf.mxu0
      %v740 = vadd.f32 0.0, %v739
      %741 = vmatmul.f32.gmra.mxu0 %v654
      %v742 = vpop.f32.mrf.mxu0
      %v743 = vadd.f32 0.0, %v742
      %744 = vmatmul.f32.gmra.mxu0 %v656
      %v745 = vpop.f32.mrf.mxu0
      %v746 = vadd.f32 0.0, %v745
      %747 = vmatmul.f32.gmra.mxu0 %v658
      %v748 = vpop.f32.mrf.mxu0
      %v749 = vadd.f32 0.0, %v748
      %750 = vmatmul.f32.gmra.mxu0 %v660
      %v751 = vpop.f32.mrf.mxu0
      %v752 = vadd.f32 0.0, %v751
      %753 = vmatmul.f32.gmra.mxu0 %v662
      %v754 = vpop.f32.mrf.mxu0
      %v755 = vadd.f32 0.0, %v754
      %756 = vdwg.mxu0
      %757 = vst [vmem:[#allocation1] ss:$2 sm:$0xff] %v373
      %s758 = scalar_lea.vmem [#allocation1], 1
      %759 = vst [vmem:[%s758] ss:$2 sm:$0xff] %v437
      %s760 = scalar_lea.vmem [#allocation1], 16
      %761 = vst [vmem:[%s760] ss:$2 sm:$0xff] %v374
      %s762 = scalar_lea.vmem [#allocation1], 17
      %763 = vst [vmem:[%s762] ss:$2 sm:$0xff] %v375
      %s764 = scalar_lea.vmem [#allocation1], 32
      %765 = vst [vmem:[%s764] ss:$2 sm:$0xff] %v438
      %s766 = scalar_lea.vmem [#allocation1], 33
      %767 = vst [vmem:[%s766] ss:$2 sm:$0xff] %v376
      %s768 = scalar_lea.vmem [#allocation1], 48
      %769 = vst [vmem:[%s768] ss:$2 sm:$0xff] %v377
      %s770 = scalar_lea.vmem [#allocation1], 49
      %771 = vst [vmem:[%s770] ss:$2 sm:$0xff] %v439
      %v772 = vld.sshfl [vmem:[#allocation1] sm:$0xff pattern:$0x75316420]
      %v773 = vld.sshfl [vmem:[#allocation1 + $0x10] sm:$0xff pattern:$0x75316420]
      %v774 = vld.sshfl [vmem:[#allocation1 + $0x20] sm:$0xff pattern:$0x75316420]
      %v775 = vld.sshfl [vmem:[#allocation1 + $0x30] sm:$0xff pattern:$0x75316420]
      %776 = vst [vmem:[#allocation1] ss:$2 sm:$0xff] %v378
      %777 = vst [vmem:[%s758] ss:$2 sm:$0xff] %v379
      %778 = vst [vmem:[%s760] ss:$2 sm:$0xff] %v440
      %779 = vst [vmem:[%s762] ss:$2 sm:$0xff] %v380
      %780 = vst [vmem:[%s764] ss:$2 sm:$0xff] %v381
      %781 = vst [vmem:[%s766] ss:$2 sm:$0xff] %v441
      %782 = vst [vmem:[%s768] ss:$2 sm:$0xff] %v382
      %783 = vst [vmem:[%s770] ss:$2 sm:$0xff] %v383
      %v784 = vld.sshfl [vmem:[#allocation1] sm:$0xff pattern:$0x75316420]
      %v785 = vld.sshfl [vmem:[#allocation1 + $0x10] sm:$0xff pattern:$0x75316420]
      %v786 = vld.sshfl [vmem:[#allocation1 + $0x20] sm:$0xff pattern:$0x75316420]
      %v787 = vld.sshfl [vmem:[#allocation1 + $0x30] sm:$0xff pattern:$0x75316420]
      %788 = vst [vmem:[#allocation1] ss:$2 sm:$0xff] %v442
      %789 = vst [vmem:[%s758] ss:$2 sm:$0xff] %v384
      %790 = vst [vmem:[%s760] ss:$2 sm:$0xff] %v385
      %791 = vst [vmem:[%s762] ss:$2 sm:$0xff] %v443
      %792 = vst [vmem:[%s764] ss:$2 sm:$0xff] %v386
      %793 = vst [vmem:[%s766] ss:$2 sm:$0xff] %v387
      %794 = vst [vmem:[%s768] ss:$2 sm:$0xff] %v444
      %795 = vst [vmem:[%s770] ss:$2 sm:$0xff] %v388
      %v796 = vld.sshfl [vmem:[#allocation1] sm:$0xff pattern:$0x75316420]
      %v797 = vld.sshfl [vmem:[#allocation1 + $0x10] sm:$0xff pattern:$0x75316420]
      %v798 = vld.sshfl [vmem:[#allocation1 + $0x20] sm:$0xff pattern:$0x75316420]
      %v799 = vld.sshfl [vmem:[#allocation1 + $0x30] sm:$0xff pattern:$0x75316420]
      %800 = vst [vmem:[#allocation1] ss:$2 sm:$0xff] %v389
      %801 = vst [vmem:[%s758] ss:$2 sm:$0xff] %v445
      %802 = vst [vmem:[%s760] ss:$2 sm:$0xff] %v390
      %803 = vst [vmem:[%s762] ss:$2 sm:$0xff] %v391
      %804 = vst [vmem:[%s764] ss:$2 sm:$0xff] %v446
      %805 = vst [vmem:[%s766] ss:$2 sm:$0xff] %v392
      %806 = vst [vmem:[%s768] ss:$2 sm:$0xff] %v393
      %807 = vst [vmem:[%s770] ss:$2 sm:$0xff] %v447
      %v808 = vld.sshfl [vmem:[#allocation1] sm:$0xff pattern:$0x75316420]
      %v809 = vld.sshfl [vmem:[#allocation1 + $0x10] sm:$0xff pattern:$0x75316420]
      %v810 = vld.sshfl [vmem:[#allocation1 + $0x20] sm:$0xff pattern:$0x75316420]
      %v811 = vld.sshfl [vmem:[#allocation1 + $0x30] sm:$0xff pattern:$0x75316420]
      %812 = vst [vmem:[#allocation1] ss:$2 sm:$0xff] %v394
      %813 = vst [vmem:[%s758] ss:$2 sm:$0xff] %v395
      %814 = vst [vmem:[%s760] ss:$2 sm:$0xff] %v448
      %815 = vst [vmem:[%s762] ss:$2 sm:$0xff] %v396
      %816 = vst [vmem:[%s764] ss:$2 sm:$0xff] %v397
      %817 = vst [vmem:[%s766] ss:$2 sm:$0xff] %v449
      %818 = vst [vmem:[%s768] ss:$2 sm:$0xff] %v398
      %819 = vst [vmem:[%s770] ss:$2 sm:$0xff] %v399
      %v820 = vld.sshfl [vmem:[#allocation1] sm:$0xff pattern:$0x75316420]
      %v821 = vld.sshfl [vmem:[#allocation1 + $0x10] sm:$0xff pattern:$0x75316420]
      %v822 = vld.sshfl [vmem:[#allocation1 + $0x20] sm:$0xff pattern:$0x75316420]
      %v823 = vld.sshfl [vmem:[#allocation1 + $0x30] sm:$0xff pattern:$0x75316420]
      %824 = vst [vmem:[#allocation1] ss:$2 sm:$0xff] %v450
      %825 = vst [vmem:[%s758] ss:$2 sm:$0xff] %v400
      %826 = vst [vmem:[%s760] ss:$2 sm:$0xff] %v401
      %827 = vst [vmem:[%s762] ss:$2 sm:$0xff] %v451
      %828 = vst [vmem:[%s764] ss:$2 sm:$0xff] %v402
      %829 = vst [vmem:[%s766] ss:$2 sm:$0xff] %v403
      %830 = vst [vmem:[%s768] ss:$2 sm:$0xff] %v452
      %831 = vst [vmem:[%s770] ss:$2 sm:$0xff] %v404
      %v832 = vld.sshfl [vmem:[#allocation1] sm:$0xff pattern:$0x75316420]
      %v833 = vld.sshfl [vmem:[#allocation1 + $0x10] sm:$0xff pattern:$0x75316420]
      %v834 = vld.sshfl [vmem:[#allocation1 + $0x20] sm:$0xff pattern:$0x75316420]
      %v835 = vld.sshfl [vmem:[#allocation1 + $0x30] sm:$0xff pattern:$0x75316420]
      %v836 = vsel %vm615, %v772, 0
      %v838 = vsel %vm615, %v773, 0
      %v840 = vsel %vm615, %v774, 0
      %v842 = vsel %vm615, %v775, 0
      %v844 = vsel %vm615, %v784, 0
      %v846 = vsel %vm615, %v785, 0
      %v848 = vsel %vm615, %v786, 0
      %v850 = vsel %vm615, %v787, 0
      %v852 = vsel %vm615, %v796, 0
      %v854 = vsel %vm615, %v797, 0
      %v856 = vsel %vm615, %v798, 0
      %v858 = vsel %vm615, %v799, 0
      %v860 = vsel %vm615, %v808, 0
      %v862 = vsel %vm615, %v809, 0
      %v864 = vsel %vm615, %v810, 0
      %v866 = vsel %vm615, %v811, 0
      %v868 = vsel %vm615, %v820, 0
      %v870 = vsel %vm615, %v821, 0
      %v872 = vsel %vm615, %v822, 0
      %v874 = vsel %vm615, %v823, 0
      %v876 = vsel %vm615, %v832, 0
      %v878 = vsel %vm615, %v833, 0
      %v880 = vsel %vm615, %v834, 0
      %v882 = vsel %vm615, %v835, 0
      %v885 = vsel %vm664, %v453, 0
      %887 = vmatpush.msra.mxu0 0.0
      %888 = vmatpush.msra.mxu0 0.0
      %889 = vmatpush.msra.mxu0 0.0
      %890 = vmatpush.msra.mxu0 0.0
      %891 = vmatpush.msra.mxu0 0.0
      %892 = vmatpush.msra.mxu0 0.0
      %893 = vmatpush.msra.mxu0 0.0
      %894 = vmatpush.msra.mxu0 0.0
      %895 = vmatpush.msra.mxu0 0.0
      %896 = vmatpush.msra.mxu0 0.0
      %897 = vmatpush.msra.mxu0 0.0
      %898 = vmatpush.msra.mxu0 0.0
      %899 = vmatpush.msra.mxu0 0.0
      %900 = vmatpush.msra.mxu0 0.0
      %901 = vmatpush.msra.mxu0 0.0
      %902 = vmatpush.msra.mxu0 %v885
      %903 = vmatmul.f32.gmra.mxu0 %v836
      %v904 = vpop.f32.mrf.mxu0
      %v905 = vadd.f32 %v686, %v904
      %906 = vmatmul.f32.gmra.mxu0 %v838
      %v907 = vpop.f32.mrf.mxu0
      %v908 = vadd.f32 %v689, %v907
      %909 = vmatmul.f32.gmra.mxu0 %v840
      %v910 = vpop.f32.mrf.mxu0
      %v911 = vadd.f32 %v692, %v910
      %912 = vmatmul.f32.gmra.mxu0 %v842
      %v913 = vpop.f32.mrf.mxu0
      %v914 = vadd.f32 %v695, %v913
      %915 = vmatmul.f32.gmra.mxu0 %v844
      %v916 = vpop.f32.mrf.mxu0
      %v917 = vadd.f32 %v698, %v916
      %918 = vmatmul.f32.gmra.mxu0 %v846
      %v919 = vpop.f32.mrf.mxu0
      %v920 = vadd.f32 %v701, %v919
      %921 = vmatmul.f32.gmra.mxu0 %v848
      %v922 = vpop.f32.mrf.mxu0
      %v923 = vadd.f32 %v704, %v922
      %924 = vmatmul.f32.gmra.mxu0 %v850
      %v925 = vpop.f32.mrf.mxu0
      %v926 = vadd.f32 %v707, %v925
      %927 = vmatmul.f32.gmra.mxu0 %v852
      %v928 = vpop.f32.mrf.mxu0
      %v929 = vadd.f32 %v710, %v928
      %930 = vmatmul.f32.gmra.mxu0 %v854
      %v931 = vpop.f32.mrf.mxu0
      %v932 = vadd.f32 %v713, %v931
      %933 = vmatmul.f32.gmra.mxu0 %v856
      %v934 = vpop.f32.mrf.mxu0
      %v935 = vadd.f32 %v716, %v934
      %936 = vmatmul.f32.gmra.mxu0 %v858
      %v937 = vpop.f32.mrf.mxu0
      %v938 = vadd.f32 %v719, %v937
      %939 = vmatmul.f32.gmra.mxu0 %v860
      %v940 = vpop.f32.mrf.mxu0
      %v941 = vadd.f32 %v722, %v940
      %942 = vmatmul.f32.gmra.mxu0 %v862
      %v943 = vpop.f32.mrf.mxu0
      %v944 = vadd.f32 %v725, %v943
      %945 = vmatmul.f32.gmra.mxu0 %v864
      %v946 = vpop.f32.mrf.mxu0
      %v947 = vadd.f32 %v728, %v946
      %948 = vmatmul.f32.gmra.mxu0 %v866
      %v949 = vpop.f32.mrf.mxu0
      %v950 = vadd.f32 %v731, %v949
      %951 = vmatmul.f32.gmra.mxu0 %v868
      %v952 = vpop.f32.mrf.mxu0
      %v953 = vadd.f32 %v734, %v952
      %954 = vmatmul.f32.gmra.mxu0 %v870
      %v955 = vpop.f32.mrf.mxu0
      %v956 = vadd.f32 %v737, %v955
      %957 = vmatmul.f32.gmra.mxu0 %v872
      %v958 = vpop.f32.mrf.mxu0
      %v959 = vadd.f32 %v740, %v958
      %960 = vmatmul.f32.gmra.mxu0 %v874
      %v961 = vpop.f32.mrf.mxu0
      %v962 = vadd.f32 %v743, %v961
      %963 = vmatmul.f32.gmra.mxu0 %v876
      %v964 = vpop.f32.mrf.mxu0
      %v965 = vadd.f32 %v746, %v964
      %966 = vmatmul.f32.gmra.mxu0 %v878
      %v967 = vpop.f32.mrf.mxu0
      %v968 = vadd.f32 %v749, %v967
      %969 = vmatmul.f32.gmra.mxu0 %v880
      %v970 = vpop.f32.mrf.mxu0
      %v971 = vadd.f32 %v752, %v970
      %972 = vmatmul.f32.gmra.mxu0 %v882
      %v973 = vpop.f32.mrf.mxu0
      %v974 = vadd.f32 %v755, %v973
      %975 = vdwg.mxu0
      %v976 = vld [vmem:[%s2] sm:$0x1]
      %v978 = vperm.slane %v976, 0
      %v980 = vadd.f32 %v905, %v978
      %v981 = vadd.f32 %v908, %v978
      %v982 = vadd.f32 %v911, %v978
      %v983 = vadd.f32 %v914, %v978
      %v984 = vadd.f32 %v917, %v978
      %v985 = vadd.f32 %v920, %v978
      %v986 = vadd.f32 %v923, %v978
      %v987 = vadd.f32 %v926, %v978
      %v988 = vadd.f32 %v929, %v978
      %v989 = vadd.f32 %v932, %v978
      %v990 = vadd.f32 %v935, %v978
      %v991 = vadd.f32 %v938, %v978
      %v992 = vadd.f32 %v941, %v978
      %v993 = vadd.f32 %v944, %v978
      %v994 = vadd.f32 %v947, %v978
      %v995 = vadd.f32 %v950, %v978
      %v996 = vadd.f32 %v953, %v978
      %v997 = vadd.f32 %v956, %v978
      %v998 = vadd.f32 %v959, %v978
      %v999 = vadd.f32 %v962, %v978
      %v1000 = vadd.f32 %v965, %v978
      %v1001 = vadd.f32 %v968, %v978
      %v1002 = vadd.f32 %v971, %v978
      %v1003 = vadd.f32 %v974, %v978
      %v1004 = vmax.f32 %v980, 0.0
      %v1005 = vmax.f32 %v981, 0.0
      %v1006 = vmax.f32 %v982, 0.0
      %v1007 = vmax.f32 %v983, 0.0
      %v1008 = vmax.f32 %v984, 0.0
      %v1009 = vmax.f32 %v985, 0.0
      %v1010 = vmax.f32 %v986, 0.0
      %v1011 = vmax.f32 %v987, 0.0
      %v1012 = vmax.f32 %v988, 0.0
      %v1013 = vmax.f32 %v989, 0.0
      %v1014 = vmax.f32 %v990, 0.0
      %v1015 = vmax.f32 %v991, 0.0
      %v1016 = vmax.f32 %v992, 0.0
      %v1017 = vmax.f32 %v993, 0.0
      %v1018 = vmax.f32 %v994, 0.0
      %v1019 = vmax.f32 %v995, 0.0
      %v1020 = vmax.f32 %v996, 0.0
      %v1021 = vmax.f32 %v997, 0.0
      %v1022 = vmax.f32 %v998, 0.0
      %v1023 = vmax.f32 %v999, 0.0
      %v1024 = vmax.f32 %v1000, 0.0
      %v1025 = vmax.f32 %v1001, 0.0
      %v1026 = vmax.f32 %v1002, 0.0
      %v1027 = vmax.f32 %v1003, 0.0
      %v1052 = vrot.slane %v1004, 4
      %v1053 = vrot.slane %v1005, 4
      %v1054 = vrot.slane %v1006, 4
      %v1055 = vrot.slane %v1007, 4
      %v1056 = vrot.slane %v1008, 4
      %v1057 = vrot.slane %v1009, 4
      %v1058 = vrot.slane %v1010, 4
      %v1059 = vrot.slane %v1011, 4
      %v1060 = vrot.slane %v1012, 4
      %v1061 = vrot.slane %v1013, 4
      %v1062 = vrot.slane %v1014, 4
      %v1063 = vrot.slane %v1015, 4
      %v1064 = vrot.slane %v1016, 4
      %v1065 = vrot.slane %v1017, 4
      %v1066 = vrot.slane %v1018, 4
      %v1067 = vrot.slane %v1019, 4
      %v1068 = vrot.slane %v1020, 4
      %v1069 = vrot.slane %v1021, 4
      %v1070 = vrot.slane %v1022, 4
      %v1071 = vrot.slane %v1023, 4
      %v1072 = vrot.slane %v1024, 4
      %v1073 = vrot.slane %v1025, 4
      %v1074 = vrot.slane %v1026, 4
      %v1075 = vrot.slane %v1027, 4
      %1076 = vst [vmem:[#allocation1] ss:$2 sm:$0xff] %v1004
      %s1077 = scalar_lea.vmem [#allocation1], 1
      %1078 = vst [vmem:[%s1077] ss:$2 sm:$0xff] %v1052
      %s1079 = scalar_lea.vmem [#allocation1], 16
      %1080 = vst [vmem:[%s1079] ss:$2 sm:$0xff] %v1005
      %v1081 = vld.sshfl [vmem:[#allocation1] sm:$0xff pattern:$0x75316420]
      %v1082 = vld.sshfl [vmem:[#allocation1 + $0x10] sm:$0xff pattern:$0x75316420]
      %s1083 = scalar_lea.vmem [#allocation1], 32
      %1084 = vst [vmem:[%s1083] ss:$2 sm:$0xff] %v1053
      %s1085 = scalar_lea.vmem [#allocation1], 33
      %1086 = vst [vmem:[%s1085] ss:$2 sm:$0xff] %v1006
      %s1087 = scalar_lea.vmem [#allocation1], 48
      %1088 = vst [vmem:[%s1087] ss:$2 sm:$0xff] %v1054
      %v1089 = vld.sshfl [vmem:[#allocation1 + $0x20] sm:$0xff pattern:$0x75316420]
      %v1090 = vld.sshfl [vmem:[#allocation1 + $0x30] sm:$0xff pattern:$0x75316420]
      %1091 = vst [vmem:[#allocation1] ss:$2 sm:$0xff] %v1007
      %1092 = vst [vmem:[%s1077] ss:$2 sm:$0xff] %v1055
      %1093 = vst [vmem:[%s1079] ss:$2 sm:$0xff] %v1008
      %v1094 = vld.sshfl [vmem:[#allocation1] sm:$0xff pattern:$0x75316420]
      %v1095 = vld.sshfl [vmem:[#allocation1 + $0x10] sm:$0xff pattern:$0x75316420]
      %1096 = vst [vmem:[%s1083] ss:$2 sm:$0xff] %v1056
      %1097 = vst [vmem:[%s1085] ss:$2 sm:$0xff] %v1009
      %1098 = vst [vmem:[%s1087] ss:$2 sm:$0xff] %v1057
      %v1099 = vld.sshfl [vmem:[#allocation1 + $0x20] sm:$0xff pattern:$0x75316420]
      %v1100 = vld.sshfl [vmem:[#allocation1 + $0x30] sm:$0xff pattern:$0x75316420]
      %1101 = vst [vmem:[#allocation1] ss:$2 sm:$0xff] %v1010
      %1102 = vst [vmem:[%s1077] ss:$2 sm:$0xff] %v1058
      %1103 = vst [vmem:[%s1079] ss:$2 sm:$0xff] %v1011
      %v1104 = vld.sshfl [vmem:[#allocation1] sm:$0xff pattern:$0x75316420]
      %v1105 = vld.sshfl [vmem:[#allocation1 + $0x10] sm:$0xff pattern:$0x75316420]
      %1106 = vst [vmem:[%s1083] ss:$2 sm:$0xff] %v1059
      %1107 = vst [vmem:[%s1085] ss:$2 sm:$0xff] %v1012
      %1108 = vst [vmem:[%s1087] ss:$2 sm:$0xff] %v1060
      %v1109 = vld.sshfl [vmem:[#allocation1 + $0x20] sm:$0xff pattern:$0x75316420]
      %v1110 = vld.sshfl [vmem:[#allocation1 + $0x30] sm:$0xff pattern:$0x75316420]
      %1111 = vst [vmem:[#allocation1] ss:$2 sm:$0xff] %v1013
      %1112 = vst [vmem:[%s1077] ss:$2 sm:$0xff] %v1061
      %1113 = vst [vmem:[%s1079] ss:$2 sm:$0xff] %v1014
      %v1114 = vld.sshfl [vmem:[#allocation1] sm:$0xff pattern:$0x75316420]
      %v1115 = vld.sshfl [vmem:[#allocation1 + $0x10] sm:$0xff pattern:$0x75316420]
      %1116 = vst [vmem:[%s1083] ss:$2 sm:$0xff] %v1062
      %1117 = vst [vmem:[%s1085] ss:$2 sm:$0xff] %v1015
      %1118 = vst [vmem:[%s1087] ss:$2 sm:$0xff] %v1063
      %v1119 = vld.sshfl [vmem:[#allocation1 + $0x20] sm:$0xff pattern:$0x75316420]
      %v1120 = vld.sshfl [vmem:[#allocation1 + $0x30] sm:$0xff pattern:$0x75316420]
      %1121 = vst [vmem:[#allocation1] ss:$2 sm:$0xff] %v1016
      %1122 = vst [vmem:[%s1077] ss:$2 sm:$0xff] %v1064
      %1123 = vst [vmem:[%s1079] ss:$2 sm:$0xff] %v1017
      %v1124 = vld.sshfl [vmem:[#allocation1] sm:$0xff pattern:$0x75316420]
      %v1125 = vld.sshfl [vmem:[#allocation1 + $0x10] sm:$0xff pattern:$0x75316420]
      %1126 = vst [vmem:[%s1083] ss:$2 sm:$0xff] %v1065
      %1127 = vst [vmem:[%s1085] ss:$2 sm:$0xff] %v1018
      %1128 = vst [vmem:[%s1087] ss:$2 sm:$0xff] %v1066
      %v1129 = vld.sshfl [vmem:[#allocation1 + $0x20] sm:$0xff pattern:$0x75316420]
      %v1130 = vld.sshfl [vmem:[#allocation1 + $0x30] sm:$0xff pattern:$0x75316420]
      %1131 = vst [vmem:[#allocation1] ss:$2 sm:$0xff] %v1019
      %1132 = vst [vmem:[%s1077] ss:$2 sm:$0xff] %v1067
      %1133 = vst [vmem:[%s1079] ss:$2 sm:$0xff] %v1020
      %v1134 = vld.sshfl [vmem:[#allocation1] sm:$0xff pattern:$0x75316420]
      %v1135 = vld.sshfl [vmem:[#allocation1 + $0x10] sm:$0xff pattern:$0x75316420]
      %1136 = vst [vmem:[%s1083] ss:$2 sm:$0xff] %v1068
      %1137 = vst [vmem:[%s1085] ss:$2 sm:$0xff] %v1021
      %1138 = vst [vmem:[%s1087] ss:$2 sm:$0xff] %v1069
      %v1139 = vld.sshfl [vmem:[#allocation1 + $0x20] sm:$0xff pattern:$0x75316420]
      %v1140 = vld.sshfl [vmem:[#allocation1 + $0x30] sm:$0xff pattern:$0x75316420]
      %1141 = vst [vmem:[#allocation1] ss:$2 sm:$0xff] %v1022
      %1142 = vst [vmem:[%s1077] ss:$2 sm:$0xff] %v1070
      %1143 = vst [vmem:[%s1079] ss:$2 sm:$0xff] %v1023
      %v1144 = vld.sshfl [vmem:[#allocation1] sm:$0xff pattern:$0x75316420]
      %v1145 = vld.sshfl [vmem:[#allocation1 + $0x10] sm:$0xff pattern:$0x75316420]
      %1146 = vst [vmem:[%s1083] ss:$2 sm:$0xff] %v1071
      %1147 = vst [vmem:[%s1085] ss:$2 sm:$0xff] %v1024
      %1148 = vst [vmem:[%s1087] ss:$2 sm:$0xff] %v1072
      %v1149 = vld.sshfl [vmem:[#allocation1 + $0x20] sm:$0xff pattern:$0x75316420]
      %v1150 = vld.sshfl [vmem:[#allocation1 + $0x30] sm:$0xff pattern:$0x75316420]
      %1151 = vst [vmem:[#allocation1] ss:$2 sm:$0xff] %v1025
      %1152 = vst [vmem:[%s1077] ss:$2 sm:$0xff] %v1073
      %1153 = vst [vmem:[%s1079] ss:$2 sm:$0xff] %v1026
      %v1154 = vld.sshfl [vmem:[#allocation1] sm:$0xff pattern:$0x75316420]
      %v1155 = vld.sshfl [vmem:[#allocation1 + $0x10] sm:$0xff pattern:$0x75316420]
      %1156 = vst [vmem:[%s1083] ss:$2 sm:$0xff] %v1074
      %1157 = vst [vmem:[%s1085] ss:$2 sm:$0xff] %v1027
      %1158 = vst [vmem:[%s1087] ss:$2 sm:$0xff] %v1075
      %v1159 = vld.sshfl [vmem:[#allocation1 + $0x20] sm:$0xff pattern:$0x75316420]
      %v1160 = vld.sshfl [vmem:[#allocation1 + $0x30] sm:$0xff pattern:$0x75316420]
      %vm1193 = vcmask 64512
      %1194 = vst.msk [vmem:[#allocation2 + $0x4] sm:$0xff] %vm1193, %v1081
      %1195 = vst.msk [vmem:[#allocation2 + $0xc] sm:$0xf] %vm339, %v1082
      %1196 = vst.msk [vmem:[#allocation2 + $0x14] sm:$0xff] %vm1193, %v1089
      %1197 = vst.msk [vmem:[#allocation2 + $0x1c] sm:$0xf] %vm339, %v1090
      %1198 = vst.msk [vmem:[#allocation2 + $0x24] sm:$0xff] %vm1193, %v1094
      %1199 = vst.msk [vmem:[#allocation2 + $0x2c] sm:$0xf] %vm339, %v1095
      %1200 = vst.msk [vmem:[#allocation2 + $0x34] sm:$0xff] %vm1193, %v1099
      %1201 = vst.msk [vmem:[#allocation2 + $0x3c] sm:$0xf] %vm339, %v1100
      %1202 = vst.msk [vmem:[#allocation2 + $0x44] sm:$0xff] %vm1193, %v1104
      %1203 = vst.msk [vmem:[#allocation2 + $0x4c] sm:$0xf] %vm339, %v1105
      %1204 = vst.msk [vmem:[#allocation2 + $0x54] sm:$0xff] %vm1193, %v1109
      %1205 = vst.msk [vmem:[#allocation2 + $0x5c] sm:$0xf] %vm339, %v1110
      %1206 = vst.msk [vmem:[#allocation2 + $0x64] sm:$0xff] %vm1193, %v1114
      %1207 = vst.msk [vmem:[#allocation2 + $0x6c] sm:$0xf] %vm339, %v1115
      %1208 = vst.msk [vmem:[#allocation2 + $0x74] sm:$0xff] %vm1193, %v1119
      %1209 = vst.msk [vmem:[#allocation2 + $0x7c] sm:$0xf] %vm339, %v1120
      %1210 = vst.msk [vmem:[#allocation2 + $0x84] sm:$0xff] %vm1193, %v1124
      %1211 = vst.msk [vmem:[#allocation2 + $0x8c] sm:$0xf] %vm339, %v1125
      %1212 = vst.msk [vmem:[#allocation2 + $0x94] sm:$0xff] %vm1193, %v1129
      %1213 = vst.msk [vmem:[#allocation2 + $0x9c] sm:$0xf] %vm339, %v1130
      %1214 = vst.msk [vmem:[#allocation2 + $0xa4] sm:$0xff] %vm1193, %v1134
      %1215 = vst.msk [vmem:[#allocation2 + $0xac] sm:$0xf] %vm339, %v1135
      %1216 = vst.msk [vmem:[#allocation2 + $0xb4] sm:$0xff] %vm1193, %v1139
      %1217 = vst.msk [vmem:[#allocation2 + $0xbc] sm:$0xf] %vm339, %v1140
      %1218 = vst.msk [vmem:[#allocation2 + $0xc4] sm:$0xff] %vm1193, %v1144
      %1219 = vst.msk [vmem:[#allocation2 + $0xcc] sm:$0xf] %vm339, %v1145
      %1220 = vst.msk [vmem:[#allocation2 + $0xd4] sm:$0xff] %vm1193, %v1149
      %1221 = vst.msk [vmem:[#allocation2 + $0xdc] sm:$0xf] %vm339, %v1150
      %1222 = vst.msk [vmem:[#allocation2 + $0xe4] sm:$0xff] %vm1193, %v1154
      %1223 = vst.msk [vmem:[#allocation2 + $0xec] sm:$0xf] %vm339, %v1155
      %1224 = vst.msk [vmem:[#allocation2 + $0xf4] sm:$0xff] %vm1193, %v1159
      %1225 = vst.msk [vmem:[#allocation2 + $0xfc] sm:$0xf] %vm339, %v1160
      %v1226 = vld [vmem:[#allocation2 + $0x2] sm:$0xff]
      %v1227 = vld [vmem:[#allocation2 + $0xa] sm:$0xf]
      %v1228 = vld [vmem:[#allocation2 + $0x12] sm:$0xff]
      %v1229 = vld [vmem:[#allocation2 + $0x1a] sm:$0xf]
      %v1230 = vld [vmem:[#allocation2 + $0x22] sm:$0xff]
      %v1231 = vld [vmem:[#allocation2 + $0x2a] sm:$0xf]
      %v1232 = vld [vmem:[#allocation2 + $0x32] sm:$0xff]
      %v1233 = vld [vmem:[#allocation2 + $0x3a] sm:$0xf]
      %v1234 = vld [vmem:[#allocation2 + $0x42] sm:$0xff]
      %v1235 = vld [vmem:[#allocation2 + $0x4a] sm:$0xf]
      %v1236 = vld [vmem:[#allocation2 + $0x52] sm:$0xff]
      %v1237 = vld [vmem:[#allocation2 + $0x5a] sm:$0xf]
      %v1238 = vld [vmem:[#allocation2 + $0x62] sm:$0xff]
      %v1239 = vld [vmem:[#allocation2 + $0x6a] sm:$0xf]
      %v1240 = vld [vmem:[#allocation2 + $0x72] sm:$0xff]
      %v1241 = vld [vmem:[#allocation2 + $0x7a] sm:$0xf]
      %v1242 = vld [vmem:[#allocation2 + $0x82] sm:$0xff]
      %v1243 = vld [vmem:[#allocation2 + $0x8a] sm:$0xf]
      %v1244 = vld [vmem:[#allocation2 + $0x92] sm:$0xff]
      %v1245 = vld [vmem:[#allocation2 + $0x9a] sm:$0xf]
      %v1246 = vld [vmem:[#allocation2 + $0xa2] sm:$0xff]
      %v1247 = vld [vmem:[#allocation2 + $0xaa] sm:$0xf]
      %v1248 = vld [vmem:[#allocation2 + $0xb2] sm:$0xff]
      %v1249 = vld [vmem:[#allocation2 + $0xba] sm:$0xf]
      %v1250 = vld [vmem:[#allocation2 + $0xc2] sm:$0xff]
      %v1251 = vld [vmem:[#allocation2 + $0xca] sm:$0xf]
      %v1252 = vld [vmem:[#allocation2 + $0xd2] sm:$0xff]
      %v1253 = vld [vmem:[#allocation2 + $0xda] sm:$0xf]
      %v1254 = vld [vmem:[#allocation2 + $0xe2] sm:$0xff]
      %v1255 = vld [vmem:[#allocation2 + $0xea] sm:$0xf]
      %v1256 = vld [vmem:[#allocation2 + $0xf2] sm:$0xff]
      %v1257 = vld [vmem:[#allocation2 + $0xfa] sm:$0xf]
      %v1290 = vrot.slane %v1226, 4
      %v1291 = vrot.slane %v1228, 4
      %v1292 = vrot.slane %v1230, 4
      %v1293 = vrot.slane %v1232, 4
      %v1294 = vrot.slane %v1234, 4
      %v1295 = vrot.slane %v1236, 4
      %v1296 = vrot.slane %v1238, 4
      %v1297 = vrot.slane %v1240, 4
      %v1298 = vrot.slane %v1242, 4
      %v1299 = vrot.slane %v1244, 4
      %v1300 = vrot.slane %v1246, 4
      %v1301 = vrot.slane %v1248, 4
      %v1302 = vrot.slane %v1250, 4
      %v1303 = vrot.slane %v1252, 4
      %v1304 = vrot.slane %v1254, 4
      %v1305 = vrot.slane %v1256, 4
      %v1306 = vld [vmem:[%s3] sm:$0xff]
      %v1307 = vld [vmem:[#allocation2 + $0x4] sm:$0xff]
      %v1308 = vld [vmem:[#allocation2 + $0xc] sm:$0xf]
      %v1309 = vld [vmem:[#allocation2 + $0x14] sm:$0xff]
      %v1310 = vld [vmem:[#allocation2 + $0x1c] sm:$0xf]
      %v1311 = vld [vmem:[#allocation2 + $0x24] sm:$0xff]
      %v1312 = vld [vmem:[#allocation2 + $0x2c] sm:$0xf]
      %v1313 = vld [vmem:[#allocation2 + $0x34] sm:$0xff]
      %v1314 = vld [vmem:[#allocation2 + $0x3c] sm:$0xf]
      %v1315 = vld [vmem:[#allocation2 + $0x44] sm:$0xff]
      %v1316 = vld [vmem:[#allocation2 + $0x4c] sm:$0xf]
      %v1317 = vld [vmem:[#allocation2 + $0x54] sm:$0xff]
      %v1318 = vld [vmem:[#allocation2 + $0x5c] sm:$0xf]
      %v1319 = vld [vmem:[#allocation2 + $0x64] sm:$0xff]
      %v1320 = vld [vmem:[#allocation2 + $0x6c] sm:$0xf]
      %v1321 = vld [vmem:[#allocation2 + $0x74] sm:$0xff]
      %v1322 = vld [vmem:[#allocation2 + $0x7c] sm:$0xf]
      %v1323 = vld [vmem:[#allocation2 + $0x84] sm:$0xff]
      %v1324 = vld [vmem:[#allocation2 + $0x8c] sm:$0xf]
      %v1325 = vld [vmem:[#allocation2 + $0x94] sm:$0xff]
      %v1326 = vld [vmem:[#allocation2 + $0x9c] sm:$0xf]
      %v1327 = vld [vmem:[#allocation2 + $0xa4] sm:$0xff]
      %v1328 = vld [vmem:[#allocation2 + $0xac] sm:$0xf]
      %v1329 = vld [vmem:[#allocation2 + $0xb4] sm:$0xff]
      %v1330 = vld [vmem:[#allocation2 + $0xbc] sm:$0xf]
      %v1331 = vld [vmem:[#allocation2 + $0xc4] sm:$0xff]
      %v1332 = vld [vmem:[#allocation2 + $0xcc] sm:$0xf]
      %v1333 = vld [vmem:[#allocation2 + $0xd4] sm:$0xff]
      %v1334 = vld [vmem:[#allocation2 + $0xdc] sm:$0xf]
      %v1335 = vld [vmem:[#allocation2 + $0xe4] sm:$0xff]
      %v1336 = vld [vmem:[#allocation2 + $0xec] sm:$0xf]
      %v1337 = vld [vmem:[#allocation2 + $0xf4] sm:$0xff]
      %v1338 = vld [vmem:[#allocation2 + $0xfc] sm:$0xf]
      %v1371 = vrot.slane %v1307, 4
      %v1372 = vrot.slane %v1309, 4
      %v1373 = vrot.slane %v1311, 4
      %v1374 = vrot.slane %v1313, 4
      %v1375 = vrot.slane %v1315, 4
      %v1376 = vrot.slane %v1317, 4
      %v1377 = vrot.slane %v1319, 4
      %v1378 = vrot.slane %v1321, 4
      %v1379 = vrot.slane %v1323, 4
      %v1380 = vrot.slane %v1325, 4
      %v1381 = vrot.slane %v1327, 4
      %v1382 = vrot.slane %v1329, 4
      %v1383 = vrot.slane %v1331, 4
      %v1384 = vrot.slane %v1333, 4
      %v1385 = vrot.slane %v1335, 4
      %v1386 = vrot.slane %v1337, 4
      %s1387 = scalar_lea.vmem %s3, 8
      %v1388 = vld [vmem:[%s1387] sm:$0xff]
      %1389 = vst [vmem:[#allocation1] ss:$2 sm:$0xff] %v1307
      %s1390 = scalar_lea.vmem [#allocation1], 1
      %1391 = vst [vmem:[%s1390] ss:$2 sm:$0xff] %v1371
      %s1392 = scalar_lea.vmem [#allocation1], 16
      %1393 = vst [vmem:[%s1392] ss:$2 sm:$0xff] %v1308
      %s1394 = scalar_lea.vmem [#allocation1], 17
      %1395 = vst [vmem:[%s1394] ss:$2 sm:$0xff] %v1309
      %s1396 = scalar_lea.vmem [#allocation1], 32
      %1397 = vst [vmem:[%s1396] ss:$2 sm:$0xff] %v1372
      %s1398 = scalar_lea.vmem [#allocation1], 33
      %1399 = vst [vmem:[%s1398] ss:$2 sm:$0xff] %v1310
      %s1400 = scalar_lea.vmem [#allocation1], 48
      %1401 = vst [vmem:[%s1400] ss:$2 sm:$0xff] %v1311
      %s1402 = scalar_lea.vmem [#allocation1], 49
      %1403 = vst [vmem:[%s1402] ss:$2 sm:$0xff] %v1373
      %v1404 = vld.sshfl [vmem:[#allocation1] sm:$0xff pattern:$0x75316420]
      %v1405 = vld.sshfl [vmem:[#allocation1 + $0x10] sm:$0xff pattern:$0x75316420]
      %v1406 = vld.sshfl [vmem:[#allocation1 + $0x20] sm:$0xff pattern:$0x75316420]
      %v1407 = vld.sshfl [vmem:[#allocation1 + $0x30] sm:$0xff pattern:$0x75316420]
      %1408 = vst [vmem:[#allocation1] ss:$2 sm:$0xff] %v1312
      %1409 = vst [vmem:[%s1390] ss:$2 sm:$0xff] %v1313
      %1410 = vst [vmem:[%s1392] ss:$2 sm:$0xff] %v1374
      %1411 = vst [vmem:[%s1394] ss:$2 sm:$0xff] %v1314
      %1412 = vst [vmem:[%s1396] ss:$2 sm:$0xff] %v1315
      %1413 = vst [vmem:[%s1398] ss:$2 sm:$0xff] %v1375
      %1414 = vst [vmem:[%s1400] ss:$2 sm:$0xff] %v1316
      %1415 = vst [vmem:[%s1402] ss:$2 sm:$0xff] %v1317
      %v1416 = vld.sshfl [vmem:[#allocation1] sm:$0xff pattern:$0x75316420]
      %v1417 = vld.sshfl [vmem:[#allocation1 + $0x10] sm:$0xff pattern:$0x75316420]
      %v1418 = vld.sshfl [vmem:[#allocation1 + $0x20] sm:$0xff pattern:$0x75316420]
      %v1419 = vld.sshfl [vmem:[#allocation1 + $0x30] sm:$0xff pattern:$0x75316420]
      %1420 = vst [vmem:[#allocation1] ss:$2 sm:$0xff] %v1376
      %1421 = vst [vmem:[%s1390] ss:$2 sm:$0xff] %v1318
      %1422 = vst [vmem:[%s1392] ss:$2 sm:$0xff] %v1319
      %1423 = vst [vmem:[%s1394] ss:$2 sm:$0xff] %v1377
      %1424 = vst [vmem:[%s1396] ss:$2 sm:$0xff] %v1320
      %1425 = vst [vmem:[%s1398] ss:$2 sm:$0xff] %v1321
      %1426 = vst [vmem:[%s1400] ss:$2 sm:$0xff] %v1378
      %1427 = vst [vmem:[%s1402] ss:$2 sm:$0xff] %v1322
      %v1428 = vld.sshfl [vmem:[#allocation1] sm:$0xff pattern:$0x75316420]
      %v1429 = vld.sshfl [vmem:[#allocation1 + $0x10] sm:$0xff pattern:$0x75316420]
      %v1430 = vld.sshfl [vmem:[#allocation1 + $0x20] sm:$0xff pattern:$0x75316420]
      %v1431 = vld.sshfl [vmem:[#allocation1 + $0x30] sm:$0xff pattern:$0x75316420]
      %1432 = vst [vmem:[#allocation1] ss:$2 sm:$0xff] %v1323
      %1433 = vst [vmem:[%s1390] ss:$2 sm:$0xff] %v1379
      %1434 = vst [vmem:[%s1392] ss:$2 sm:$0xff] %v1324
      %1435 = vst [vmem:[%s1394] ss:$2 sm:$0xff] %v1325
      %1436 = vst [vmem:[%s1396] ss:$2 sm:$0xff] %v1380
      %1437 = vst [vmem:[%s1398] ss:$2 sm:$0xff] %v1326
      %1438 = vst [vmem:[%s1400] ss:$2 sm:$0xff] %v1327
      %1439 = vst [vmem:[%s1402] ss:$2 sm:$0xff] %v1381
      %v1440 = vld.sshfl [vmem:[#allocation1] sm:$0xff pattern:$0x75316420]
      %v1441 = vld.sshfl [vmem:[#allocation1 + $0x10] sm:$0xff pattern:$0x75316420]
      %v1442 = vld.sshfl [vmem:[#allocation1 + $0x20] sm:$0xff pattern:$0x75316420]
      %v1443 = vld.sshfl [vmem:[#allocation1 + $0x30] sm:$0xff pattern:$0x75316420]
      %1444 = vst [vmem:[#allocation1] ss:$2 sm:$0xff] %v1328
      %1445 = vst [vmem:[%s1390] ss:$2 sm:$0xff] %v1329
      %1446 = vst [vmem:[%s1392] ss:$2 sm:$0xff] %v1382
      %1447 = vst [vmem:[%s1394] ss:$2 sm:$0xff] %v1330
      %1448 = vst [vmem:[%s1396] ss:$2 sm:$0xff] %v1331
      %1449 = vst [vmem:[%s1398] ss:$2 sm:$0xff] %v1383
      %1450 = vst [vmem:[%s1400] ss:$2 sm:$0xff] %v1332
      %1451 = vst [vmem:[%s1402] ss:$2 sm:$0xff] %v1333
      %v1452 = vld.sshfl [vmem:[#allocation1] sm:$0xff pattern:$0x75316420]
      %v1453 = vld.sshfl [vmem:[#allocation1 + $0x10] sm:$0xff pattern:$0x75316420]
      %v1454 = vld.sshfl [vmem:[#allocation1 + $0x20] sm:$0xff pattern:$0x75316420]
      %v1455 = vld.sshfl [vmem:[#allocation1 + $0x30] sm:$0xff pattern:$0x75316420]
      %1456 = vst [vmem:[#allocation1] ss:$2 sm:$0xff] %v1384
      %1457 = vst [vmem:[%s1390] ss:$2 sm:$0xff] %v1334
      %1458 = vst [vmem:[%s1392] ss:$2 sm:$0xff] %v1335
      %1459 = vst [vmem:[%s1394] ss:$2 sm:$0xff] %v1385
      %1460 = vst [vmem:[%s1396] ss:$2 sm:$0xff] %v1336
      %1461 = vst [vmem:[%s1398] ss:$2 sm:$0xff] %v1337
      %1462 = vst [vmem:[%s1400] ss:$2 sm:$0xff] %v1386
      %1463 = vst [vmem:[%s1402] ss:$2 sm:$0xff] %v1338
      %v1464 = vld.sshfl [vmem:[#allocation1] sm:$0xff pattern:$0x75316420]
      %v1465 = vld.sshfl [vmem:[#allocation1 + $0x10] sm:$0xff pattern:$0x75316420]
      %v1466 = vld.sshfl [vmem:[#allocation1 + $0x20] sm:$0xff pattern:$0x75316420]
      %v1467 = vld.sshfl [vmem:[#allocation1 + $0x30] sm:$0xff pattern:$0x75316420]
      %v1468 = vsel %vm1193, %v1404, 0
      %v1470 = vsel %vm1193, %v1405, 0
      %v1472 = vsel %vm1193, %v1406, 0
      %v1474 = vsel %vm1193, %v1407, 0
      %v1476 = vsel %vm1193, %v1416, 0
      %v1478 = vsel %vm1193, %v1417, 0
      %v1480 = vsel %vm1193, %v1418, 0
      %v1482 = vsel %vm1193, %v1419, 0
      %v1484 = vsel %vm1193, %v1428, 0
      %v1486 = vsel %vm1193, %v1429, 0
      %v1488 = vsel %vm1193, %v1430, 0
      %v1490 = vsel %vm1193, %v1431, 0
      %v1492 = vsel %vm1193, %v1440, 0
      %v1494 = vsel %vm1193, %v1441, 0
      %v1496 = vsel %vm1193, %v1442, 0
      %v1498 = vsel %vm1193, %v1443, 0
      %v1500 = vsel %vm1193, %v1452, 0
      %v1502 = vsel %vm1193, %v1453, 0
      %v1504 = vsel %vm1193, %v1454, 0
      %v1506 = vsel %vm1193, %v1455, 0
      %v1508 = vsel %vm1193, %v1464, 0
      %v1510 = vsel %vm1193, %v1465, 0
      %v1512 = vsel %vm1193, %v1466, 0
      %v1514 = vsel %vm1193, %v1467, 0
      %1516 = vmatpush.msra.mxu0 0.0
      %1517 = vmatpush.msra.mxu0 0.0
      %1518 = vmatpush.msra.mxu0 0.0
      %1519 = vmatpush.msra.mxu0 0.0
      %1520 = vmatpush.msra.mxu0 0.0
      %1521 = vmatpush.msra.mxu0 0.0
      %1522 = vmatpush.msra.mxu0 0.0
      %1523 = vmatpush.msra.mxu0 0.0
      %1524 = vmatpush.msra.mxu0 0.0
      %1525 = vmatpush.msra.mxu0 0.0
      %1526 = vmatpush.msra.mxu0 0.0
      %1527 = vmatpush.msra.mxu0 0.0
      %1528 = vmatpush.msra.mxu0 0.0
      %1529 = vmatpush.msra.mxu0 0.0
      %1530 = vmatpush.msra.mxu0 0.0
      %1531 = vmatpush.msra.mxu0 %v1388
      %1532 = vmatmul.f32.gmra.mxu0 %v1468
      %v1533 = vpop.f32.mrf.mxu0
      %v1534 = vadd.f32 0.0, %v1533
      %1535 = vmatmul.f32.gmra.mxu0 %v1470
      %v1536 = vpop.f32.mrf.mxu0
      %v1537 = vadd.f32 0.0, %v1536
      %1538 = vmatmul.f32.gmra.mxu0 %v1472
      %v1539 = vpop.f32.mrf.mxu0
      %v1540 = vadd.f32 0.0, %v1539
      %1541 = vmatmul.f32.gmra.mxu0 %v1474
      %v1542 = vpop.f32.mrf.mxu0
      %v1543 = vadd.f32 0.0, %v1542
      %1544 = vmatmul.f32.gmra.mxu0 %v1476
      %v1545 = vpop.f32.mrf.mxu0
      %v1546 = vadd.f32 0.0, %v1545
      %1547 = vmatmul.f32.gmra.mxu0 %v1478
      %v1548 = vpop.f32.mrf.mxu0
      %v1549 = vadd.f32 0.0, %v1548
      %1550 = vmatmul.f32.gmra.mxu0 %v1480
      %v1551 = vpop.f32.mrf.mxu0
      %v1552 = vadd.f32 0.0, %v1551
      %1553 = vmatmul.f32.gmra.mxu0 %v1482
      %v1554 = vpop.f32.mrf.mxu0
      %v1555 = vadd.f32 0.0, %v1554
      %1556 = vmatmul.f32.gmra.mxu0 %v1484
      %v1557 = vpop.f32.mrf.mxu0
      %v1558 = vadd.f32 0.0, %v1557
      %1559 = vmatmul.f32.gmra.mxu0 %v1486
      %v1560 = vpop.f32.mrf.mxu0
      %v1561 = vadd.f32 0.0, %v1560
      %1562 = vmatmul.f32.gmra.mxu0 %v1488
      %v1563 = vpop.f32.mrf.mxu0
      %v1564 = vadd.f32 0.0, %v1563
      %1565 = vmatmul.f32.gmra.mxu0 %v1490
      %v1566 = vpop.f32.mrf.mxu0
      %v1567 = vadd.f32 0.0, %v1566
      %1568 = vmatmul.f32.gmra.mxu0 %v1492
      %v1569 = vpop.f32.mrf.mxu0
      %v1570 = vadd.f32 0.0, %v1569
      %1571 = vmatmul.f32.gmra.mxu0 %v1494
      %v1572 = vpop.f32.mrf.mxu0
      %v1573 = vadd.f32 0.0, %v1572
      %1574 = vmatmul.f32.gmra.mxu0 %v1496
      %v1575 = vpop.f32.mrf.mxu0
      %v1576 = vadd.f32 0.0, %v1575
      %1577 = vmatmul.f32.gmra.mxu0 %v1498
      %v1578 = vpop.f32.mrf.mxu0
      %v1579 = vadd.f32 0.0, %v1578
      %1580 = vmatmul.f32.gmra.mxu0 %v1500
      %v1581 = vpop.f32.mrf.mxu0
      %v1582 = vadd.f32 0.0, %v1581
      %1583 = vmatmul.f32.gmra.mxu0 %v1502
      %v1584 = vpop.f32.mrf.mxu0
      %v1585 = vadd.f32 0.0, %v1584
      %1586 = vmatmul.f32.gmra.mxu0 %v1504
      %v1587 = vpop.f32.mrf.mxu0
      %v1588 = vadd.f32 0.0, %v1587
      %1589 = vmatmul.f32.gmra.mxu0 %v1506
      %v1590 = vpop.f32.mrf.mxu0
      %v1591 = vadd.f32 0.0, %v1590
      %1592 = vmatmul.f32.gmra.mxu0 %v1508
      %v1593 = vpop.f32.mrf.mxu0
      %v1594 = vadd.f32 0.0, %v1593
      %1595 = vmatmul.f32.gmra.mxu0 %v1510
      %v1596 = vpop.f32.mrf.mxu0
      %v1597 = vadd.f32 0.0, %v1596
      %1598 = vmatmul.f32.gmra.mxu0 %v1512
      %v1599 = vpop.f32.mrf.mxu0
      %v1600 = vadd.f32 0.0, %v1599
      %1601 = vmatmul.f32.gmra.mxu0 %v1514
      %v1602 = vpop.f32.mrf.mxu0
      %v1603 = vadd.f32 0.0, %v1602
      %1604 = vdwg.mxu0
      %1605 = vst [vmem:[#allocation1] ss:$2 sm:$0xff] %v1226
      %s1606 = scalar_lea.vmem [#allocation1], 1
      %1607 = vst [vmem:[%s1606] ss:$2 sm:$0xff] %v1290
      %s1608 = scalar_lea.vmem [#allocation1], 16
      %1609 = vst [vmem:[%s1608] ss:$2 sm:$0xff] %v1227
      %s1610 = scalar_lea.vmem [#allocation1], 17
      %1611 = vst [vmem:[%s1610] ss:$2 sm:$0xff] %v1228
      %s1612 = scalar_lea.vmem [#allocation1], 32
      %1613 = vst [vmem:[%s1612] ss:$2 sm:$0xff] %v1291
      %s1614 = scalar_lea.vmem [#allocation1], 33
      %1615 = vst [vmem:[%s1614] ss:$2 sm:$0xff] %v1229
      %s1616 = scalar_lea.vmem [#allocation1], 48
      %1617 = vst [vmem:[%s1616] ss:$2 sm:$0xff] %v1230
      %s1618 = scalar_lea.vmem [#allocation1], 49
      %1619 = vst [vmem:[%s1618] ss:$2 sm:$0xff] %v1292
      %v1620 = vld.sshfl [vmem:[#allocation1] sm:$0xff pattern:$0x75316420]
      %v1621 = vld.sshfl [vmem:[#allocation1 + $0x10] sm:$0xff pattern:$0x75316420]
      %v1622 = vld.sshfl [vmem:[#allocation1 + $0x20] sm:$0xff pattern:$0x75316420]
      %v1623 = vld.sshfl [vmem:[#allocation1 + $0x30] sm:$0xff pattern:$0x75316420]
      %1624 = vst [vmem:[#allocation1] ss:$2 sm:$0xff] %v1231
      %1625 = vst [vmem:[%s1606] ss:$2 sm:$0xff] %v1232
      %1626 = vst [vmem:[%s1608] ss:$2 sm:$0xff] %v1293
      %1627 = vst [vmem:[%s1610] ss:$2 sm:$0xff] %v1233
      %1628 = vst [vmem:[%s1612] ss:$2 sm:$0xff] %v1234
      %1629 = vst [vmem:[%s1614] ss:$2 sm:$0xff] %v1294
      %1630 = vst [vmem:[%s1616] ss:$2 sm:$0xff] %v1235
      %1631 = vst [vmem:[%s1618] ss:$2 sm:$0xff] %v1236
      %v1632 = vld.sshfl [vmem:[#allocation1] sm:$0xff pattern:$0x75316420]
      %v1633 = vld.sshfl [vmem:[#allocation1 + $0x10] sm:$0xff pattern:$0x75316420]
      %v1634 = vld.sshfl [vmem:[#allocation1 + $0x20] sm:$0xff pattern:$0x75316420]
      %v1635 = vld.sshfl [vmem:[#allocation1 + $0x30] sm:$0xff pattern:$0x75316420]
      %1636 = vst [vmem:[#allocation1] ss:$2 sm:$0xff] %v1295
      %1637 = vst [vmem:[%s1606] ss:$2 sm:$0xff] %v1237
      %1638 = vst [vmem:[%s1608] ss:$2 sm:$0xff] %v1238
      %1639 = vst [vmem:[%s1610] ss:$2 sm:$0xff] %v1296
      %1640 = vst [vmem:[%s1612] ss:$2 sm:$0xff] %v1239
      %1641 = vst [vmem:[%s1614] ss:$2 sm:$0xff] %v1240
      %1642 = vst [vmem:[%s1616] ss:$2 sm:$0xff] %v1297
      %1643 = vst [vmem:[%s1618] ss:$2 sm:$0xff] %v1241
      %v1644 = vld.sshfl [vmem:[#allocation1] sm:$0xff pattern:$0x75316420]
      %v1645 = vld.sshfl [vmem:[#allocation1 + $0x10] sm:$0xff pattern:$0x75316420]
      %v1646 = vld.sshfl [vmem:[#allocation1 + $0x20] sm:$0xff pattern:$0x75316420]
      %v1647 = vld.sshfl [vmem:[#allocation1 + $0x30] sm:$0xff pattern:$0x75316420]
      %1648 = vst [vmem:[#allocation1] ss:$2 sm:$0xff] %v1242
      %1649 = vst [vmem:[%s1606] ss:$2 sm:$0xff] %v1298
      %1650 = vst [vmem:[%s1608] ss:$2 sm:$0xff] %v1243
      %1651 = vst [vmem:[%s1610] ss:$2 sm:$0xff] %v1244
      %1652 = vst [vmem:[%s1612] ss:$2 sm:$0xff] %v1299
      %1653 = vst [vmem:[%s1614] ss:$2 sm:$0xff] %v1245
      %1654 = vst [vmem:[%s1616] ss:$2 sm:$0xff] %v1246
      %1655 = vst [vmem:[%s1618] ss:$2 sm:$0xff] %v1300
      %v1656 = vld.sshfl [vmem:[#allocation1] sm:$0xff pattern:$0x75316420]
      %v1657 = vld.sshfl [vmem:[#allocation1 + $0x10] sm:$0xff pattern:$0x75316420]
      %v1658 = vld.sshfl [vmem:[#allocation1 + $0x20] sm:$0xff pattern:$0x75316420]
      %v1659 = vld.sshfl [vmem:[#allocation1 + $0x30] sm:$0xff pattern:$0x75316420]
      %1660 = vst [vmem:[#allocation1] ss:$2 sm:$0xff] %v1247
      %1661 = vst [vmem:[%s1606] ss:$2 sm:$0xff] %v1248
      %1662 = vst [vmem:[%s1608] ss:$2 sm:$0xff] %v1301
      %1663 = vst [vmem:[%s1610] ss:$2 sm:$0xff] %v1249
      %1664 = vst [vmem:[%s1612] ss:$2 sm:$0xff] %v1250
      %1665 = vst [vmem:[%s1614] ss:$2 sm:$0xff] %v1302
      %1666 = vst [vmem:[%s1616] ss:$2 sm:$0xff] %v1251
      %1667 = vst [vmem:[%s1618] ss:$2 sm:$0xff] %v1252
      %v1668 = vld.sshfl [vmem:[#allocation1] sm:$0xff pattern:$0x75316420]
      %v1669 = vld.sshfl [vmem:[#allocation1 + $0x10] sm:$0xff pattern:$0x75316420]
      %v1670 = vld.sshfl [vmem:[#allocation1 + $0x20] sm:$0xff pattern:$0x75316420]
      %v1671 = vld.sshfl [vmem:[#allocation1 + $0x30] sm:$0xff pattern:$0x75316420]
      %1672 = vst [vmem:[#allocation1] ss:$2 sm:$0xff] %v1303
      %1673 = vst [vmem:[%s1606] ss:$2 sm:$0xff] %v1253
      %1674 = vst [vmem:[%s1608] ss:$2 sm:$0xff] %v1254
      %1675 = vst [vmem:[%s1610] ss:$2 sm:$0xff] %v1304
      %1676 = vst [vmem:[%s1612] ss:$2 sm:$0xff] %v1255
      %1677 = vst [vmem:[%s1614] ss:$2 sm:$0xff] %v1256
      %1678 = vst [vmem:[%s1616] ss:$2 sm:$0xff] %v1305
      %1679 = vst [vmem:[%s1618] ss:$2 sm:$0xff] %v1257
      %v1680 = vld.sshfl [vmem:[#allocation1] sm:$0xff pattern:$0x75316420]
      %v1681 = vld.sshfl [vmem:[#allocation1 + $0x10] sm:$0xff pattern:$0x75316420]
      %v1682 = vld.sshfl [vmem:[#allocation1 + $0x20] sm:$0xff pattern:$0x75316420]
      %v1683 = vld.sshfl [vmem:[#allocation1 + $0x30] sm:$0xff pattern:$0x75316420]
      %v1684 = vsel %vm1193, %v1620, 0
      %v1686 = vsel %vm1193, %v1621, 0
      %v1688 = vsel %vm1193, %v1622, 0
      %v1690 = vsel %vm1193, %v1623, 0
      %v1692 = vsel %vm1193, %v1632, 0
      %v1694 = vsel %vm1193, %v1633, 0
      %v1696 = vsel %vm1193, %v1634, 0
      %v1698 = vsel %vm1193, %v1635, 0
      %v1700 = vsel %vm1193, %v1644, 0
      %v1702 = vsel %vm1193, %v1645, 0
      %v1704 = vsel %vm1193, %v1646, 0
      %v1706 = vsel %vm1193, %v1647, 0
      %v1708 = vsel %vm1193, %v1656, 0
      %v1710 = vsel %vm1193, %v1657, 0
      %v1712 = vsel %vm1193, %v1658, 0
      %v1714 = vsel %vm1193, %v1659, 0
      %v1716 = vsel %vm1193, %v1668, 0
      %v1718 = vsel %vm1193, %v1669, 0
      %v1720 = vsel %vm1193, %v1670, 0
      %v1722 = vsel %vm1193, %v1671, 0
      %v1724 = vsel %vm1193, %v1680, 0
      %v1726 = vsel %vm1193, %v1681, 0
      %v1728 = vsel %vm1193, %v1682, 0
      %v1730 = vsel %vm1193, %v1683, 0
      %1732 = vmatpush.msra.mxu0 0.0
      %1733 = vmatpush.msra.mxu0 0.0
      %1734 = vmatpush.msra.mxu0 0.0
      %1735 = vmatpush.msra.mxu0 0.0
      %1736 = vmatpush.msra.mxu0 0.0
      %1737 = vmatpush.msra.mxu0 0.0
      %1738 = vmatpush.msra.mxu0 0.0
      %1739 = vmatpush.msra.mxu0 0.0
      %1740 = vmatpush.msra.mxu0 0.0
      %1741 = vmatpush.msra.mxu0 0.0
      %1742 = vmatpush.msra.mxu0 0.0
      %1743 = vmatpush.msra.mxu0 0.0
      %1744 = vmatpush.msra.mxu0 0.0
      %1745 = vmatpush.msra.mxu0 0.0
      %1746 = vmatpush.msra.mxu0 0.0
      %1747 = vmatpush.msra.mxu0 %v1306
      %1748 = vmatmul.f32.gmra.mxu0 %v1684
      %v1749 = vpop.f32.mrf.mxu0
      %v1750 = vadd.f32 %v1534, %v1749
      %1751 = vmatmul.f32.gmra.mxu0 %v1686
      %v1752 = vpop.f32.mrf.mxu0
      %v1753 = vadd.f32 %v1537, %v1752
      %1754 = vmatmul.f32.gmra.mxu0 %v1688
      %v1755 = vpop.f32.mrf.mxu0
      %v1756 = vadd.f32 %v1540, %v1755
      %1757 = vmatmul.f32.gmra.mxu0 %v1690
      %v1758 = vpop.f32.mrf.mxu0
      %v1759 = vadd.f32 %v1543, %v1758
      %1760 = vmatmul.f32.gmra.mxu0 %v1692
      %v1761 = vpop.f32.mrf.mxu0
      %v1762 = vadd.f32 %v1546, %v1761
      %1763 = vmatmul.f32.gmra.mxu0 %v1694
      %v1764 = vpop.f32.mrf.mxu0
      %v1765 = vadd.f32 %v1549, %v1764
      %1766 = vmatmul.f32.gmra.mxu0 %v1696
      %v1767 = vpop.f32.mrf.mxu0
      %v1768 = vadd.f32 %v1552, %v1767
      %1769 = vmatmul.f32.gmra.mxu0 %v1698
      %v1770 = vpop.f32.mrf.mxu0
      %v1771 = vadd.f32 %v1555, %v1770
      %1772 = vmatmul.f32.gmra.mxu0 %v1700
      %v1773 = vpop.f32.mrf.mxu0
      %v1774 = vadd.f32 %v1558, %v1773
      %1775 = vmatmul.f32.gmra.mxu0 %v1702
      %v1776 = vpop.f32.mrf.mxu0
      %v1777 = vadd.f32 %v1561, %v1776
      %1778 = vmatmul.f32.gmra.mxu0 %v1704
      %v1779 = vpop.f32.mrf.mxu0
      %v1780 = vadd.f32 %v1564, %v1779
      %1781 = vmatmul.f32.gmra.mxu0 %v1706
      %v1782 = vpop.f32.mrf.mxu0
      %v1783 = vadd.f32 %v1567, %v1782
      %1784 = vmatmul.f32.gmra.mxu0 %v1708
      %v1785 = vpop.f32.mrf.mxu0
      %v1786 = vadd.f32 %v1570, %v1785
      %1787 = vmatmul.f32.gmra.mxu0 %v1710
      %v1788 = vpop.f32.mrf.mxu0
      %v1789 = vadd.f32 %v1573, %v1788
      %1790 = vmatmul.f32.gmra.mxu0 %v1712
      %v1791 = vpop.f32.mrf.mxu0
      %v1792 = vadd.f32 %v1576, %v1791
      %1793 = vmatmul.f32.gmra.mxu0 %v1714
      %v1794 = vpop.f32.mrf.mxu0
      %v1795 = vadd.f32 %v1579, %v1794
      %1796 = vmatmul.f32.gmra.mxu0 %v1716
      %v1797 = vpop.f32.mrf.mxu0
      %v1798 = vadd.f32 %v1582, %v1797
      %1799 = vmatmul.f32.gmra.mxu0 %v1718
      %v1800 = vpop.f32.mrf.mxu0
      %v1801 = vadd.f32 %v1585, %v1800
      %1802 = vmatmul.f32.gmra.mxu0 %v1720
      %v1803 = vpop.f32.mrf.mxu0
      %v1804 = vadd.f32 %v1588, %v1803
      %1805 = vmatmul.f32.gmra.mxu0 %v1722
      %v1806 = vpop.f32.mrf.mxu0
      %v1807 = vadd.f32 %v1591, %v1806
      %1808 = vmatmul.f32.gmra.mxu0 %v1724
      %v1809 = vpop.f32.mrf.mxu0
      %v1810 = vadd.f32 %v1594, %v1809
      %1811 = vmatmul.f32.gmra.mxu0 %v1726
      %v1812 = vpop.f32.mrf.mxu0
      %v1813 = vadd.f32 %v1597, %v1812
      %1814 = vmatmul.f32.gmra.mxu0 %v1728
      %v1815 = vpop.f32.mrf.mxu0
      %v1816 = vadd.f32 %v1600, %v1815
      %1817 = vmatmul.f32.gmra.mxu0 %v1730
      %v1818 = vpop.f32.mrf.mxu0
      %v1819 = vadd.f32 %v1603, %v1818
      %1820 = vdwg.mxu0
      %v1821 = vld [vmem:[%s4] sm:$0x1]
      %v1823 = vperm.slane %v1821, 0
      %v1825 = vadd.f32 %v1750, %v1823
      %v1826 = vadd.f32 %v1753, %v1823
      %v1827 = vadd.f32 %v1756, %v1823
      %v1828 = vadd.f32 %v1759, %v1823
      %v1829 = vadd.f32 %v1762, %v1823
      %v1830 = vadd.f32 %v1765, %v1823
      %v1831 = vadd.f32 %v1768, %v1823
      %v1832 = vadd.f32 %v1771, %v1823
      %v1833 = vadd.f32 %v1774, %v1823
      %v1834 = vadd.f32 %v1777, %v1823
      %v1835 = vadd.f32 %v1780, %v1823
      %v1836 = vadd.f32 %v1783, %v1823
      %v1837 = vadd.f32 %v1786, %v1823
      %v1838 = vadd.f32 %v1789, %v1823
      %v1839 = vadd.f32 %v1792, %v1823
      %v1840 = vadd.f32 %v1795, %v1823
      %v1841 = vadd.f32 %v1798, %v1823
      %v1842 = vadd.f32 %v1801, %v1823
      %v1843 = vadd.f32 %v1804, %v1823
      %v1844 = vadd.f32 %v1807, %v1823
      %v1845 = vadd.f32 %v1810, %v1823
      %v1846 = vadd.f32 %v1813, %v1823
      %v1847 = vadd.f32 %v1816, %v1823
      %v1848 = vadd.f32 %v1819, %v1823
      %v1849 = vmax.f32 %v1825, 0.0
      %v1850 = vmax.f32 %v1826, 0.0
      %v1851 = vmax.f32 %v1827, 0.0
      %v1852 = vmax.f32 %v1828, 0.0
      %v1853 = vmax.f32 %v1829, 0.0
      %v1854 = vmax.f32 %v1830, 0.0
      %v1855 = vmax.f32 %v1831, 0.0
      %v1856 = vmax.f32 %v1832, 0.0
      %v1857 = vmax.f32 %v1833, 0.0
      %v1858 = vmax.f32 %v1834, 0.0
      %v1859 = vmax.f32 %v1835, 0.0
      %v1860 = vmax.f32 %v1836, 0.0
      %v1861 = vmax.f32 %v1837, 0.0
      %v1862 = vmax.f32 %v1838, 0.0
      %v1863 = vmax.f32 %v1839, 0.0
      %v1864 = vmax.f32 %v1840, 0.0
      %v1865 = vmax.f32 %v1841, 0.0
      %v1866 = vmax.f32 %v1842, 0.0
      %v1867 = vmax.f32 %v1843, 0.0
      %v1868 = vmax.f32 %v1844, 0.0
      %v1869 = vmax.f32 %v1845, 0.0
      %v1870 = vmax.f32 %v1846, 0.0
      %v1871 = vmax.f32 %v1847, 0.0
      %v1872 = vmax.f32 %v1848, 0.0
      %v1897 = vrot.slane %v1849, 4
      %v1898 = vrot.slane %v1850, 4
      %v1899 = vrot.slane %v1851, 4
      %v1900 = vrot.slane %v1852, 4
      %v1901 = vrot.slane %v1853, 4
      %v1902 = vrot.slane %v1854, 4
      %v1903 = vrot.slane %v1855, 4
      %v1904 = vrot.slane %v1856, 4
      %v1905 = vrot.slane %v1857, 4
      %v1906 = vrot.slane %v1858, 4
      %v1907 = vrot.slane %v1859, 4
      %v1908 = vrot.slane %v1860, 4
      %v1909 = vrot.slane %v1861, 4
      %v1910 = vrot.slane %v1862, 4
      %v1911 = vrot.slane %v1863, 4
      %v1912 = vrot.slane %v1864, 4
      %v1913 = vrot.slane %v1865, 4
      %v1914 = vrot.slane %v1866, 4
      %v1915 = vrot.slane %v1867, 4
      %v1916 = vrot.slane %v1868, 4
      %v1917 = vrot.slane %v1869, 4
      %v1918 = vrot.slane %v1870, 4
      %v1919 = vrot.slane %v1871, 4
      %v1920 = vrot.slane %v1872, 4
      %1921 = vst [vmem:[#allocation1] ss:$2 sm:$0xff] %v1849
      %s1922 = scalar_lea.vmem [#allocation1], 1
      %1923 = vst [vmem:[%s1922] ss:$2 sm:$0xff] %v1897
      %s1924 = scalar_lea.vmem [#allocation1], 16
      %1925 = vst [vmem:[%s1924] ss:$2 sm:$0xff] %v1850
      %v1926 = vld.sshfl [vmem:[#allocation1] sm:$0xff pattern:$0x75316420]
      %v1927 = vld.sshfl [vmem:[#allocation1 + $0x10] sm:$0xff pattern:$0x75316420]
      %s1928 = scalar_lea.vmem [#allocation1], 32
      %1929 = vst [vmem:[%s1928] ss:$2 sm:$0xff] %v1898
      %s1930 = scalar_lea.vmem [#allocation1], 33
      %1931 = vst [vmem:[%s1930] ss:$2 sm:$0xff] %v1851
      %s1932 = scalar_lea.vmem [#allocation1], 48
      %1933 = vst [vmem:[%s1932] ss:$2 sm:$0xff] %v1899
      %v1934 = vld.sshfl [vmem:[#allocation1 + $0x20] sm:$0xff pattern:$0x75316420]
      %v1935 = vld.sshfl [vmem:[#allocation1 + $0x30] sm:$0xff pattern:$0x75316420]
      %1936 = vst [vmem:[#allocation1] ss:$2 sm:$0xff] %v1852
      %1937 = vst [vmem:[%s1922] ss:$2 sm:$0xff] %v1900
      %1938 = vst [vmem:[%s1924] ss:$2 sm:$0xff] %v1853
      %v1939 = vld.sshfl [vmem:[#allocation1] sm:$0xff pattern:$0x75316420]
      %v1940 = vld.sshfl [vmem:[#allocation1 + $0x10] sm:$0xff pattern:$0x75316420]
      %1941 = vst [vmem:[%s1928] ss:$2 sm:$0xff] %v1901
      %1942 = vst [vmem:[%s1930] ss:$2 sm:$0xff] %v1854
      %1943 = vst [vmem:[%s1932] ss:$2 sm:$0xff] %v1902
      %v1944 = vld.sshfl [vmem:[#allocation1 + $0x20] sm:$0xff pattern:$0x75316420]
      %v1945 = vld.sshfl [vmem:[#allocation1 + $0x30] sm:$0xff pattern:$0x75316420]
      %1946 = vst [vmem:[#allocation1] ss:$2 sm:$0xff] %v1855
      %1947 = vst [vmem:[%s1922] ss:$2 sm:$0xff] %v1903
      %1948 = vst [vmem:[%s1924] ss:$2 sm:$0xff] %v1856
      %v1949 = vld.sshfl [vmem:[#allocation1] sm:$0xff pattern:$0x75316420]
      %v1950 = vld.sshfl [vmem:[#allocation1 + $0x10] sm:$0xff pattern:$0x75316420]
      %1951 = vst [vmem:[%s1928] ss:$2 sm:$0xff] %v1904
      %1952 = vst [vmem:[%s1930] ss:$2 sm:$0xff] %v1857
      %1953 = vst [vmem:[%s1932] ss:$2 sm:$0xff] %v1905
      %v1954 = vld.sshfl [vmem:[#allocation1 + $0x20] sm:$0xff pattern:$0x75316420]
      %v1955 = vld.sshfl [vmem:[#allocation1 + $0x30] sm:$0xff pattern:$0x75316420]
      %1956 = vst [vmem:[#allocation1] ss:$2 sm:$0xff] %v1858
      %1957 = vst [vmem:[%s1922] ss:$2 sm:$0xff] %v1906
      %1958 = vst [vmem:[%s1924] ss:$2 sm:$0xff] %v1859
      %v1959 = vld.sshfl [vmem:[#allocation1] sm:$0xff pattern:$0x75316420]
      %v1960 = vld.sshfl [vmem:[#allocation1 + $0x10] sm:$0xff pattern:$0x75316420]
      %1961 = vst [vmem:[%s1928] ss:$2 sm:$0xff] %v1907
      %1962 = vst [vmem:[%s1930] ss:$2 sm:$0xff] %v1860
      %1963 = vst [vmem:[%s1932] ss:$2 sm:$0xff] %v1908
      %v1964 = vld.sshfl [vmem:[#allocation1 + $0x20] sm:$0xff pattern:$0x75316420]
      %v1965 = vld.sshfl [vmem:[#allocation1 + $0x30] sm:$0xff pattern:$0x75316420]
      %1966 = vst [vmem:[#allocation1] ss:$2 sm:$0xff] %v1861
      %1967 = vst [vmem:[%s1922] ss:$2 sm:$0xff] %v1909
      %1968 = vst [vmem:[%s1924] ss:$2 sm:$0xff] %v1862
      %v1969 = vld.sshfl [vmem:[#allocation1] sm:$0xff pattern:$0x75316420]
      %v1970 = vld.sshfl [vmem:[#allocation1 + $0x10] sm:$0xff pattern:$0x75316420]
      %1971 = vst [vmem:[%s1928] ss:$2 sm:$0xff] %v1910
      %1972 = vst [vmem:[%s1930] ss:$2 sm:$0xff] %v1863
      %1973 = vst [vmem:[%s1932] ss:$2 sm:$0xff] %v1911
      %v1974 = vld.sshfl [vmem:[#allocation1 + $0x20] sm:$0xff pattern:$0x75316420]
      %v1975 = vld.sshfl [vmem:[#allocation1 + $0x30] sm:$0xff pattern:$0x75316420]
      %1976 = vst [vmem:[#allocation1] ss:$2 sm:$0xff] %v1864
      %1977 = vst [vmem:[%s1922] ss:$2 sm:$0xff] %v1912
      %1978 = vst [vmem:[%s1924] ss:$2 sm:$0xff] %v1865
      %v1979 = vld.sshfl [vmem:[#allocation1] sm:$0xff pattern:$0x75316420]
      %v1980 = vld.sshfl [vmem:[#allocation1 + $0x10] sm:$0xff pattern:$0x75316420]
      %1981 = vst [vmem:[%s1928] ss:$2 sm:$0xff] %v1913
      %1982 = vst [vmem:[%s1930] ss:$2 sm:$0xff] %v1866
      %1983 = vst [vmem:[%s1932] ss:$2 sm:$0xff] %v1914
      %v1984 = vld.sshfl [vmem:[#allocation1 + $0x20] sm:$0xff pattern:$0x75316420]
      %v1985 = vld.sshfl [vmem:[#allocation1 + $0x30] sm:$0xff pattern:$0x75316420]
      %1986 = vst [vmem:[#allocation1] ss:$2 sm:$0xff] %v1867
      %1987 = vst [vmem:[%s1922] ss:$2 sm:$0xff] %v1915
      %1988 = vst [vmem:[%s1924] ss:$2 sm:$0xff] %v1868
      %v1989 = vld.sshfl [vmem:[#allocation1] sm:$0xff pattern:$0x75316420]
      %v1990 = vld.sshfl [vmem:[#allocation1 + $0x10] sm:$0xff pattern:$0x75316420]
      %1991 = vst [vmem:[%s1928] ss:$2 sm:$0xff] %v1916
      %1992 = vst [vmem:[%s1930] ss:$2 sm:$0xff] %v1869
      %1993 = vst [vmem:[%s1932] ss:$2 sm:$0xff] %v1917
      %v1994 = vld.sshfl [vmem:[#allocation1 + $0x20] sm:$0xff pattern:$0x75316420]
      %v1995 = vld.sshfl [vmem:[#allocation1 + $0x30] sm:$0xff pattern:$0x75316420]
      %1996 = vst [vmem:[#allocation1] ss:$2 sm:$0xff] %v1870
      %1997 = vst [vmem:[%s1922] ss:$2 sm:$0xff] %v1918
      %1998 = vst [vmem:[%s1924] ss:$2 sm:$0xff] %v1871
      %v1999 = vld.sshfl [vmem:[#allocation1] sm:$0xff pattern:$0x75316420]
      %v2000 = vld.sshfl [vmem:[#allocation1 + $0x10] sm:$0xff pattern:$0x75316420]
      %2001 = vst [vmem:[%s1928] ss:$2 sm:$0xff] %v1919
      %2002 = vst [vmem:[%s1930] ss:$2 sm:$0xff] %v1872
      %2003 = vst [vmem:[%s1932] ss:$2 sm:$0xff] %v1920
      %v2004 = vld.sshfl [vmem:[#allocation1 + $0x20] sm:$0xff pattern:$0x75316420]
      %v2005 = vld.sshfl [vmem:[#allocation1 + $0x30] sm:$0xff pattern:$0x75316420]
      %vm2038 = vcmask 130048
      %2039 = vst.msk [vmem:[#allocation3 + $0x4] sm:$0xff] %vm2038, %v1926
      %2040 = vst.msk [vmem:[#allocation3 + $0xc] sm:$0xf] %vm356, %v1927
      %2041 = vst.msk [vmem:[#allocation3 + $0x14] sm:$0xff] %vm2038, %v1934
      %2042 = vst.msk [vmem:[#allocation3 + $0x1c] sm:$0xf] %vm356, %v1935
      %2043 = vst.msk [vmem:[#allocation3 + $0x24] sm:$0xff] %vm2038, %v1939
      %2044 = vst.msk [vmem:[#allocation3 + $0x2c] sm:$0xf] %vm356, %v1940
      %2045 = vst.msk [vmem:[#allocation3 + $0x34] sm:$0xff] %vm2038, %v1944
      %2046 = vst.msk [vmem:[#allocation3 + $0x3c] sm:$0xf] %vm356, %v1945
      %2047 = vst.msk [vmem:[#allocation3 + $0x44] sm:$0xff] %vm2038, %v1949
      %2048 = vst.msk [vmem:[#allocation3 + $0x4c] sm:$0xf] %vm356, %v1950
      %2049 = vst.msk [vmem:[#allocation3 + $0x54] sm:$0xff] %vm2038, %v1954
      %2050 = vst.msk [vmem:[#allocation3 + $0x5c] sm:$0xf] %vm356, %v1955
      %2051 = vst.msk [vmem:[#allocation3 + $0x64] sm:$0xff] %vm2038, %v1959
      %2052 = vst.msk [vmem:[#allocation3 + $0x6c] sm:$0xf] %vm356, %v1960
      %2053 = vst.msk [vmem:[#allocation3 + $0x74] sm:$0xff] %vm2038, %v1964
      %2054 = vst.msk [vmem:[#allocation3 + $0x7c] sm:$0xf] %vm356, %v1965
      %2055 = vst.msk [vmem:[#allocation3 + $0x84] sm:$0xff] %vm2038, %v1969
      %2056 = vst.msk [vmem:[#allocation3 + $0x8c] sm:$0xf] %vm356, %v1970
      %2057 = vst.msk [vmem:[#allocation3 + $0x94] sm:$0xff] %vm2038, %v1974
      %2058 = vst.msk [vmem:[#allocation3 + $0x9c] sm:$0xf] %vm356, %v1975
      %2059 = vst.msk [vmem:[#allocation3 + $0xa4] sm:$0xff] %vm2038, %v1979
      %2060 = vst.msk [vmem:[#allocation3 + $0xac] sm:$0xf] %vm356, %v1980
      %2061 = vst.msk [vmem:[#allocation3 + $0xb4] sm:$0xff] %vm2038, %v1984
      %2062 = vst.msk [vmem:[#allocation3 + $0xbc] sm:$0xf] %vm356, %v1985
      %2063 = vst.msk [vmem:[#allocation3 + $0xc4] sm:$0xff] %vm2038, %v1989
      %2064 = vst.msk [vmem:[#allocation3 + $0xcc] sm:$0xf] %vm356, %v1990
      %2065 = vst.msk [vmem:[#allocation3 + $0xd4] sm:$0xff] %vm2038, %v1994
      %2066 = vst.msk [vmem:[#allocation3 + $0xdc] sm:$0xf] %vm356, %v1995
      %2067 = vst.msk [vmem:[#allocation3 + $0xe4] sm:$0xff] %vm2038, %v1999
      %2068 = vst.msk [vmem:[#allocation3 + $0xec] sm:$0xf] %vm356, %v2000
      %2069 = vst.msk [vmem:[#allocation3 + $0xf4] sm:$0xff] %vm2038, %v2004
      %2070 = vst.msk [vmem:[#allocation3 + $0xfc] sm:$0xf] %vm356, %v2005
      %v2071 = vld [vmem:[#allocation3] sm:$0xff]
      %v2072 = vld [vmem:[#allocation3 + $0x8] sm:$0xf]
      %v2073 = vld [vmem:[#allocation3 + $0x10] sm:$0xff]
      %v2074 = vld [vmem:[#allocation3 + $0x18] sm:$0xf]
      %v2075 = vld [vmem:[#allocation3 + $0x20] sm:$0xff]
      %v2076 = vld [vmem:[#allocation3 + $0x28] sm:$0xf]
      %v2077 = vld [vmem:[#allocation3 + $0x30] sm:$0xff]
      %v2078 = vld [vmem:[#allocation3 + $0x38] sm:$0xf]
      %v2079 = vld [vmem:[#allocation3 + $0x40] sm:$0xff]
      %v2080 = vld [vmem:[#allocation3 + $0x48] sm:$0xf]
      %v2081 = vld [vmem:[#allocation3 + $0x50] sm:$0xff]
      %v2082 = vld [vmem:[#allocation3 + $0x58] sm:$0xf]
      %v2083 = vld [vmem:[#allocation3 + $0x60] sm:$0xff]
      %v2084 = vld [vmem:[#allocation3 + $0x68] sm:$0xf]
      %v2085 = vld [vmem:[#allocation3 + $0x70] sm:$0xff]
      %v2086 = vld [vmem:[#allocation3 + $0x78] sm:$0xf]
      %v2087 = vld [vmem:[#allocation3 + $0x80] sm:$0xff]
      %v2088 = vld [vmem:[#allocation3 + $0x88] sm:$0xf]
      %v2089 = vld [vmem:[#allocation3 + $0x90] sm:$0xff]
      %v2090 = vld [vmem:[#allocation3 + $0x98] sm:$0xf]
      %v2091 = vld [vmem:[#allocation3 + $0xa0] sm:$0xff]
      %v2092 = vld [vmem:[#allocation3 + $0xa8] sm:$0xf]
      %v2093 = vld [vmem:[#allocation3 + $0xb0] sm:$0xff]
      %v2094 = vld [vmem:[#allocation3 + $0xb8] sm:$0xf]
      %v2095 = vld [vmem:[#allocation3 + $0xc0] sm:$0xff]
      %v2096 = vld [vmem:[#allocation3 + $0xc8] sm:$0xf]
      %v2097 = vld [vmem:[#allocation3 + $0xd0] sm:$0xff]
      %v2098 = vld [vmem:[#allocation3 + $0xd8] sm:$0xf]
      %v2099 = vld [vmem:[#allocation3 + $0xe0] sm:$0xff]
      %v2100 = vld [vmem:[#allocation3 + $0xe8] sm:$0xf]
      %v2101 = vld [vmem:[#allocation3 + $0xf0] sm:$0xff]
      %v2102 = vld [vmem:[#allocation3 + $0xf8] sm:$0xf]
      %v2135 = vrot.slane %v2071, 4
      %v2136 = vrot.slane %v2073, 4
      %v2137 = vrot.slane %v2075, 4
      %v2138 = vrot.slane %v2077, 4
      %v2139 = vrot.slane %v2079, 4
      %v2140 = vrot.slane %v2081, 4
      %v2141 = vrot.slane %v2083, 4
      %v2142 = vrot.slane %v2085, 4
      %v2143 = vrot.slane %v2087, 4
      %v2144 = vrot.slane %v2089, 4
      %v2145 = vrot.slane %v2091, 4
      %v2146 = vrot.slane %v2093, 4
      %v2147 = vrot.slane %v2095, 4
      %v2148 = vrot.slane %v2097, 4
      %v2149 = vrot.slane %v2099, 4
      %v2150 = vrot.slane %v2101, 4
      %v2151 = vld [vmem:[%s5] sm:$0xff]
      %v2152 = vld [vmem:[%s5 + $0x8] sm:$0xff]
      %v2153 = vld [vmem:[#allocation3 + $0x4] sm:$0xff]
      %v2154 = vld [vmem:[#allocation3 + $0xc] sm:$0xf]
      %v2155 = vld [vmem:[#allocation3 + $0x14] sm:$0xff]
      %v2156 = vld [vmem:[#allocation3 + $0x1c] sm:$0xf]
      %v2157 = vld [vmem:[#allocation3 + $0x24] sm:$0xff]
      %v2158 = vld [vmem:[#allocation3 + $0x2c] sm:$0xf]
      %v2159 = vld [vmem:[#allocation3 + $0x34] sm:$0xff]
      %v2160 = vld [vmem:[#allocation3 + $0x3c] sm:$0xf]
      %v2161 = vld [vmem:[#allocation3 + $0x44] sm:$0xff]
      %v2162 = vld [vmem:[#allocation3 + $0x4c] sm:$0xf]
      %v2163 = vld [vmem:[#allocation3 + $0x54] sm:$0xff]
      %v2164 = vld [vmem:[#allocation3 + $0x5c] sm:$0xf]
      %v2165 = vld [vmem:[#allocation3 + $0x64] sm:$0xff]
      %v2166 = vld [vmem:[#allocation3 + $0x6c] sm:$0xf]
      %v2167 = vld [vmem:[#allocation3 + $0x74] sm:$0xff]
      %v2168 = vld [vmem:[#allocation3 + $0x7c] sm:$0xf]
      %v2169 = vld [vmem:[#allocation3 + $0x84] sm:$0xff]
      %v2170 = vld [vmem:[#allocation3 + $0x8c] sm:$0xf]
      %v2171 = vld [vmem:[#allocation3 + $0x94] sm:$0xff]
      %v2172 = vld [vmem:[#allocation3 + $0x9c] sm:$0xf]
      %v2173 = vld [vmem:[#allocation3 + $0xa4] sm:$0xff]
      %v2174 = vld [vmem:[#allocation3 + $0xac] sm:$0xf]
      %v2175 = vld [vmem:[#allocation3 + $0xb4] sm:$0xff]
      %v2176 = vld [vmem:[#allocation3 + $0xbc] sm:$0xf]
      %v2177 = vld [vmem:[#allocation3 + $0xc4] sm:$0xff]
      %v2178 = vld [vmem:[#allocation3 + $0xcc] sm:$0xf]
      %v2179 = vld [vmem:[#allocation3 + $0xd4] sm:$0xff]
      %v2180 = vld [vmem:[#allocation3 + $0xdc] sm:$0xf]
      %v2181 = vld [vmem:[#allocation3 + $0xe4] sm:$0xff]
      %v2182 = vld [vmem:[#allocation3 + $0xec] sm:$0xf]
      %v2183 = vld [vmem:[#allocation3 + $0xf4] sm:$0xff]
      %v2184 = vld [vmem:[#allocation3 + $0xfc] sm:$0xf]
      %v2217 = vrot.slane %v2153, 4
      %v2218 = vrot.slane %v2155, 4
      %v2219 = vrot.slane %v2157, 4
      %v2220 = vrot.slane %v2159, 4
      %v2221 = vrot.slane %v2161, 4
      %v2222 = vrot.slane %v2163, 4
      %v2223 = vrot.slane %v2165, 4
      %v2224 = vrot.slane %v2167, 4
      %v2225 = vrot.slane %v2169, 4
      %v2226 = vrot.slane %v2171, 4
      %v2227 = vrot.slane %v2173, 4
      %v2228 = vrot.slane %v2175, 4
      %v2229 = vrot.slane %v2177, 4
      %v2230 = vrot.slane %v2179, 4
      %v2231 = vrot.slane %v2181, 4
      %v2232 = vrot.slane %v2183, 4
      %s2233 = scalar_lea.vmem %s5, 16
      %v2234 = vld [vmem:[%s2233] sm:$0xff]
      %v2235 = vld [vmem:[%s2233 + $0x8] sm:$0xff]
      %2236 = vst [vmem:[#allocation1] ss:$2 sm:$0xff] %v2153
      %s2237 = scalar_lea.vmem [#allocation1], 1
      %2238 = vst [vmem:[%s2237] ss:$2 sm:$0xff] %v2217
      %s2239 = scalar_lea.vmem [#allocation1], 16
      %2240 = vst [vmem:[%s2239] ss:$2 sm:$0xff] %v2154
      %s2241 = scalar_lea.vmem [#allocation1], 17
      %2242 = vst [vmem:[%s2241] ss:$2 sm:$0xff] %v2155
      %s2243 = scalar_lea.vmem [#allocation1], 32
      %2244 = vst [vmem:[%s2243] ss:$2 sm:$0xff] %v2218
      %s2245 = scalar_lea.vmem [#allocation1], 33
      %2246 = vst [vmem:[%s2245] ss:$2 sm:$0xff] %v2156
      %s2247 = scalar_lea.vmem [#allocation1], 48
      %2248 = vst [vmem:[%s2247] ss:$2 sm:$0xff] %v2157
      %s2249 = scalar_lea.vmem [#allocation1], 49
      %2250 = vst [vmem:[%s2249] ss:$2 sm:$0xff] %v2219
      %v2251 = vld.sshfl [vmem:[#allocation1] sm:$0xff pattern:$0x75316420]
      %v2252 = vld.sshfl [vmem:[#allocation1 + $0x10] sm:$0xff pattern:$0x75316420]
      %v2253 = vld.sshfl [vmem:[#allocation1 + $0x20] sm:$0xff pattern:$0x75316420]
      %v2254 = vld.sshfl [vmem:[#allocation1 + $0x30] sm:$0xff pattern:$0x75316420]
      %2255 = vst [vmem:[#allocation1] ss:$2 sm:$0xff] %v2158
      %2256 = vst [vmem:[%s2237] ss:$2 sm:$0xff] %v2159
      %2257 = vst [vmem:[%s2239] ss:$2 sm:$0xff] %v2220
      %2258 = vst [vmem:[%s2241] ss:$2 sm:$0xff] %v2160
      %2259 = vst [vmem:[%s2243] ss:$2 sm:$0xff] %v2161
      %2260 = vst [vmem:[%s2245] ss:$2 sm:$0xff] %v2221
      %2261 = vst [vmem:[%s2247] ss:$2 sm:$0xff] %v2162
      %2262 = vst [vmem:[%s2249] ss:$2 sm:$0xff] %v2163
      %v2263 = vld.sshfl [vmem:[#allocation1] sm:$0xff pattern:$0x75316420]
      %v2264 = vld.sshfl [vmem:[#allocation1 + $0x10] sm:$0xff pattern:$0x75316420]
      %v2265 = vld.sshfl [vmem:[#allocation1 + $0x20] sm:$0xff pattern:$0x75316420]
      %v2266 = vld.sshfl [vmem:[#allocation1 + $0x30] sm:$0xff pattern:$0x75316420]
      %2267 = vst [vmem:[#allocation1] ss:$2 sm:$0xff] %v2222
      %2268 = vst [vmem:[%s2237] ss:$2 sm:$0xff] %v2164
      %2269 = vst [vmem:[%s2239] ss:$2 sm:$0xff] %v2165
      %2270 = vst [vmem:[%s2241] ss:$2 sm:$0xff] %v2223
      %2271 = vst [vmem:[%s2243] ss:$2 sm:$0xff] %v2166
      %2272 = vst [vmem:[%s2245] ss:$2 sm:$0xff] %v2167
      %2273 = vst [vmem:[%s2247] ss:$2 sm:$0xff] %v2224
      %2274 = vst [vmem:[%s2249] ss:$2 sm:$0xff] %v2168
      %v2275 = vld.sshfl [vmem:[#allocation1] sm:$0xff pattern:$0x75316420]
      %v2276 = vld.sshfl [vmem:[#allocation1 + $0x10] sm:$0xff pattern:$0x75316420]
      %v2277 = vld.sshfl [vmem:[#allocation1 + $0x20] sm:$0xff pattern:$0x75316420]
      %v2278 = vld.sshfl [vmem:[#allocation1 + $0x30] sm:$0xff pattern:$0x75316420]
      %2279 = vst [vmem:[#allocation1] ss:$2 sm:$0xff] %v2169
      %2280 = vst [vmem:[%s2237] ss:$2 sm:$0xff] %v2225
      %2281 = vst [vmem:[%s2239] ss:$2 sm:$0xff] %v2170
      %2282 = vst [vmem:[%s2241] ss:$2 sm:$0xff] %v2171
      %2283 = vst [vmem:[%s2243] ss:$2 sm:$0xff] %v2226
      %2284 = vst [vmem:[%s2245] ss:$2 sm:$0xff] %v2172
      %2285 = vst [vmem:[%s2247] ss:$2 sm:$0xff] %v2173
      %2286 = vst [vmem:[%s2249] ss:$2 sm:$0xff] %v2227
      %v2287 = vld.sshfl [vmem:[#allocation1] sm:$0xff pattern:$0x75316420]
      %v2288 = vld.sshfl [vmem:[#allocation1 + $0x10] sm:$0xff pattern:$0x75316420]
      %v2289 = vld.sshfl [vmem:[#allocation1 + $0x20] sm:$0xff pattern:$0x75316420]
      %v2290 = vld.sshfl [vmem:[#allocation1 + $0x30] sm:$0xff pattern:$0x75316420]
      %2291 = vst [vmem:[#allocation1] ss:$2 sm:$0xff] %v2174
      %2292 = vst [vmem:[%s2237] ss:$2 sm:$0xff] %v2175
      %2293 = vst [vmem:[%s2239] ss:$2 sm:$0xff] %v2228
      %2294 = vst [vmem:[%s2241] ss:$2 sm:$0xff] %v2176
      %2295 = vst [vmem:[%s2243] ss:$2 sm:$0xff] %v2177
      %2296 = vst [vmem:[%s2245] ss:$2 sm:$0xff] %v2229
      %2297 = vst [vmem:[%s2247] ss:$2 sm:$0xff] %v2178
      %2298 = vst [vmem:[%s2249] ss:$2 sm:$0xff] %v2179
      %v2299 = vld.sshfl [vmem:[#allocation1] sm:$0xff pattern:$0x75316420]
      %v2300 = vld.sshfl [vmem:[#allocation1 + $0x10] sm:$0xff pattern:$0x75316420]
      %v2301 = vld.sshfl [vmem:[#allocation1 + $0x20] sm:$0xff pattern:$0x75316420]
      %v2302 = vld.sshfl [vmem:[#allocation1 + $0x30] sm:$0xff pattern:$0x75316420]
      %2303 = vst [vmem:[#allocation1] ss:$2 sm:$0xff] %v2230
      %2304 = vst [vmem:[%s2237] ss:$2 sm:$0xff] %v2180
      %2305 = vst [vmem:[%s2239] ss:$2 sm:$0xff] %v2181
      %2306 = vst [vmem:[%s2241] ss:$2 sm:$0xff] %v2231
      %2307 = vst [vmem:[%s2243] ss:$2 sm:$0xff] %v2182
      %2308 = vst [vmem:[%s2245] ss:$2 sm:$0xff] %v2183
      %2309 = vst [vmem:[%s2247] ss:$2 sm:$0xff] %v2232
      %2310 = vst [vmem:[%s2249] ss:$2 sm:$0xff] %v2184
      %v2311 = vld.sshfl [vmem:[#allocation1] sm:$0xff pattern:$0x75316420]
      %v2312 = vld.sshfl [vmem:[#allocation1 + $0x10] sm:$0xff pattern:$0x75316420]
      %v2313 = vld.sshfl [vmem:[#allocation1 + $0x20] sm:$0xff pattern:$0x75316420]
      %v2314 = vld.sshfl [vmem:[#allocation1 + $0x30] sm:$0xff pattern:$0x75316420]
      %v2315 = vsel %vm2038, %v2251, 0
      %v2317 = vsel %vm2038, %v2252, 0
      %v2319 = vsel %vm2038, %v2253, 0
      %v2321 = vsel %vm2038, %v2254, 0
      %v2323 = vsel %vm2038, %v2263, 0
      %v2325 = vsel %vm2038, %v2264, 0
      %v2327 = vsel %vm2038, %v2265, 0
      %v2329 = vsel %vm2038, %v2266, 0
      %v2331 = vsel %vm2038, %v2275, 0
      %v2333 = vsel %vm2038, %v2276, 0
      %v2335 = vsel %vm2038, %v2277, 0
      %v2337 = vsel %vm2038, %v2278, 0
      %v2339 = vsel %vm2038, %v2287, 0
      %v2341 = vsel %vm2038, %v2288, 0
      %v2343 = vsel %vm2038, %v2289, 0
      %v2345 = vsel %vm2038, %v2290, 0
      %v2347 = vsel %vm2038, %v2299, 0
      %v2349 = vsel %vm2038, %v2300, 0
      %v2351 = vsel %vm2038, %v2301, 0
      %v2353 = vsel %vm2038, %v2302, 0
      %v2355 = vsel %vm2038, %v2311, 0
      %v2357 = vsel %vm2038, %v2312, 0
      %v2359 = vsel %vm2038, %v2313, 0
      %v2361 = vsel %vm2038, %v2314, 0
      %2363 = vmatpush.msra.mxu0 0.0
      %2364 = vmatpush.msra.mxu0 0.0
      %2365 = vmatpush.msra.mxu0 0.0
      %2366 = vmatpush.msra.mxu0 0.0
      %2367 = vmatpush.msra.mxu0 0.0
      %2368 = vmatpush.msra.mxu0 0.0
      %2369 = vmatpush.msra.mxu0 0.0
      %2370 = vmatpush.msra.mxu0 0.0
      %2371 = vmatpush.msra.mxu0 0.0
      %2372 = vmatpush.msra.mxu0 0.0
      %2373 = vmatpush.msra.mxu0 0.0
      %2374 = vmatpush.msra.mxu0 0.0
      %2375 = vmatpush.msra.mxu0 0.0
      %2376 = vmatpush.msra.mxu0 0.0
      %2377 = vmatpush.msra.mxu0 %v2235
      %2378 = vmatpush.msra.mxu0 %v2234
      %2379 = vmatmul.f32.gmra.mxu0 %v2315
      %v2380 = vpop.f32.mrf.mxu0
      %v2381 = vadd.f32 0.0, %v2380
      %2382 = vmatmul.f32.gmra.mxu0 %v2317
      %v2383 = vpop.f32.mrf.mxu0
      %v2384 = vadd.f32 0.0, %v2383
      %2385 = vmatmul.f32.gmra.mxu0 %v2319
      %v2386 = vpop.f32.mrf.mxu0
      %v2387 = vadd.f32 0.0, %v2386
      %2388 = vmatmul.f32.gmra.mxu0 %v2321
      %v2389 = vpop.f32.mrf.mxu0
      %v2390 = vadd.f32 0.0, %v2389
      %2391 = vmatmul.f32.gmra.mxu0 %v2323
      %v2392 = vpop.f32.mrf.mxu0
      %v2393 = vadd.f32 0.0, %v2392
      %2394 = vmatmul.f32.gmra.mxu0 %v2325
      %v2395 = vpop.f32.mrf.mxu0
      %v2396 = vadd.f32 0.0, %v2395
      %2397 = vmatmul.f32.gmra.mxu0 %v2327
      %v2398 = vpop.f32.mrf.mxu0
      %v2399 = vadd.f32 0.0, %v2398
      %2400 = vmatmul.f32.gmra.mxu0 %v2329
      %v2401 = vpop.f32.mrf.mxu0
      %v2402 = vadd.f32 0.0, %v2401
      %2403 = vmatmul.f32.gmra.mxu0 %v2331
      %v2404 = vpop.f32.mrf.mxu0
      %v2405 = vadd.f32 0.0, %v2404
      %2406 = vmatmul.f32.gmra.mxu0 %v2333
      %v2407 = vpop.f32.mrf.mxu0
      %v2408 = vadd.f32 0.0, %v2407
      %2409 = vmatmul.f32.gmra.mxu0 %v2335
      %v2410 = vpop.f32.mrf.mxu0
      %v2411 = vadd.f32 0.0, %v2410
      %2412 = vmatmul.f32.gmra.mxu0 %v2337
      %v2413 = vpop.f32.mrf.mxu0
      %v2414 = vadd.f32 0.0, %v2413
      %2415 = vmatmul.f32.gmra.mxu0 %v2339
      %v2416 = vpop.f32.mrf.mxu0
      %v2417 = vadd.f32 0.0, %v2416
      %2418 = vmatmul.f32.gmra.mxu0 %v2341
      %v2419 = vpop.f32.mrf.mxu0
      %v2420 = vadd.f32 0.0, %v2419
      %2421 = vmatmul.f32.gmra.mxu0 %v2343
      %v2422 = vpop.f32.mrf.mxu0
      %v2423 = vadd.f32 0.0, %v2422
      %2424 = vmatmul.f32.gmra.mxu0 %v2345
      %v2425 = vpop.f32.mrf.mxu0
      %v2426 = vadd.f32 0.0, %v2425
      %2427 = vmatmul.f32.gmra.mxu0 %v2347
      %v2428 = vpop.f32.mrf.mxu0
      %v2429 = vadd.f32 0.0, %v2428
      %2430 = vmatmul.f32.gmra.mxu0 %v2349
      %v2431 = vpop.f32.mrf.mxu0
      %v2432 = vadd.f32 0.0, %v2431
      %2433 = vmatmul.f32.gmra.mxu0 %v2351
      %v2434 = vpop.f32.mrf.mxu0
      %v2435 = vadd.f32 0.0, %v2434
      %2436 = vmatmul.f32.gmra.mxu0 %v2353
      %v2437 = vpop.f32.mrf.mxu0
      %v2438 = vadd.f32 0.0, %v2437
      %2439 = vmatmul.f32.gmra.mxu0 %v2355
      %v2440 = vpop.f32.mrf.mxu0
      %v2441 = vadd.f32 0.0, %v2440
      %2442 = vmatmul.f32.gmra.mxu0 %v2357
      %v2443 = vpop.f32.mrf.mxu0
      %v2444 = vadd.f32 0.0, %v2443
      %2445 = vmatmul.f32.gmra.mxu0 %v2359
      %v2446 = vpop.f32.mrf.mxu0
      %v2447 = vadd.f32 0.0, %v2446
      %2448 = vmatmul.f32.gmra.mxu0 %v2361
      %v2449 = vpop.f32.mrf.mxu0
      %v2450 = vadd.f32 0.0, %v2449
      %2451 = vdwg.mxu0
      %2452 = vst [vmem:[#allocation1] ss:$2 sm:$0xff] %v2071
      %s2453 = scalar_lea.vmem [#allocation1], 1
      %2454 = vst [vmem:[%s2453] ss:$2 sm:$0xff] %v2135
      %s2455 = scalar_lea.vmem [#allocation1], 16
      %2456 = vst [vmem:[%s2455] ss:$2 sm:$0xff] %v2072
      %s2457 = scalar_lea.vmem [#allocation1], 17
      %2458 = vst [vmem:[%s2457] ss:$2 sm:$0xff] %v2073
      %s2459 = scalar_lea.vmem [#allocation1], 32
      %2460 = vst [vmem:[%s2459] ss:$2 sm:$0xff] %v2136
      %s2461 = scalar_lea.vmem [#allocation1], 33
      %2462 = vst [vmem:[%s2461] ss:$2 sm:$0xff] %v2074
      %s2463 = scalar_lea.vmem [#allocation1], 48
      %2464 = vst [vmem:[%s2463] ss:$2 sm:$0xff] %v2075
      %s2465 = scalar_lea.vmem [#allocation1], 49
      %2466 = vst [vmem:[%s2465] ss:$2 sm:$0xff] %v2137
      %v2467 = vld.sshfl [vmem:[#allocation1] sm:$0xff pattern:$0x75316420]
      %v2468 = vld.sshfl [vmem:[#allocation1 + $0x10] sm:$0xff pattern:$0x75316420]
      %v2469 = vld.sshfl [vmem:[#allocation1 + $0x20] sm:$0xff pattern:$0x75316420]
      %v2470 = vld.sshfl [vmem:[#allocation1 + $0x30] sm:$0xff pattern:$0x75316420]
      %2471 = vst [vmem:[#allocation1] ss:$2 sm:$0xff] %v2076
      %2472 = vst [vmem:[%s2453] ss:$2 sm:$0xff] %v2077
      %2473 = vst [vmem:[%s2455] ss:$2 sm:$0xff] %v2138
      %2474 = vst [vmem:[%s2457] ss:$2 sm:$0xff] %v2078
      %2475 = vst [vmem:[%s2459] ss:$2 sm:$0xff] %v2079
      %2476 = vst [vmem:[%s2461] ss:$2 sm:$0xff] %v2139
      %2477 = vst [vmem:[%s2463] ss:$2 sm:$0xff] %v2080
      %2478 = vst [vmem:[%s2465] ss:$2 sm:$0xff] %v2081
      %v2479 = vld.sshfl [vmem:[#allocation1] sm:$0xff pattern:$0x75316420]
      %v2480 = vld.sshfl [vmem:[#allocation1 + $0x10] sm:$0xff pattern:$0x75316420]
      %v2481 = vld.sshfl [vmem:[#allocation1 + $0x20] sm:$0xff pattern:$0x75316420]
      %v2482 = vld.sshfl [vmem:[#allocation1 + $0x30] sm:$0xff pattern:$0x75316420]
      %2483 = vst [vmem:[#allocation1] ss:$2 sm:$0xff] %v2140
      %2484 = vst [vmem:[%s2453] ss:$2 sm:$0xff] %v2082
      %2485 = vst [vmem:[%s2455] ss:$2 sm:$0xff] %v2083
      %2486 = vst [vmem:[%s2457] ss:$2 sm:$0xff] %v2141
      %2487 = vst [vmem:[%s2459] ss:$2 sm:$0xff] %v2084
      %2488 = vst [vmem:[%s2461] ss:$2 sm:$0xff] %v2085
      %2489 = vst [vmem:[%s2463] ss:$2 sm:$0xff] %v2142
      %2490 = vst [vmem:[%s2465] ss:$2 sm:$0xff] %v2086
      %v2491 = vld.sshfl [vmem:[#allocation1] sm:$0xff pattern:$0x75316420]
      %v2492 = vld.sshfl [vmem:[#allocation1 + $0x10] sm:$0xff pattern:$0x75316420]
      %v2493 = vld.sshfl [vmem:[#allocation1 + $0x20] sm:$0xff pattern:$0x75316420]
      %v2494 = vld.sshfl [vmem:[#allocation1 + $0x30] sm:$0xff pattern:$0x75316420]
      %2495 = vst [vmem:[#allocation1] ss:$2 sm:$0xff] %v2087
      %2496 = vst [vmem:[%s2453] ss:$2 sm:$0xff] %v2143
      %2497 = vst [vmem:[%s2455] ss:$2 sm:$0xff] %v2088
      %2498 = vst [vmem:[%s2457] ss:$2 sm:$0xff] %v2089
      %2499 = vst [vmem:[%s2459] ss:$2 sm:$0xff] %v2144
      %2500 = vst [vmem:[%s2461] ss:$2 sm:$0xff] %v2090
      %2501 = vst [vmem:[%s2463] ss:$2 sm:$0xff] %v2091
      %2502 = vst [vmem:[%s2465] ss:$2 sm:$0xff] %v2145
      %v2503 = vld.sshfl [vmem:[#allocation1] sm:$0xff pattern:$0x75316420]
      %v2504 = vld.sshfl [vmem:[#allocation1 + $0x10] sm:$0xff pattern:$0x75316420]
      %v2505 = vld.sshfl [vmem:[#allocation1 + $0x20] sm:$0xff pattern:$0x75316420]
      %v2506 = vld.sshfl [vmem:[#allocation1 + $0x30] sm:$0xff pattern:$0x75316420]
      %2507 = vst [vmem:[#allocation1] ss:$2 sm:$0xff] %v2092
      %2508 = vst [vmem:[%s2453] ss:$2 sm:$0xff] %v2093
      %2509 = vst [vmem:[%s2455] ss:$2 sm:$0xff] %v2146
      %2510 = vst [vmem:[%s2457] ss:$2 sm:$0xff] %v2094
      %2511 = vst [vmem:[%s2459] ss:$2 sm:$0xff] %v2095
      %2512 = vst [vmem:[%s2461] ss:$2 sm:$0xff] %v2147
      %2513 = vst [vmem:[%s2463] ss:$2 sm:$0xff] %v2096
      %2514 = vst [vmem:[%s2465] ss:$2 sm:$0xff] %v2097
      %v2515 = vld.sshfl [vmem:[#allocation1] sm:$0xff pattern:$0x75316420]
      %v2516 = vld.sshfl [vmem:[#allocation1 + $0x10] sm:$0xff pattern:$0x75316420]
      %v2517 = vld.sshfl [vmem:[#allocation1 + $0x20] sm:$0xff pattern:$0x75316420]
      %v2518 = vld.sshfl [vmem:[#allocation1 + $0x30] sm:$0xff pattern:$0x75316420]
      %2519 = vst [vmem:[#allocation1] ss:$2 sm:$0xff] %v2148
      %2520 = vst [vmem:[%s2453] ss:$2 sm:$0xff] %v2098
      %2521 = vst [vmem:[%s2455] ss:$2 sm:$0xff] %v2099
      %2522 = vst [vmem:[%s2457] ss:$2 sm:$0xff] %v2149
      %2523 = vst [vmem:[%s2459] ss:$2 sm:$0xff] %v2100
      %2524 = vst [vmem:[%s2461] ss:$2 sm:$0xff] %v2101
      %2525 = vst [vmem:[%s2463] ss:$2 sm:$0xff] %v2150
      %2526 = vst [vmem:[%s2465] ss:$2 sm:$0xff] %v2102
      %v2527 = vld.sshfl [vmem:[#allocation1] sm:$0xff pattern:$0x75316420]
      %v2528 = vld.sshfl [vmem:[#allocation1 + $0x10] sm:$0xff pattern:$0x75316420]
      %v2529 = vld.sshfl [vmem:[#allocation1 + $0x20] sm:$0xff pattern:$0x75316420]
      %v2530 = vld.sshfl [vmem:[#allocation1 + $0x30] sm:$0xff pattern:$0x75316420]
      %v2531 = vsel %vm2038, %v2467, 0
      %v2533 = vsel %vm2038, %v2468, 0
      %v2535 = vsel %vm2038, %v2469, 0
      %v2537 = vsel %vm2038, %v2470, 0
      %v2539 = vsel %vm2038, %v2479, 0
      %v2541 = vsel %vm2038, %v2480, 0
      %v2543 = vsel %vm2038, %v2481, 0
      %v2545 = vsel %vm2038, %v2482, 0
      %v2547 = vsel %vm2038, %v2491, 0
      %v2549 = vsel %vm2038, %v2492, 0
      %v2551 = vsel %vm2038, %v2493, 0
      %v2553 = vsel %vm2038, %v2494, 0
      %v2555 = vsel %vm2038, %v2503, 0
      %v2557 = vsel %vm2038, %v2504, 0
      %v2559 = vsel %vm2038, %v2505, 0
      %v2561 = vsel %vm2038, %v2506, 0
      %v2563 = vsel %vm2038, %v2515, 0
      %v2565 = vsel %vm2038, %v2516, 0
      %v2567 = vsel %vm2038, %v2517, 0
      %v2569 = vsel %vm2038, %v2518, 0
      %v2571 = vsel %vm2038, %v2527, 0
      %v2573 = vsel %vm2038, %v2528, 0
      %v2575 = vsel %vm2038, %v2529, 0
      %v2577 = vsel %vm2038, %v2530, 0
      %2579 = vmatpush.msra.mxu0 0.0
      %2580 = vmatpush.msra.mxu0 0.0
      %2581 = vmatpush.msra.mxu0 0.0
      %2582 = vmatpush.msra.mxu0 0.0
      %2583 = vmatpush.msra.mxu0 0.0
      %2584 = vmatpush.msra.mxu0 0.0
      %2585 = vmatpush.msra.mxu0 0.0
      %2586 = vmatpush.msra.mxu0 0.0
      %2587 = vmatpush.msra.mxu0 0.0
      %2588 = vmatpush.msra.mxu0 0.0
      %2589 = vmatpush.msra.mxu0 0.0
      %2590 = vmatpush.msra.mxu0 0.0
      %2591 = vmatpush.msra.mxu0 0.0
      %2592 = vmatpush.msra.mxu0 0.0
      %2593 = vmatpush.msra.mxu0 %v2152
      %2594 = vmatpush.msra.mxu0 %v2151
      %2595 = vmatmul.f32.gmra.mxu0 %v2531
      %v2596 = vpop.f32.mrf.mxu0
      %v2597 = vadd.f32 %v2381, %v2596
      %2598 = vmatmul.f32.gmra.mxu0 %v2533
      %v2599 = vpop.f32.mrf.mxu0
      %v2600 = vadd.f32 %v2384, %v2599
      %2601 = vmatmul.f32.gmra.mxu0 %v2535
      %v2602 = vpop.f32.mrf.mxu0
      %v2603 = vadd.f32 %v2387, %v2602
      %2604 = vmatmul.f32.gmra.mxu0 %v2537
      %v2605 = vpop.f32.mrf.mxu0
      %v2606 = vadd.f32 %v2390, %v2605
      %2607 = vmatmul.f32.gmra.mxu0 %v2539
      %v2608 = vpop.f32.mrf.mxu0
      %v2609 = vadd.f32 %v2393, %v2608
      %2610 = vmatmul.f32.gmra.mxu0 %v2541
      %v2611 = vpop.f32.mrf.mxu0
      %v2612 = vadd.f32 %v2396, %v2611
      %2613 = vmatmul.f32.gmra.mxu0 %v2543
      %v2614 = vpop.f32.mrf.mxu0
      %v2615 = vadd.f32 %v2399, %v2614
      %2616 = vmatmul.f32.gmra.mxu0 %v2545
      %v2617 = vpop.f32.mrf.mxu0
      %v2618 = vadd.f32 %v2402, %v2617
      %2619 = vmatmul.f32.gmra.mxu0 %v2547
      %v2620 = vpop.f32.mrf.mxu0
      %v2621 = vadd.f32 %v2405, %v2620
      %2622 = vmatmul.f32.gmra.mxu0 %v2549
      %v2623 = vpop.f32.mrf.mxu0
      %v2624 = vadd.f32 %v2408, %v2623
      %2625 = vmatmul.f32.gmra.mxu0 %v2551
      %v2626 = vpop.f32.mrf.mxu0
      %v2627 = vadd.f32 %v2411, %v2626
      %2628 = vmatmul.f32.gmra.mxu0 %v2553
      %v2629 = vpop.f32.mrf.mxu0
      %v2630 = vadd.f32 %v2414, %v2629
      %2631 = vmatmul.f32.gmra.mxu0 %v2555
      %v2632 = vpop.f32.mrf.mxu0
      %v2633 = vadd.f32 %v2417, %v2632
      %2634 = vmatmul.f32.gmra.mxu0 %v2557
      %v2635 = vpop.f32.mrf.mxu0
      %v2636 = vadd.f32 %v2420, %v2635
      %2637 = vmatmul.f32.gmra.mxu0 %v2559
      %v2638 = vpop.f32.mrf.mxu0
      %v2639 = vadd.f32 %v2423, %v2638
      %2640 = vmatmul.f32.gmra.mxu0 %v2561
      %v2641 = vpop.f32.mrf.mxu0
      %v2642 = vadd.f32 %v2426, %v2641
      %2643 = vmatmul.f32.gmra.mxu0 %v2563
      %v2644 = vpop.f32.mrf.mxu0
      %v2645 = vadd.f32 %v2429, %v2644
      %2646 = vmatmul.f32.gmra.mxu0 %v2565
      %v2647 = vpop.f32.mrf.mxu0
      %v2648 = vadd.f32 %v2432, %v2647
      %2649 = vmatmul.f32.gmra.mxu0 %v2567
      %v2650 = vpop.f32.mrf.mxu0
      %v2651 = vadd.f32 %v2435, %v2650
      %2652 = vmatmul.f32.gmra.mxu0 %v2569
      %v2653 = vpop.f32.mrf.mxu0
      %v2654 = vadd.f32 %v2438, %v2653
      %2655 = vmatmul.f32.gmra.mxu0 %v2571
      %v2656 = vpop.f32.mrf.mxu0
      %v2657 = vadd.f32 %v2441, %v2656
      %2658 = vmatmul.f32.gmra.mxu0 %v2573
      %v2659 = vpop.f32.mrf.mxu0
      %v2660 = vadd.f32 %v2444, %v2659
      %2661 = vmatmul.f32.gmra.mxu0 %v2575
      %v2662 = vpop.f32.mrf.mxu0
      %v2663 = vadd.f32 %v2447, %v2662
      %2664 = vmatmul.f32.gmra.mxu0 %v2577
      %v2665 = vpop.f32.mrf.mxu0
      %v2666 = vadd.f32 %v2450, %v2665
      %2667 = vdwg.mxu0
      %v2668 = vld [vmem:[%s6] sm:$0x1]
      %v2670 = vperm.slane %v2668, 0
      %v2672 = vadd.f32 %v2597, %v2670
      %v2673 = vadd.f32 %v2600, %v2670
      %v2674 = vadd.f32 %v2603, %v2670
      %v2675 = vadd.f32 %v2606, %v2670
      %v2676 = vadd.f32 %v2609, %v2670
      %v2677 = vadd.f32 %v2612, %v2670
      %v2678 = vadd.f32 %v2615, %v2670
      %v2679 = vadd.f32 %v2618, %v2670
      %v2680 = vadd.f32 %v2621, %v2670
      %v2681 = vadd.f32 %v2624, %v2670
      %v2682 = vadd.f32 %v2627, %v2670
      %v2683 = vadd.f32 %v2630, %v2670
      %v2684 = vadd.f32 %v2633, %v2670
      %v2685 = vadd.f32 %v2636, %v2670
      %v2686 = vadd.f32 %v2639, %v2670
      %v2687 = vadd.f32 %v2642, %v2670
      %v2688 = vadd.f32 %v2645, %v2670
      %v2689 = vadd.f32 %v2648, %v2670
      %v2690 = vadd.f32 %v2651, %v2670
      %v2691 = vadd.f32 %v2654, %v2670
      %v2692 = vadd.f32 %v2657, %v2670
      %v2693 = vadd.f32 %v2660, %v2670
      %v2694 = vadd.f32 %v2663, %v2670
      %v2695 = vadd.f32 %v2666, %v2670
      %v2696 = vmax.f32 %v2672, 0.0
      %v2697 = vmax.f32 %v2673, 0.0
      %v2698 = vmax.f32 %v2674, 0.0
      %v2699 = vmax.f32 %v2675, 0.0
      %v2700 = vmax.f32 %v2676, 0.0
      %v2701 = vmax.f32 %v2677, 0.0
      %v2702 = vmax.f32 %v2678, 0.0
      %v2703 = vmax.f32 %v2679, 0.0
      %v2704 = vmax.f32 %v2680, 0.0
      %v2705 = vmax.f32 %v2681, 0.0
      %v2706 = vmax.f32 %v2682, 0.0
      %v2707 = vmax.f32 %v2683, 0.0
      %v2708 = vmax.f32 %v2684, 0.0
      %v2709 = vmax.f32 %v2685, 0.0
      %v2710 = vmax.f32 %v2686, 0.0
      %v2711 = vmax.f32 %v2687, 0.0
      %v2712 = vmax.f32 %v2688, 0.0
      %v2713 = vmax.f32 %v2689, 0.0
      %v2714 = vmax.f32 %v2690, 0.0
      %v2715 = vmax.f32 %v2691, 0.0
      %v2716 = vmax.f32 %v2692, 0.0
      %v2717 = vmax.f32 %v2693, 0.0
      %v2718 = vmax.f32 %v2694, 0.0
      %v2719 = vmax.f32 %v2695, 0.0
      %v2720 = vld [vmem:[%s331 + $0x4] sm:$0xff]
      %v2721 = vld [vmem:[%s331 + $0xc] sm:$0xf]
      %v2722 = vld [vmem:[%s331 + $0x14] sm:$0xff]
      %v2723 = vld [vmem:[%s331 + $0x1c] sm:$0xf]
      %v2724 = vld [vmem:[%s331 + $0x24] sm:$0xff]
      %v2725 = vld [vmem:[%s331 + $0x2c] sm:$0xf]
      %v2726 = vld [vmem:[%s331 + $0x34] sm:$0xff]
      %v2727 = vld [vmem:[%s331 + $0x3c] sm:$0xf]
      %v2728 = vld [vmem:[%s331 + $0x44] sm:$0xff]
      %v2729 = vld [vmem:[%s331 + $0x4c] sm:$0xf]
      %v2730 = vld [vmem:[%s331 + $0x54] sm:$0xff]
      %v2731 = vld [vmem:[%s331 + $0x5c] sm:$0xf]
      %v2732 = vld [vmem:[%s331 + $0x64] sm:$0xff]
      %v2733 = vld [vmem:[%s331 + $0x6c] sm:$0xf]
      %v2734 = vld [vmem:[%s331 + $0x74] sm:$0xff]
      %v2735 = vld [vmem:[%s331 + $0x7c] sm:$0xf]
      %v2736 = vld [vmem:[%s331 + $0x84] sm:$0xff]
      %v2737 = vld [vmem:[%s331 + $0x8c] sm:$0xf]
      %v2738 = vld [vmem:[%s331 + $0x94] sm:$0xff]
      %v2739 = vld [vmem:[%s331 + $0x9c] sm:$0xf]
      %v2740 = vld [vmem:[%s331 + $0xa4] sm:$0xff]
      %v2741 = vld [vmem:[%s331 + $0xac] sm:$0xf]
      %v2742 = vld [vmem:[%s331 + $0xb4] sm:$0xff]
      %v2743 = vld [vmem:[%s331 + $0xbc] sm:$0xf]
      %v2744 = vld [vmem:[%s331 + $0xc4] sm:$0xff]
      %v2745 = vld [vmem:[%s331 + $0xcc] sm:$0xf]
      %v2746 = vld [vmem:[%s331 + $0xd4] sm:$0xff]
      %v2747 = vld [vmem:[%s331 + $0xdc] sm:$0xf]
      %v2748 = vld [vmem:[%s331 + $0xe4] sm:$0xff]
      %v2749 = vld [vmem:[%s331 + $0xec] sm:$0xf]
      %v2750 = vld [vmem:[%s331 + $0xf4] sm:$0xff]
      %v2751 = vld [vmem:[%s331 + $0xfc] sm:$0xf]
      %v2784 = vrot.slane %v2720, 4
      %v2785 = vrot.slane %v2722, 4
      %v2786 = vrot.slane %v2724, 4
      %v2787 = vrot.slane %v2726, 4
      %v2788 = vrot.slane %v2728, 4
      %v2789 = vrot.slane %v2730, 4
      %v2790 = vrot.slane %v2732, 4
      %v2791 = vrot.slane %v2734, 4
      %v2792 = vrot.slane %v2736, 4
      %v2793 = vrot.slane %v2738, 4
      %v2794 = vrot.slane %v2740, 4
      %v2795 = vrot.slane %v2742, 4
      %v2796 = vrot.slane %v2744, 4
      %v2797 = vrot.slane %v2746, 4
      %v2798 = vrot.slane %v2748, 4
      %v2799 = vrot.slane %v2750, 4
      %v2800 = vld [vmem:[%s7] sm:$0xf]
      %2801 = vst [vmem:[#allocation1] ss:$2 sm:$0xff] %v2720
      %s2802 = scalar_lea.vmem [#allocation1], 1
      %2803 = vst [vmem:[%s2802] ss:$2 sm:$0xff] %v2784
      %s2804 = scalar_lea.vmem [#allocation1], 16
      %2805 = vst [vmem:[%s2804] ss:$2 sm:$0xff] %v2721
      %s2806 = scalar_lea.vmem [#allocation1], 17
      %2807 = vst [vmem:[%s2806] ss:$2 sm:$0xff] %v2722
      %s2808 = scalar_lea.vmem [#allocation1], 32
      %2809 = vst [vmem:[%s2808] ss:$2 sm:$0xff] %v2785
      %s2810 = scalar_lea.vmem [#allocation1], 33
      %2811 = vst [vmem:[%s2810] ss:$2 sm:$0xff] %v2723
      %s2812 = scalar_lea.vmem [#allocation1], 48
      %2813 = vst [vmem:[%s2812] ss:$2 sm:$0xff] %v2724
      %s2814 = scalar_lea.vmem [#allocation1], 49
      %2815 = vst [vmem:[%s2814] ss:$2 sm:$0xff] %v2786
      %v2816 = vld.sshfl [vmem:[#allocation1] sm:$0xff pattern:$0x75316420]
      %v2817 = vld.sshfl [vmem:[#allocation1 + $0x10] sm:$0xff pattern:$0x75316420]
      %v2818 = vld.sshfl [vmem:[#allocation1 + $0x20] sm:$0xff pattern:$0x75316420]
      %v2819 = vld.sshfl [vmem:[#allocation1 + $0x30] sm:$0xff pattern:$0x75316420]
      %2820 = vst [vmem:[#allocation1] ss:$2 sm:$0xff] %v2725
      %2821 = vst [vmem:[%s2802] ss:$2 sm:$0xff] %v2726
      %2822 = vst [vmem:[%s2804] ss:$2 sm:$0xff] %v2787
      %2823 = vst [vmem:[%s2806] ss:$2 sm:$0xff] %v2727
      %2824 = vst [vmem:[%s2808] ss:$2 sm:$0xff] %v2728
      %2825 = vst [vmem:[%s2810] ss:$2 sm:$0xff] %v2788
      %2826 = vst [vmem:[%s2812] ss:$2 sm:$0xff] %v2729
      %2827 = vst [vmem:[%s2814] ss:$2 sm:$0xff] %v2730
      %v2828 = vld.sshfl [vmem:[#allocation1] sm:$0xff pattern:$0x75316420]
      %v2829 = vld.sshfl [vmem:[#allocation1 + $0x10] sm:$0xff pattern:$0x75316420]
      %v2830 = vld.sshfl [vmem:[#allocation1 + $0x20] sm:$0xff pattern:$0x75316420]
      %v2831 = vld.sshfl [vmem:[#allocation1 + $0x30] sm:$0xff pattern:$0x75316420]
      %2832 = vst [vmem:[#allocation1] ss:$2 sm:$0xff] %v2789
      %2833 = vst [vmem:[%s2802] ss:$2 sm:$0xff] %v2731
      %2834 = vst [vmem:[%s2804] ss:$2 sm:$0xff] %v2732
      %2835 = vst [vmem:[%s2806] ss:$2 sm:$0xff] %v2790
      %2836 = vst [vmem:[%s2808] ss:$2 sm:$0xff] %v2733
      %2837 = vst [vmem:[%s2810] ss:$2 sm:$0xff] %v2734
      %2838 = vst [vmem:[%s2812] ss:$2 sm:$0xff] %v2791
      %2839 = vst [vmem:[%s2814] ss:$2 sm:$0xff] %v2735
      %v2840 = vld.sshfl [vmem:[#allocation1] sm:$0xff pattern:$0x75316420]
      %v2841 = vld.sshfl [vmem:[#allocation1 + $0x10] sm:$0xff pattern:$0x75316420]
      %v2842 = vld.sshfl [vmem:[#allocation1 + $0x20] sm:$0xff pattern:$0x75316420]
      %v2843 = vld.sshfl [vmem:[#allocation1 + $0x30] sm:$0xff pattern:$0x75316420]
      %2844 = vst [vmem:[#allocation1] ss:$2 sm:$0xff] %v2736
      %2845 = vst [vmem:[%s2802] ss:$2 sm:$0xff] %v2792
      %2846 = vst [vmem:[%s2804] ss:$2 sm:$0xff] %v2737
      %2847 = vst [vmem:[%s2806] ss:$2 sm:$0xff] %v2738
      %2848 = vst [vmem:[%s2808] ss:$2 sm:$0xff] %v2793
      %2849 = vst [vmem:[%s2810] ss:$2 sm:$0xff] %v2739
      %2850 = vst [vmem:[%s2812] ss:$2 sm:$0xff] %v2740
      %2851 = vst [vmem:[%s2814] ss:$2 sm:$0xff] %v2794
      %v2852 = vld.sshfl [vmem:[#allocation1] sm:$0xff pattern:$0x75316420]
      %v2853 = vld.sshfl [vmem:[#allocation1 + $0x10] sm:$0xff pattern:$0x75316420]
      %v2854 = vld.sshfl [vmem:[#allocation1 + $0x20] sm:$0xff pattern:$0x75316420]
      %v2855 = vld.sshfl [vmem:[#allocation1 + $0x30] sm:$0xff pattern:$0x75316420]
      %2856 = vst [vmem:[#allocation1] ss:$2 sm:$0xff] %v2741
      %2857 = vst [vmem:[%s2802] ss:$2 sm:$0xff] %v2742
      %2858 = vst [vmem:[%s2804] ss:$2 sm:$0xff] %v2795
      %2859 = vst [vmem:[%s2806] ss:$2 sm:$0xff] %v2743
      %2860 = vst [vmem:[%s2808] ss:$2 sm:$0xff] %v2744
      %2861 = vst [vmem:[%s2810] ss:$2 sm:$0xff] %v2796
      %2862 = vst [vmem:[%s2812] ss:$2 sm:$0xff] %v2745
      %2863 = vst [vmem:[%s2814] ss:$2 sm:$0xff] %v2746
      %v2864 = vld.sshfl [vmem:[#allocation1] sm:$0xff pattern:$0x75316420]
      %v2865 = vld.sshfl [vmem:[#allocation1 + $0x10] sm:$0xff pattern:$0x75316420]
      %v2866 = vld.sshfl [vmem:[#allocation1 + $0x20] sm:$0xff pattern:$0x75316420]
      %v2867 = vld.sshfl [vmem:[#allocation1 + $0x30] sm:$0xff pattern:$0x75316420]
      %2868 = vst [vmem:[#allocation1] ss:$2 sm:$0xff] %v2797
      %2869 = vst [vmem:[%s2802] ss:$2 sm:$0xff] %v2747
      %2870 = vst [vmem:[%s2804] ss:$2 sm:$0xff] %v2748
      %2871 = vst [vmem:[%s2806] ss:$2 sm:$0xff] %v2798
      %2872 = vst [vmem:[%s2808] ss:$2 sm:$0xff] %v2749
      %2873 = vst [vmem:[%s2810] ss:$2 sm:$0xff] %v2750
      %2874 = vst [vmem:[%s2812] ss:$2 sm:$0xff] %v2799
      %2875 = vst [vmem:[%s2814] ss:$2 sm:$0xff] %v2751
      %v2876 = vld.sshfl [vmem:[#allocation1] sm:$0xff pattern:$0x75316420]
      %v2877 = vld.sshfl [vmem:[#allocation1 + $0x10] sm:$0xff pattern:$0x75316420]
      %v2878 = vld.sshfl [vmem:[#allocation1 + $0x20] sm:$0xff pattern:$0x75316420]
      %v2879 = vld.sshfl [vmem:[#allocation1 + $0x30] sm:$0xff pattern:$0x75316420]
      %v2880 = vsel %vm615, %v2816, 0
      %v2882 = vsel %vm615, %v2817, 0
      %v2884 = vsel %vm615, %v2818, 0
      %v2886 = vsel %vm615, %v2819, 0
      %v2888 = vsel %vm615, %v2828, 0
      %v2890 = vsel %vm615, %v2829, 0
      %v2892 = vsel %vm615, %v2830, 0
      %v2894 = vsel %vm615, %v2831, 0
      %v2896 = vsel %vm615, %v2840, 0
      %v2898 = vsel %vm615, %v2841, 0
      %v2900 = vsel %vm615, %v2842, 0
      %v2902 = vsel %vm615, %v2843, 0
      %v2904 = vsel %vm615, %v2852, 0
      %v2906 = vsel %vm615, %v2853, 0
      %v2908 = vsel %vm615, %v2854, 0
      %v2910 = vsel %vm615, %v2855, 0
      %v2912 = vsel %vm615, %v2864, 0
      %v2914 = vsel %vm615, %v2865, 0
      %v2916 = vsel %vm615, %v2866, 0
      %v2918 = vsel %vm615, %v2867, 0
      %v2920 = vsel %vm615, %v2876, 0
      %v2922 = vsel %vm615, %v2877, 0
      %v2924 = vsel %vm615, %v2878, 0
      %v2926 = vsel %vm615, %v2879, 0
      %v2929 = vsel %vm664, %v2800, 0
      %2931 = vmatpush.msra.mxu0 0.0
      %2932 = vmatpush.msra.mxu0 0.0
      %2933 = vmatpush.msra.mxu0 0.0
      %2934 = vmatpush.msra.mxu0 0.0
      %2935 = vmatpush.msra.mxu0 0.0
      %2936 = vmatpush.msra.mxu0 0.0
      %2937 = vmatpush.msra.mxu0 0.0
      %2938 = vmatpush.msra.mxu0 0.0
      %2939 = vmatpush.msra.mxu0 0.0
      %2940 = vmatpush.msra.mxu0 0.0
      %2941 = vmatpush.msra.mxu0 0.0
      %2942 = vmatpush.msra.mxu0 0.0
      %2943 = vmatpush.msra.mxu0 0.0
      %2944 = vmatpush.msra.mxu0 0.0
      %2945 = vmatpush.msra.mxu0 0.0
      %2946 = vmatpush.msra.mxu0 %v2929
      %2947 = vmatmul.f32.gmra.mxu0 %v2880
      %v2948 = vpop.f32.mrf.mxu0
      %v2949 = vadd.f32 0.0, %v2948
      %2950 = vmatmul.f32.gmra.mxu0 %v2882
      %v2951 = vpop.f32.mrf.mxu0
      %v2952 = vadd.f32 0.0, %v2951
      %2953 = vmatmul.f32.gmra.mxu0 %v2884
      %v2954 = vpop.f32.mrf.mxu0
      %v2955 = vadd.f32 0.0, %v2954
      %2956 = vmatmul.f32.gmra.mxu0 %v2886
      %v2957 = vpop.f32.mrf.mxu0
      %v2958 = vadd.f32 0.0, %v2957
      %2959 = vmatmul.f32.gmra.mxu0 %v2888
      %v2960 = vpop.f32.mrf.mxu0
      %v2961 = vadd.f32 0.0, %v2960
      %2962 = vmatmul.f32.gmra.mxu0 %v2890
      %v2963 = vpop.f32.mrf.mxu0
      %v2964 = vadd.f32 0.0, %v2963
      %2965 = vmatmul.f32.gmra.mxu0 %v2892
      %v2966 = vpop.f32.mrf.mxu0
      %v2967 = vadd.f32 0.0, %v2966
      %2968 = vmatmul.f32.gmra.mxu0 %v2894
      %v2969 = vpop.f32.mrf.mxu0
      %v2970 = vadd.f32 0.0, %v2969
      %2971 = vmatmul.f32.gmra.mxu0 %v2896
      %v2972 = vpop.f32.mrf.mxu0
      %v2973 = vadd.f32 0.0, %v2972
      %2974 = vmatmul.f32.gmra.mxu0 %v2898
      %v2975 = vpop.f32.mrf.mxu0
      %v2976 = vadd.f32 0.0, %v2975
      %2977 = vmatmul.f32.gmra.mxu0 %v2900
      %v2978 = vpop.f32.mrf.mxu0
      %v2979 = vadd.f32 0.0, %v2978
      %2980 = vmatmul.f32.gmra.mxu0 %v2902
      %v2981 = vpop.f32.mrf.mxu0
      %v2982 = vadd.f32 0.0, %v2981
      %2983 = vmatmul.f32.gmra.mxu0 %v2904
      %v2984 = vpop.f32.mrf.mxu0
      %v2985 = vadd.f32 0.0, %v2984
      %2986 = vmatmul.f32.gmra.mxu0 %v2906
      %v2987 = vpop.f32.mrf.mxu0
      %v2988 = vadd.f32 0.0, %v2987
      %2989 = vmatmul.f32.gmra.mxu0 %v2908
      %v2990 = vpop.f32.mrf.mxu0
      %v2991 = vadd.f32 0.0, %v2990
      %2992 = vmatmul.f32.gmra.mxu0 %v2910
      %v2993 = vpop.f32.mrf.mxu0
      %v2994 = vadd.f32 0.0, %v2993
      %2995 = vmatmul.f32.gmra.mxu0 %v2912
      %v2996 = vpop.f32.mrf.mxu0
      %v2997 = vadd.f32 0.0, %v2996
      %2998 = vmatmul.f32.gmra.mxu0 %v2914
      %v2999 = vpop.f32.mrf.mxu0
      %v3000 = vadd.f32 0.0, %v2999
      %3001 = vmatmul.f32.gmra.mxu0 %v2916
      %v3002 = vpop.f32.mrf.mxu0
      %v3003 = vadd.f32 0.0, %v3002
      %3004 = vmatmul.f32.gmra.mxu0 %v2918
      %v3005 = vpop.f32.mrf.mxu0
      %v3006 = vadd.f32 0.0, %v3005
      %3007 = vmatmul.f32.gmra.mxu0 %v2920
      %v3008 = vpop.f32.mrf.mxu0
      %v3009 = vadd.f32 0.0, %v3008
      %3010 = vmatmul.f32.gmra.mxu0 %v2922
      %v3011 = vpop.f32.mrf.mxu0
      %v3012 = vadd.f32 0.0, %v3011
      %3013 = vmatmul.f32.gmra.mxu0 %v2924
      %v3014 = vpop.f32.mrf.mxu0
      %v3015 = vadd.f32 0.0, %v3014
      %3016 = vmatmul.f32.gmra.mxu0 %v2926
      %v3017 = vpop.f32.mrf.mxu0
      %v3018 = vadd.f32 0.0, %v3017
      %3019 = vdwg.mxu0
      %v3020 = vadd.f32 %v2696, %v2949
      %v3021 = vadd.f32 %v2697, %v2952
      %v3022 = vadd.f32 %v2698, %v2955
      %v3023 = vadd.f32 %v2699, %v2958
      %v3024 = vadd.f32 %v2700, %v2961
      %v3025 = vadd.f32 %v2701, %v2964
      %v3026 = vadd.f32 %v2702, %v2967
      %v3027 = vadd.f32 %v2703, %v2970
      %v3028 = vadd.f32 %v2704, %v2973
      %v3029 = vadd.f32 %v2705, %v2976
      %v3030 = vadd.f32 %v2706, %v2979
      %v3031 = vadd.f32 %v2707, %v2982
      %v3032 = vadd.f32 %v2708, %v2985
      %v3033 = vadd.f32 %v2709, %v2988
      %v3034 = vadd.f32 %v2710, %v2991
      %v3035 = vadd.f32 %v2711, %v2994
      %v3036 = vadd.f32 %v2712, %v2997
      %v3037 = vadd.f32 %v2713, %v3000
      %v3038 = vadd.f32 %v2714, %v3003
      %v3039 = vadd.f32 %v2715, %v3006
      %v3040 = vadd.f32 %v2716, %v3009
      %v3041 = vadd.f32 %v2717, %v3012
      %v3042 = vadd.f32 %v2718, %v3015
      %v3043 = vadd.f32 %v2719, %v3018
      %v3044 = vld [vmem:[%s8] sm:$0x1]
      %v3046 = vperm.slane %v3044, 0
      %v3048 = vadd.f32 %v3020, %v3046
      %v3049 = vadd.f32 %v3021, %v3046
      %v3050 = vadd.f32 %v3022, %v3046
      %v3051 = vadd.f32 %v3023, %v3046
      %v3052 = vadd.f32 %v3024, %v3046
      %v3053 = vadd.f32 %v3025, %v3046
      %v3054 = vadd.f32 %v3026, %v3046
      %v3055 = vadd.f32 %v3027, %v3046
      %v3056 = vadd.f32 %v3028, %v3046
      %v3057 = vadd.f32 %v3029, %v3046
      %v3058 = vadd.f32 %v3030, %v3046
      %v3059 = vadd.f32 %v3031, %v3046
      %v3060 = vadd.f32 %v3032, %v3046
      %v3061 = vadd.f32 %v3033, %v3046
      %v3062 = vadd.f32 %v3034, %v3046
      %v3063 = vadd.f32 %v3035, %v3046
      %v3064 = vadd.f32 %v3036, %v3046
      %v3065 = vadd.f32 %v3037, %v3046
      %v3066 = vadd.f32 %v3038, %v3046
      %v3067 = vadd.f32 %v3039, %v3046
      %v3068 = vadd.f32 %v3040, %v3046
      %v3069 = vadd.f32 %v3041, %v3046
      %v3070 = vadd.f32 %v3042, %v3046
      %v3071 = vadd.f32 %v3043, %v3046
      %v3072 = vmax.f32 %v3048, 0.0
      %v3073 = vmax.f32 %v3049, 0.0
      %v3074 = vmax.f32 %v3050, 0.0
      %v3075 = vmax.f32 %v3051, 0.0
      %v3076 = vmax.f32 %v3052, 0.0
      %v3077 = vmax.f32 %v3053, 0.0
      %v3078 = vmax.f32 %v3054, 0.0
      %v3079 = vmax.f32 %v3055, 0.0
      %v3080 = vmax.f32 %v3056, 0.0
      %v3081 = vmax.f32 %v3057, 0.0
      %v3082 = vmax.f32 %v3058, 0.0
      %v3083 = vmax.f32 %v3059, 0.0
      %v3084 = vmax.f32 %v3060, 0.0
      %v3085 = vmax.f32 %v3061, 0.0
      %v3086 = vmax.f32 %v3062, 0.0
      %v3087 = vmax.f32 %v3063, 0.0
      %v3088 = vmax.f32 %v3064, 0.0
      %v3089 = vmax.f32 %v3065, 0.0
      %v3090 = vmax.f32 %v3066, 0.0
      %v3091 = vmax.f32 %v3067, 0.0
      %v3092 = vmax.f32 %v3068, 0.0
      %v3093 = vmax.f32 %v3069, 0.0
      %v3094 = vmax.f32 %v3070, 0.0
      %v3095 = vmax.f32 %v3071, 0.0
      %vm3096 = vcmask 261120
      %3097 = vst.msk [vmem:[%s337] sm:$0xff] %vm3096, %v3072
      %3098 = vst.msk [vmem:[%s337 + $0x8] sm:$0xff] %vm3096, %v3073
      %3099 = vst.msk [vmem:[%s337 + $0x10] sm:$0xff] %vm3096, %v3074
      %3100 = vst.msk [vmem:[%s337 + $0x18] sm:$0xff] %vm3096, %v3075
      %3101 = vst.msk [vmem:[%s337 + $0x20] sm:$0xff] %vm3096, %v3076
      %3102 = vst.msk [vmem:[%s337 + $0x28] sm:$0xff] %vm3096, %v3077
      %3103 = vst.msk [vmem:[%s337 + $0x30] sm:$0xff] %vm3096, %v3078
      %3104 = vst.msk [vmem:[%s337 + $0x38] sm:$0xff] %vm3096, %v3079
      %3105 = vst.msk [vmem:[%s337 + $0x40] sm:$0xff] %vm3096, %v3080
      %3106 = vst.msk [vmem:[%s337 + $0x48] sm:$0xff] %vm3096, %v3081
      %3107 = vst.msk [vmem:[%s337 + $0x50] sm:$0xff] %vm3096, %v3082
      %3108 = vst.msk [vmem:[%s337 + $0x58] sm:$0xff] %vm3096, %v3083
      %3109 = vst.msk [vmem:[%s337 + $0x60] sm:$0xff] %vm3096, %v3084
      %3110 = vst.msk [vmem:[%s337 + $0x68] sm:$0xff] %vm3096, %v3085
      %3111 = vst.msk [vmem:[%s337 + $0x70] sm:$0xff] %vm3096, %v3086
      %3112 = vst.msk [vmem:[%s337 + $0x78] sm:$0xff] %vm3096, %v3087
      %3113 = vst.msk [vmem:[%s337 + $0x80] sm:$0xff] %vm3096, %v3088
      %3114 = vst.msk [vmem:[%s337 + $0x88] sm:$0xff] %vm3096, %v3089
      %3115 = vst.msk [vmem:[%s337 + $0x90] sm:$0xff] %vm3096, %v3090
      %3116 = vst.msk [vmem:[%s337 + $0x98] sm:$0xff] %vm3096, %v3091
      %3117 = vst.msk [vmem:[%s337 + $0xa0] sm:$0xff] %vm3096, %v3092
      %3118 = vst.msk [vmem:[%s337 + $0xa8] sm:$0xff] %vm3096, %v3093
      %3119 = vst.msk [vmem:[%s337 + $0xb0] sm:$0xff] %vm3096, %v3094
      %3120 = vst.msk [vmem:[%s337 + $0xb8] sm:$0xff] %vm3096, %v3095
      %s3121 = smul.u32 24, %s20
      %p3122 = scmp.lt.s32.totalorder %s3121, 47
      %s3123 = scalar_select %p3122, %s3121, 47
      %s3124 = smul.addr %s3123, 8
      %s3125 = scalar_lea.vmem %s9, %s3124
      // Predicated region
      $region57: #{tpu_custom_call.1} parent=55 // pred_check
        %p3126 = pneg %p232
      $region58: #{tpu_custom_call.1} parent=55 // pred_check_branch
        %3128 = sbr.rel (%p3126) target = $region60
      $region59: #{tpu_custom_call.1} parent=55 // pred_region
        %s3129 = smul.u32 24, %s20
      $region60: #{tpu_custom_call.1} parent=55 // pred_fallthru
        _
    $region56: #{tpu_custom_call.1} parent=5 // pred_fallthru
      _
    %p3130 = scmp.le.s32.totalorder 2, %s15
    // Predicated region
    $region61: #{tpu_custom_call.1} parent=5 // pred_check
      %p3131 = pneg %p3130
    $region62: #{tpu_custom_call.1} parent=5 // pred_check_branch
      %3133 = sbr.rel (%p3131) target = $region64
    $region63: #{tpu_custom_call.1} parent=5 // pred_region
      %s3134 = ssub.s32 %s15, 2
      // Predicated region
      $region65: #{tpu_custom_call.1} parent=63 // pred_check
        %p3135 = pneg %p238
      $region66: #{tpu_custom_call.1} parent=63 // pred_check_branch
        %3137 = sbr.rel (%p3135) target = $region68
      $region67: #{tpu_custom_call.1} parent=63 // pred_region
        %s3138 = smul.u32 24, %s21
        %p3139 = scmp.lt.s32.totalorder %s3138, 47
        %s3140 = scalar_select %p3139, %s3138, 47
        %s3141 = smul.addr %s3140, 8
        %s3142 = scalar_lea.vmem %s9, %s3141
      $region68: #{tpu_custom_call.1} parent=63 // pred_fallthru
        _
    $region64: #{tpu_custom_call.1} parent=5 // pred_fallthru
      _
  $region6: #{tpu_custom_call.1} parent=0 // loop_footer
    %s19 = sadd.s32 1, %s15
  $region7: #{tpu_custom_call.1} parent=0 // loop_footer_branch
    %14 = sbr.rel target = $region3
  $region8: #{tpu_custom_call.1} parent=0 // loop_exit
    _

</llo_original>
